<compile_context>
chip_gen: v6e
topology: v6e:2x2x1
jax: 0.10.0
libtpu: 0.0.40
codegen_flags: <defaults>
</compile_context>

<pallas_src>
import functools

import jax
import jax.numpy as jnp
import numpy as np
from jax.experimental import pallas as pl
from jax.experimental.pallas import tpu as pltpu

EPS = 1e-5
_MIB = 1024 * 1024


# --------------------------------------------------------------------------
# helpers
# --------------------------------------------------------------------------
def _round_up(x, m):
    return (x + m - 1) // m * m


def _pick_row_tile(n, target):
    """Largest multiple of 8 that divides n and is <= target (min 8)."""
    assert n % 8 == 0, "row count must be a multiple of 8"
    t = min(target, n)
    t -= t % 8
    while t >= 8 and n % t != 0:
        t -= 8
    return max(t, 8)


def _compiler_params(vmem_bytes):
    return pltpu.CompilerParams(dimension_semantics=("parallel",),
                                vmem_limit_bytes=vmem_bytes)


def _vmem_limit(nbytes):
    # Generous headroom, still well below physical VMEM on all chips.
    return int(min(100 * _MIB, max(32 * _MIB, 2 * nbytes)))


def _bn_scale_shift(s_ref, g_ref, b_ref, inv_n):
    """Per-channel scale/shift from summed (sum, sumsq) stats (rows 0, 1)."""
    mu = s_ref[0:1, :] * inv_n
    var = jnp.maximum(s_ref[1:2, :] * inv_n - mu * mu, 0.0)   # cancellation guard
    inv_std = jax.lax.rsqrt(var + EPS)
    scale = g_ref[...] * inv_std
    shift = b_ref[...] - mu * scale
    return scale, shift


def _stats_rows(y_f32):
    """(8, C) stats block: row0 = sum, row1 = sumsq, rows 2..7 = 0 (dense store)."""
    c = y_f32.shape[-1]
    return jnp.concatenate(
        [jnp.sum(y_f32, axis=0, keepdims=True),
         jnp.sum(y_f32 * y_f32, axis=0, keepdims=True),
         jnp.zeros((6, c), jnp.float32)], axis=0)


# --------------------------------------------------------------------------
# kernels
# --------------------------------------------------------------------------
def _matmul_stats_kernel(x_ref, w_ref, y_ref, s_ref):
    """y = x @ w (bf16 MXU, f32 acc) -> bf16 store; per-tile (sum, sumsq)."""
    y = jnp.dot(x_ref[...], w_ref[...], preferred_element_type=jnp.float32)
    y_ref[...] = y.astype(jnp.bfloat16)
    s_ref[0] = _stats_rows(y)


def _conv3x3_bn_fused_kernel(y1_ref, s_ref, g_ref, b_ref, w_ref,
                             y2_ref, so_ref, pad_ref, sh_ref, *, h, w, inv_n):
    """Fused BN1+ReLU (zero-halo VMEM pad) -> 3x3 conv as 3 K-stacked matmuls."""
    c = pad_ref.shape[-1]
    cout = y2_ref.shape[-1]
    scale, shift = _bn_scale_shift(s_ref, g_ref, b_ref, inv_n)
    scale3 = scale.reshape(1, 1, c)
    shift3 = shift.reshape(1, 1, c)

    # BN1 + ReLU, written once into the zero-halo padded scratch (f32).
    pad_ref[...] = jnp.zeros_like(pad_ref)
    t = jnp.maximum(y1_ref[0].astype(jnp.float32) * scale3 + shift3, 0.0)
    pad_ref[1:1 + h, 1:1 + w, :] = t

    # Hoisted dx shifts + single cast point: lane-stacked (Hp, W, 3C) image so
    # each matmul sees K = 3*C and dy is a cheap leading-dim slice.
    for dx in range(3):
        sh_ref[:, :, dx * c:(dx + 1) * c] = \
            pad_ref[:, dx:dx + w, :].astype(jnp.bfloat16)

    acc = jnp.zeros((h * w, cout), jnp.float32)
    for dy in range(3):
        patch = sh_ref[dy:dy + h]                          # (h, w, 3C) bf16
        acc = acc + jnp.dot(patch.reshape(h * w, 3 * c), w_ref[dy],
                            preferred_element_type=jnp.float32)
    y2_ref[...] = acc.astype(jnp.bfloat16)
    so_ref[0] = _stats_rows(acc)


def _bn_relu_matmul_stats_kernel(y_ref, s_ref, g_ref, b_ref, w_ref,
                                 o_ref, so_ref, *, inv_n):
    """t = relu(BN(y)); o = t @ w (bf16 store); per-tile (sum, sumsq) of o."""
    scale, shift = _bn_scale_shift(s_ref, g_ref, b_ref, inv_n)
    t = jnp.maximum(y_ref[...].astype(jnp.float32) * scale + shift, 0.0)
    o = jnp.dot(t.astype(jnp.bfloat16), w_ref[...],
                preferred_element_type=jnp.float32)
    o_ref[...] = o.astype(jnp.bfloat16)
    so_ref[0] = _stats_rows(o)


def _bn_res_relu_kernel(y_ref, s_ref, g_ref, b_ref, r_ref, o_ref, *, inv_n):
    """out = relu(BN(y) + residual) -- final stage, f32 module output."""
    scale, shift = _bn_scale_shift(s_ref, g_ref, b_ref, inv_n)
    o_ref[...] = jnp.maximum(
        y_ref[...].astype(jnp.float32) * scale + shift
        + r_ref[...].astype(jnp.float32), 0.0)


# --------------------------------------------------------------------------
# pallas_call wrappers
# --------------------------------------------------------------------------
def _matmul_stats(x_bf16, w_bf16, tm):
    n, k = x_bf16.shape
    c = w_bf16.shape[1]
    g = n // tm
    cost = pl.CostEstimate(
        flops=2 * n * k * c, transcendentals=0,
        bytes_accessed=2 * (n * k + k * c + n * c) + 4 * g * 8 * c)
    y, s = pl.pallas_call(
        _matmul_stats_kernel,
        grid=(g,),
        in_specs=[pl.BlockSpec((tm, k), lambda i: (i, 0)),
                  pl.BlockSpec((k, c), lambda i: (0, 0))],
        out_specs=[pl.BlockSpec((tm, c), lambda i: (i, 0)),
                   pl.BlockSpec((1, 8, c), lambda i: (i, 0, 0))],
        out_shape=[jax.ShapeDtypeStruct((n, c), jnp.bfloat16),
                   jax.ShapeDtypeStruct((g, 8, c), jnp.float32)],
        compiler_params=_compiler_params(
            _vmem_limit(2 * 2 * (tm * k + k * c + tm * c) + 2 * 8 * c * 4)),
        cost_estimate=cost,
    )(x_bf16, w_bf16)
    return y, jnp.sum(s, axis=0)          # tiny (G,8,C) -> (8,C) XLA reduce


def _conv3x3_bn_fused(y1_2d, s1, gamma, beta, w2s, nb, h, w, n_rows):
    c = y1_2d.shape[1]
    cout = w2s.shape[2]
    hp, wp = h + 2, w + 2
    n = nb * h * w
    y1_4d = y1_2d.reshape(nb, h, w, c)     # metadata-only reshape
    kern = functools.partial(_conv3x3_bn_fused_kernel, h=h, w=w,
                             inv_n=1.0 / float(n_rows))
    vmem = (2 * (h * w * c * 2 + h * w * cout * 2 + 8 * cout * 4)
            + 2 * 9 * c * cout * 2
            + hp * wp * c * 4 + hp * w * 3 * c * 2
            + 4 * h * w * cout * 4)
    cost = pl.CostEstimate(
        flops=2 * n * 9 * c * cout, transcendentals=0,
        bytes_accessed=2 * (n * c + 9 * c * cout + n * cout) + 4 * nb * 8 * cout)
    y2, s2 = pl.pallas_call(
        kern,
        grid=(nb,),
        in_specs=[pl.BlockSpec((1, h, w, c), lambda i: (i, 0, 0, 0)),
                  pl.BlockSpec((8, c), lambda i: (0, 0)),
                  pl.BlockSpec((1, c), lambda i: (0, 0)),
                  pl.BlockSpec((1, c), lambda i: (0, 0)),
                  pl.BlockSpec((3, 3 * c, cout), lambda i: (0, 0, 0))],
        out_specs=[pl.BlockSpec((h * w, cout), lambda i: (i, 0)),
                   pl.BlockSpec((1, 8, cout), lambda i: (i, 0, 0))],
        out_shape=[jax.ShapeDtypeStruct((n, cout), jnp.bfloat16),
                   jax.ShapeDtypeStruct((nb, 8, cout), jnp.float32)],
        scratch_shapes=[pltpu.VMEM((hp, wp, c), jnp.float32),
                        pltpu.VMEM((hp, w, 3 * c), jnp.bfloat16)],
        compiler_params=_compiler_params(_vmem_limit(vmem)),
        cost_estimate=cost,
    )(y1_4d, s1, gamma, beta, w2s)
    return y2, jnp.sum(s2, axis=0)


def _bn_relu_matmul_stats(y, s, gamma, beta, w_bf16, n_rows, tm):
    n, cin = y.shape
    cout = w_bf16.shape[1]
    g = n // tm
    kern = functools.partial(_bn_relu_matmul_stats_kernel,
                             inv_n=1.0 / float(n_rows))
    cost = pl.CostEstimate(
        flops=2 * n * cin * cout, transcendentals=0,
        bytes_accessed=2 * (n * cin + cin * cout + n * cout) + 4 * g * 8 * cout)
    o, so = pl.pallas_call(
        kern,
        grid=(g,),
        in_specs=[pl.BlockSpec((tm, cin), lambda i: (i, 0)),
                  pl.BlockSpec((8, cin), lambda i: (0, 0)),
                  pl.BlockSpec((1, cin), lambda i: (0, 0)),
                  pl.BlockSpec((1, cin), lambda i: (0, 0)),
                  pl.BlockSpec((cin, cout), lambda i: (0, 0))],
        out_specs=[pl.BlockSpec((tm, cout), lambda i: (i, 0)),
                   pl.BlockSpec((1, 8, cout), lambda i: (i, 0, 0))],
        out_shape=[jax.ShapeDtypeStruct((n, cout), jnp.bfloat16),
                   jax.ShapeDtypeStruct((g, 8, cout), jnp.float32)],
        compiler_params=_compiler_params(
            _vmem_limit(2 * 2 * (tm * cin + cin * cout + tm * cout)
                        + 4 * tm * cout)),
        cost_estimate=cost,
    )(y, s, gamma, beta, w_bf16)
    return o, jnp.sum(so, axis=0)


def _bn_res_relu_apply(y, s, gamma, beta, residual, n_rows, tm):
    n, c = y.shape
    kern = functools.partial(_bn_res_relu_kernel, inv_n=1.0 / float(n_rows))
    row_bf = pl.BlockSpec((tm, c), lambda i: (i, 0))
    return pl.pallas_call(
        kern,
        grid=(n // tm,),
        in_specs=[row_bf,
                  pl.BlockSpec((8, c), lambda i: (0, 0)),
                  pl.BlockSpec((1, c), lambda i: (0, 0)),
                  pl.BlockSpec((1, c), lambda i: (0, 0)),
                  row_bf],
        out_specs=pl.BlockSpec((tm, c), lambda i: (i, 0)),
        out_shape=jax.ShapeDtypeStruct((n, c), jnp.float32),
        compiler_params=_compiler_params(
            _vmem_limit(2 * (2 * tm * c * 2 + tm * c * 4))),
    )(y, s, gamma, beta, residual)


# --------------------------------------------------------------------------
# Bottleneck forward
# --------------------------------------------------------------------------
def bottleneck_forward(x_nchw, params, row_tile=1024):
    """x_nchw: (B, inplanes, H, W) float32, PyTorch NCHW convention."""
    b, cin, h, w = x_nchw.shape
    n = b * h * w
    width = params["w1"].shape[0]
    cout = params["w3"].shape[0]
    assert cin == cout, "identity path requires inplanes == planes*expansion"
    assert w % 8 == 0, "W must be a multiple of 8 for the in-kernel reshape"

    cin_p = _round_up(cin, 128)
    wid_p = _round_up(width, 128)
    cout_p = _round_up(cout, 128)
    tm = _pick_row_tile(n, row_tile)

    # NCHW -> flattened NHWC (rows, channels), channels zero-padded to lanes.
    # When chaining Bottleneck blocks, keep activations in this bf16 form
    # between blocks and skip these boundary transposes entirely.
    x_nhwc = jnp.transpose(x_nchw, (0, 2, 3, 1))
    x2d_bf16 = jnp.pad(x_nhwc.reshape(n, cin),
                       ((0, 0), (0, cin_p - cin))).astype(jnp.bfloat16)

    # Weights (bf16, lane-padded).  w2 is K-stacked per dy: (3, 3*C, C).
    w1 = jnp.pad(params["w1"][:, :, 0, 0].T,
                 ((0, cin_p - cin), (0, wid_p - width))).astype(jnp.bfloat16)
    w2 = jnp.transpose(params["w2"], (2, 3, 1, 0)).reshape(9, width, width)
    w2 = jnp.pad(w2, ((0, 0), (0, wid_p - width), (0, wid_p - width)))
    w2 = w2.reshape(3, 3 * wid_p, wid_p).astype(jnp.bfloat16)
    w3 = jnp.pad(params["w3"][:, :, 0, 0].T,
                 ((0, wid_p - width), (0, cout_p - cout))).astype(jnp.bfloat16)

    def pad_vec(v, cp):
        return jnp.pad(v.astype(jnp.float32), (0, cp - v.shape[0])).reshape(1, cp)

    g1, b1 = pad_vec(params["g1"], wid_p), pad_vec(params["b1"], wid_p)
    g2, b2 = pad_vec(params["g2"], wid_p), pad_vec(params["b2"], wid_p)
    g3, b3 = pad_vec(params["g3"], cout_p), pad_vec(params["b3"], cout_p)

    # Stage 1: conv1x1 + per-tile BN1 stats (parallel row grid).
    y1, s1 = _matmul_stats(x2d_bf16, w1, tm)                    # bf16 (N, wid_p)

    # Stage 2: fused BN1+ReLU (in-VMEM halo) + 3x3 conv + per-image BN2 stats.
    y2, s2 = _conv3x3_bn_fused(y1, s1, g1, b1, w2, b, h, w, n)  # bf16 (N, wid_p)

    # Stage 3: fused BN2+ReLU -> conv3 (1x1) + per-tile BN3 stats.
    y3, s3 = _bn_relu_matmul_stats(y2, s2, g2, b2, w3, n, tm)   # bf16 (N, cout_p)

    # Stage 4: BN3 + identity residual (bf16) + ReLU -> f32 module output.
    out2d = _bn_res_relu_apply(y3, s3, g3, b3, x2d_bf16, n, tm)

    out = out2d[:, :cout].reshape(b, h, w, cout)
    return jnp.transpose(out, (0, 3, 1, 2))                     # -> NCHW


# --------------------------------------------------------------------------
# Pure-JAX reference (mirrors the kernel numerics: bf16 MXU inputs, f32 acc,
# bf16 round-trips of the inter-stage activations, f32 BN stats).
# --------------------------------------------------------------------------
def _reference(x_nchw, params):
    b, cin, h, w = x_nchw.shape
    n = b * h * w
    width = params["w1"].shape[0]
    cout = params["w3"].shape[0]
    x2d = jnp.transpose(x_nchw, (0, 2, 3, 1)).reshape(n, cin)
    x2d_bf = x2d.astype(jnp.bfloat16)

    def mm(a_bf16, ww):
        return jnp.dot(a_bf16.astype(jnp.bfloat16), ww.astype(jnp.bfloat16),
                       preferred_element_type=jnp.float32)

    def scale_shift(y_f32, g, bb):
        mu = y_f32.mean(0, keepdims=True)
        var = jnp.maximum((y_f32 * y_f32).mean(0, keepdims=True) - mu * mu, 0.0)
        scale = g.reshape(1, -1) * jax.lax.rsqrt(var + EPS)
        shift = bb.reshape(1, -1) - mu * scale
        return scale, shift

    # Stage 1
    w1 = params["w1"][:, :, 0, 0].T
    y1 = mm(x2d_bf, w1)
    sc1, sh1 = scale_shift(y1, params["g1"], params["b1"])
    y1b = y1.astype(jnp.bfloat16).astype(jnp.float32)
    t1 = jnp.maximum(y1b * sc1 + sh1, 0.0).astype(jnp.bfloat16)

    # Stage 2: 3x3 conv (stride 1, pad 1)
    t1p = jnp.pad(t1.reshape(b, h, w, width), ((0, 0), (1, 1), (1, 1), (0, 0)))
    w2 = jnp.transpose(params["w2"], (2, 3, 1, 0)).reshape(9, width, width)
    y2 = jnp.zeros((n, width), jnp.float32)
    for dy in range(3):
        for dx in range(3):
            patch = t1p[:, dy:dy + h, dx:dx + w, :].reshape(n, width)
            y2 = y2 + mm(patch, w2[dy * 3 + dx])
    sc2, sh2 = scale_shift(y2, params["g2"], params["b2"])
    y2b = y2.astype(jnp.bfloat16).astype(jnp.float32)
    t2 = jnp.maximum(y2b * sc2 + sh2, 0.0).astype(jnp.bfloat16)

    # Stage 3 + residual
    w3 = params["w3"][:, :, 0, 0].T
    y3 = mm(t2, w3)
    sc3, sh3 = scale_shift(y3, params["g3"], params["b3"])
    y3b = y3.astype(jnp.bfloat16).astype(jnp.float32)
    out = jnp.maximum(y3b * sc3 + sh3 + x2d_bf.astype(jnp.float32), 0.0)
    return jnp.transpose(out.reshape(b, h, w, cout), (0, 3, 1, 2))


# --------------------------------------------------------------------------
if __name__ == "__main__":
    # Small shapes: inplanes = planes * expansion so the identity add is valid.
    B, H, W = 2, 8, 8
    planes = 4
    expansion = 4
    inplanes = planes * expansion          # 16
    width = planes                         # base_width=64, groups=1 -> width=planes
    cout = planes * expansion              # 16

    key = jax.random.PRNGKey(0)
    ks = jax.random.split(key, 10)
    params = {
        # PyTorch conv weight layout: (out_channels, in_channels, kh, kw)
        "w1": 0.1 * jax.random.normal(ks[0], (width, inplanes, 1, 1), jnp.float32),
        "w2": 0.1 * jax.random.normal(ks[1], (width, width, 3, 3), jnp.float32),
        "w3": 0.1 * jax.random.normal(ks[2], (cout, width, 1, 1), jnp.float32),
        "g1": 1.0 + 0.1 * jax.random.normal(ks[3], (width,), jnp.float32),
        "b1": 0.1 * jax.random.normal(ks[4], (width,), jnp.float32),
        "g2": 1.0 + 0.1 * jax.random.normal(ks[5], (width,), jnp.float32),
        "b2": 0.1 * jax.random.normal(ks[6], (width,), jnp.float32),
        "g3": 1.0 + 0.1 * jax.random.normal(ks[7], (cout,), jnp.float32),
        "b3": 0.1 * jax.random.normal(ks[8], (cout,), jnp.float32),
    }
    x = jax.random.normal(ks[9], (B, inplanes, H, W), jnp.float32)  # NCHW

    # row_tile=64 -> 2 row tiles: exercises the multi-tile partial-stats path.
    fwd = jax.jit(lambda xx, pp: bottleneck_forward(xx, pp, row_tile=64))
    out = jax.block_until_ready(fwd(x, params))
    ref = jax.block_until_ready(_reference(x, params))

    assert out.shape == (B, cout, H, W), out.shape
    np.testing.assert_allclose(np.asarray(out), np.asarray(ref),
                               rtol=2e-2, atol=2e-2)
    print("KERNEL_OK")
</pallas_src>

<mosaic_0001>
module attributes {stable_mosaic.version = 11 : i64} {
  func.func @_conv3x3_bn_fused_kernel(%arg0: i32, %arg1: memref<1x8x8x128xbf16, #tpu.memory_space<vmem>>, %arg2: memref<8x128xf32, #tpu.memory_space<vmem>>, %arg3: memref<1x128xf32, #tpu.memory_space<vmem>>, %arg4: memref<1x128xf32, #tpu.memory_space<vmem>>, %arg5: memref<3x384x128xbf16, #tpu.memory_space<vmem>>, %arg6: memref<64x128xbf16, #tpu.memory_space<vmem>>, %arg7: memref<1x8x128xf32, #tpu.memory_space<vmem>>, %arg8: memref<10x10x128xf32, #tpu.memory_space<vmem>>, %arg9: memref<10x8x384xbf16, #tpu.memory_space<vmem>>) attributes {dimension_semantics = [#tpu.dimension_semantics<parallel>], iteration_bounds = array<i64: 2>, scalar_prefetch = 0 : i64, scratch_operands = 2 : i64, tpu.core_type = #tpu.core_type<tc>, window_params = [{transform_indices = @transform_0, window_bounds = array<i64: 1, 8, 8, 128>}, {pipeline_mode = #tpu.pipeline_mode<synchronous>, transform_indices = @transform_1, window_bounds = array<i64: 8, 128>}, {pipeline_mode = #tpu.pipeline_mode<synchronous>, transform_indices = @transform_2, window_bounds = array<i64: 1, 128>}, {pipeline_mode = #tpu.pipeline_mode<synchronous>, transform_indices = @transform_3, window_bounds = array<i64: 1, 128>}, {pipeline_mode = #tpu.pipeline_mode<synchronous>, transform_indices = @transform_4, window_bounds = array<i64: 3, 384, 128>}, {transform_indices = @transform_5, window_bounds = array<i64: 64, 128>}, {transform_indices = @transform_6, window_bounds = array<i64: 1, 8, 128>}]} {
    %c0 = arith.constant 0 : index
    %c0_0 = arith.constant 0 : index
    %0 = vector.load %arg2[%c0, %c0_0] : memref<8x128xf32, #tpu.memory_space<vmem>>, vector<1x128xf32>
    %cst = arith.constant 7.812500e-03 : f32
    %1 = vector.broadcast %cst : f32 to vector<1x128xf32>
    %2 = arith.mulf %0, %1 : vector<1x128xf32>
    %c1 = arith.constant 1 : index
    %c0_1 = arith.constant 0 : index
    %3 = vector.load %arg2[%c1, %c0_1] : memref<8x128xf32, #tpu.memory_space<vmem>>, vector<1x128xf32>
    %cst_2 = arith.constant 7.812500e-03 : f32
    %4 = vector.broadcast %cst_2 : f32 to vector<1x128xf32>
    %5 = arith.mulf %3, %4 : vector<1x128xf32>
    %6 = arith.mulf %2, %2 : vector<1x128xf32>
    %7 = arith.subf %5, %6 : vector<1x128xf32>
    %cst_3 = arith.constant 0.000000e+00 : f32
    %8 = vector.broadcast %cst_3 : f32 to vector<1x128xf32>
    %9 = arith.maximumf %7, %8 : vector<1x128xf32>
    %cst_4 = arith.constant 9.99999974E-6 : f32
    %10 = vector.broadcast %cst_4 : f32 to vector<1x128xf32>
    %11 = arith.addf %9, %10 : vector<1x128xf32>
    %12 = math.rsqrt %11 : vector<1x128xf32>
    %c0_5 = arith.constant 0 : index
    %c0_6 = arith.constant 0 : index
    %13 = vector.load %arg3[%c0_5, %c0_6] : memref<1x128xf32, #tpu.memory_space<vmem>>, vector<1x128xf32>
    %14 = arith.mulf %13, %12 : vector<1x128xf32>
    %c0_7 = arith.constant 0 : index
    %c0_8 = arith.constant 0 : index
    %15 = vector.load %arg4[%c0_7, %c0_8] : memref<1x128xf32, #tpu.memory_space<vmem>>, vector<1x128xf32>
    %16 = arith.mulf %2, %14 : vector<1x128xf32>
    %17 = arith.subf %15, %16 : vector<1x128xf32>
    %18 = vector.shape_cast %14 : vector<1x128xf32> to vector<1x1x128xf32>
    %19 = vector.shape_cast %17 : vector<1x128xf32> to vector<1x1x128xf32>
    %cst_9 = arith.constant 0.000000e+00 : f32
    %20 = vector.broadcast %cst_9 : f32 to vector<10x10x128xf32>
    %c0_10 = arith.constant 0 : index
    %c0_11 = arith.constant 0 : index
    %c0_12 = arith.constant 0 : index
    %21 = vector.load %arg8[%c0_10, %c0_11, %c0_12] : memref<10x10x128xf32, #tpu.memory_space<vmem>>, vector<10x10x128xf32>
    tpu.vector_store %arg8[%c0_10, %c0_11, %c0_12], %20 {strides = array<i32>} : memref<10x10x128xf32, #tpu.memory_space<vmem>>, vector<10x10x128xf32>,
    %c0_13 = arith.constant 0 : index
    %c0_14 = arith.constant 0 : index
    %c0_15 = arith.constant 0 : index
    %c0_16 = arith.constant 0 : index
    %22 = vector.load %arg1[%c0_13, %c0_14, %c0_15, %c0_16] : memref<1x8x8x128xbf16, #tpu.memory_space<vmem>>, vector<1x8x8x128xbf16>
    %23 = vector.shape_cast %22 : vector<1x8x8x128xbf16> to vector<8x8x128xbf16>
    %24 = arith.extf %23 : vector<8x8x128xbf16> to vector<8x8x128xf32>
    %25 = vector.broadcast %18 : vector<1x1x128xf32> to vector<8x8x128xf32>
    %26 = arith.mulf %24, %25 : vector<8x8x128xf32>
    %27 = vector.broadcast %19 : vector<1x1x128xf32> to vector<8x8x128xf32>
    %28 = arith.addf %26, %27 : vector<8x8x128xf32>
    %cst_17 = arith.constant 0.000000e+00 : f32
    %29 = vector.broadcast %cst_17 : f32 to vector<8x8x128xf32>
    %30 = arith.maximumf %28, %29 : vector<8x8x128xf32>
    %c1_18 = arith.constant 1 : index
    %c1_19 = arith.constant 1 : index
    %c0_20 = arith.constant 0 : index
    %31 = vector.load %arg8[%c1_18, %c1_19, %c0_20] : memref<10x10x128xf32, #tpu.memory_space<vmem>>, vector<8x8x128xf32>
    tpu.vector_store %arg8[%c1_18, %c1_19, %c0_20], %30 {strides = array<i32>} : memref<10x10x128xf32, #tpu.memory_space<vmem>>, vector<8x8x128xf32>,
    %c0_21 = arith.constant 0 : index
    %c0_22 = arith.constant 0 : index
    %c0_23 = arith.constant 0 : index
    %32 = vector.load %arg8[%c0_21, %c0_22, %c0_23] : memref<10x10x128xf32, #tpu.memory_space<vmem>>, vector<10x8x128xf32>
    %33 = arith.truncf %32 : vector<10x8x128xf32> to vector<10x8x128xbf16>
    %c0_24 = arith.constant 0 : index
    %c0_25 = arith.constant 0 : index
    %c0_26 = arith.constant 0 : index
    %34 = vector.load %arg9[%c0_24, %c0_25, %c0_26] : memref<10x8x384xbf16, #tpu.memory_space<vmem>>, vector<10x8x128xbf16>
    tpu.vector_store %arg9[%c0_24, %c0_25, %c0_26], %33 {strides = array<i32>} : memref<10x8x384xbf16, #tpu.memory_space<vmem>>, vector<10x8x128xbf16>,
    %c0_27 = arith.constant 0 : index
    %c1_28 = arith.constant 1 : index
    %c0_29 = arith.constant 0 : index
    %35 = vector.load %arg8[%c0_27, %c1_28, %c0_29] : memref<10x10x128xf32, #tpu.memory_space<vmem>>, vector<10x8x128xf32>
    %36 = arith.truncf %35 : vector<10x8x128xf32> to vector<10x8x128xbf16>
    %c0_30 = arith.constant 0 : index
    %c0_31 = arith.constant 0 : index
    %c128 = arith.constant 128 : index
    %37 = vector.load %arg9[%c0_30, %c0_31, %c128] : memref<10x8x384xbf16, #tpu.memory_space<vmem>>, vector<10x8x128xbf16>
    tpu.vector_store %arg9[%c0_30, %c0_31, %c128], %36 {strides = array<i32>} : memref<10x8x384xbf16, #tpu.memory_space<vmem>>, vector<10x8x128xbf16>,
    %c0_32 = arith.constant 0 : index
    %c2 = arith.constant 2 : index
    %c0_33 = arith.constant 0 : index
    %38 = vector.load %arg8[%c0_32, %c2, %c0_33] : memref<10x10x128xf32, #tpu.memory_space<vmem>>, vector<10x8x128xf32>
    %39 = arith.truncf %38 : vector<10x8x128xf32> to vector<10x8x128xbf16>
    %c0_34 = arith.constant 0 : index
    %c0_35 = arith.constant 0 : index
    %c256 = arith.constant 256 : index
    %40 = vector.load %arg9[%c0_34, %c0_35, %c256] : memref<10x8x384xbf16, #tpu.memory_space<vmem>>, vector<10x8x128xbf16>
    tpu.vector_store %arg9[%c0_34, %c0_35, %c256], %39 {strides = array<i32>} : memref<10x8x384xbf16, #tpu.memory_space<vmem>>, vector<10x8x128xbf16>,
    %cst_36 = arith.constant 0.000000e+00 : f32
    %41 = vector.broadcast %cst_36 : f32 to vector<64x128xf32>
    %c0_37 = arith.constant 0 : index
    %c0_38 = arith.constant 0 : index
    %c0_39 = arith.constant 0 : index
    %42 = vector.load %arg9[%c0_37, %c0_38, %c0_39] : memref<10x8x384xbf16, #tpu.memory_space<vmem>>, vector<8x8x384xbf16>
    %43 = vector.shape_cast %42 : vector<8x8x384xbf16> to vector<64x384xbf16>
    %c0_40 = arith.constant 0 : index
    %c0_41 = arith.constant 0 : index
    %c0_42 = arith.constant 0 : index
    %44 = vector.load %arg5[%c0_40, %c0_41, %c0_42] : memref<3x384x128xbf16, #tpu.memory_space<vmem>>, vector<1x384x128xbf16>
    %45 = vector.shape_cast %44 : vector<1x384x128xbf16> to vector<384x128xbf16>
    %cst_43 = arith.constant dense<0.000000e+00> : vector<64x128xf32>
    %46 = tpu.matmul %43, %45, %cst_43 {dimension_numbers = #tpu.dot_dimension_numbers<[1], [0], [0], [1], [0, 0, 1, 1], [], []>} : vector<64x384xbf16>, vector<384x128xbf16>, vector<64x128xf32> -> vector<64x128xf32>
    %47 = arith.addf %41, %46 : vector<64x128xf32>
    %c1_44 = arith.constant 1 : index
    %c0_45 = arith.constant 0 : index
    %c0_46 = arith.constant 0 : index
    %48 = vector.load %arg9[%c1_44, %c0_45, %c0_46] : memref<10x8x384xbf16, #tpu.memory_space<vmem>>, vector<8x8x384xbf16>
    %49 = vector.shape_cast %48 : vector<8x8x384xbf16> to vector<64x384xbf16>
    %c1_47 = arith.constant 1 : index
    %c0_48 = arith.constant 0 : index
    %c0_49 = arith.constant 0 : index
    %50 = vector.load %arg5[%c1_47, %c0_48, %c0_49] : memref<3x384x128xbf16, #tpu.memory_space<vmem>>, vector<1x384x128xbf16>
    %51 = vector.shape_cast %50 : vector<1x384x128xbf16> to vector<384x128xbf16>
    %cst_50 = arith.constant dense<0.000000e+00> : vector<64x128xf32>
    %52 = tpu.matmul %49, %51, %cst_50 {dimension_numbers = #tpu.dot_dimension_numbers<[1], [0], [0], [1], [0, 0, 1, 1], [], []>} : vector<64x384xbf16>, vector<384x128xbf16>, vector<64x128xf32> -> vector<64x128xf32>
    %53 = arith.addf %47, %52 : vector<64x128xf32>
    %c2_51 = arith.constant 2 : index
    %c0_52 = arith.constant 0 : index
    %c0_53 = arith.constant 0 : index
    %54 = vector.load %arg9[%c2_51, %c0_52, %c0_53] : memref<10x8x384xbf16, #tpu.memory_space<vmem>>, vector<8x8x384xbf16>
    %55 = vector.shape_cast %54 : vector<8x8x384xbf16> to vector<64x384xbf16>
    %c2_54 = arith.constant 2 : index
    %c0_55 = arith.constant 0 : index
    %c0_56 = arith.constant 0 : index
    %56 = vector.load %arg5[%c2_54, %c0_55, %c0_56] : memref<3x384x128xbf16, #tpu.memory_space<vmem>>, vector<1x384x128xbf16>
    %57 = vector.shape_cast %56 : vector<1x384x128xbf16> to vector<384x128xbf16>
    %cst_57 = arith.constant dense<0.000000e+00> : vector<64x128xf32>
    %58 = tpu.matmul %55, %57, %cst_57 {dimension_numbers = #tpu.dot_dimension_numbers<[1], [0], [0], [1], [0, 0, 1, 1], [], []>} : vector<64x384xbf16>, vector<384x128xbf16>, vector<64x128xf32> -> vector<64x128xf32>
    %59 = arith.addf %53, %58 : vector<64x128xf32>
    %60 = arith.truncf %59 : vector<64x128xf32> to vector<64x128xbf16>
    %c0_58 = arith.constant 0 : index
    %c0_59 = arith.constant 0 : index
    %61 = vector.load %arg6[%c0_58, %c0_59] : memref<64x128xbf16, #tpu.memory_space<vmem>>, vector<64x128xbf16>
    tpu.vector_store %arg6[%c0_58, %c0_59], %60 {strides = array<i32>} : memref<64x128xbf16, #tpu.memory_space<vmem>>, vector<64x128xbf16>,
    %cst_60 = arith.constant dense<0.000000e+00> : vector<128xf32>
    %62 = vector.multi_reduction <add>, %59, %cst_60 [0] : vector<64x128xf32> to vector<128xf32>
    %63 = vector.shape_cast %62 : vector<128xf32> to vector<1x128xf32>
    %64 = arith.mulf %59, %59 : vector<64x128xf32>
    %cst_61 = arith.constant dense<0.000000e+00> : vector<128xf32>
    %65 = vector.multi_reduction <add>, %64, %cst_61 [0] : vector<64x128xf32> to vector<128xf32>
    %66 = vector.shape_cast %65 : vector<128xf32> to vector<1x128xf32>
    %cst_62 = arith.constant 0.000000e+00 : f32
    %67 = vector.broadcast %cst_62 : f32 to vector<6x128xf32>
    %68 = tpu.concatenate %63, %66, %67 in 0 : vector<1x128xf32>, vector<1x128xf32>, vector<6x128xf32> -> vector<8x128xf32>
    %c0_63 = arith.constant 0 : index
    %c0_64 = arith.constant 0 : index
    %c0_65 = arith.constant 0 : index
    %69 = vector.load %arg7[%c0_63, %c0_64, %c0_65] : memref<1x8x128xf32, #tpu.memory_space<vmem>>, vector<1x8x128xf32>
    %70 = vector.shape_cast %69 : vector<1x8x128xf32> to vector<8x128xf32>
    %71 = vector.shape_cast %68 : vector<8x128xf32> to vector<1x8x128xf32>
    tpu.vector_store %arg7[%c0_63, %c0_64, %c0_65], %71 {strides = array<i32>} : memref<1x8x128xf32, #tpu.memory_space<vmem>>, vector<1x8x128xf32>,
    return
  }
  func.func @transform_0(%arg0: i32) -> (i32, i32, i32, i32) {
    %c0_i32 = arith.constant 0 : i32
    %c0_i32_0 = arith.constant 0 : i32
    %c0_i32_1 = arith.constant 0 : i32
    %c0_i32_2 = arith.constant 0 : i32
    return %arg0, %c0_i32, %c0_i32_0, %c0_i32_1 : i32, i32, i32, i32
  }
  func.func @transform_1(%arg0: i32) -> (i32, i32) {
    %c0_i32 = arith.constant 0 : i32
    %c0_i32_0 = arith.constant 0 : i32
    %c0_i32_1 = arith.constant 0 : i32
    return %c0_i32, %c0_i32_0 : i32, i32
  }
  func.func @transform_2(%arg0: i32) -> (i32, i32) {
    %c0_i32 = arith.constant 0 : i32
    %c0_i32_0 = arith.constant 0 : i32
    %c0_i32_1 = arith.constant 0 : i32
    return %c0_i32, %c0_i32_0 : i32, i32
  }
  func.func @transform_3(%arg0: i32) -> (i32, i32) {
    %c0_i32 = arith.constant 0 : i32
    %c0_i32_0 = arith.constant 0 : i32
    %c0_i32_1 = arith.constant 0 : i32
    return %c0_i32, %c0_i32_0 : i32, i32
  }
  func.func @transform_4(%arg0: i32) -> (i32, i32, i32) {
    %c0_i32 = arith.constant 0 : i32
    %c0_i32_0 = arith.constant 0 : i32
    %c0_i32_1 = arith.constant 0 : i32
    %c0_i32_2 = arith.constant 0 : i32
    return %c0_i32, %c0_i32_0, %c0_i32_1 : i32, i32, i32
  }
  func.func @transform_5(%arg0: i32) -> (i32, i32) {
    %c0_i32 = arith.constant 0 : i32
    %c0_i32_0 = arith.constant 0 : i32
    return %arg0, %c0_i32 : i32, i32
  }
  func.func @transform_6(%arg0: i32) -> (i32, i32, i32) {
    %c0_i32 = arith.constant 0 : i32
    %c0_i32_0 = arith.constant 0 : i32
    %c0_i32_1 = arith.constant 0 : i32
    return %arg0, %c0_i32, %c0_i32_0 : i32, i32, i32
  }
}

module attributes {stable_mosaic.version = 11 : i64} {
  func.func @_matmul_stats_kernel(%arg0: i32, %arg1: memref<64x128xbf16, #tpu.memory_space<vmem>>, %arg2: memref<128x128xbf16, #tpu.memory_space<vmem>>, %arg3: memref<64x128xbf16, #tpu.memory_space<vmem>>, %arg4: memref<1x8x128xf32, #tpu.memory_space<vmem>>) attributes {dimension_semantics = [#tpu.dimension_semantics<parallel>], iteration_bounds = array<i64: 2>, scalar_prefetch = 0 : i64, scratch_operands = 0 : i64, tpu.core_type = #tpu.core_type<tc>, window_params = [{transform_indices = @transform_0, window_bounds = array<i64: 64, 128>}, {pipeline_mode = #tpu.pipeline_mode<synchronous>, transform_indices = @transform_1, window_bounds = array<i64: 128, 128>}, {transform_indices = @transform_2, window_bounds = array<i64: 64, 128>}, {transform_indices = @transform_3, window_bounds = array<i64: 1, 8, 128>}]} {
    %c0 = arith.constant 0 : index
    %c0_0 = arith.constant 0 : index
    %0 = vector.load %arg1[%c0, %c0_0] : memref<64x128xbf16, #tpu.memory_space<vmem>>, vector<64x128xbf16>
    %c0_1 = arith.constant 0 : index
    %c0_2 = arith.constant 0 : index
    %1 = vector.load %arg2[%c0_1, %c0_2] : memref<128x128xbf16, #tpu.memory_space<vmem>>, vector<128x128xbf16>
    %cst = arith.constant dense<0.000000e+00> : vector<64x128xf32>
    %2 = tpu.matmul %0, %1, %cst {dimension_numbers = #tpu.dot_dimension_numbers<[1], [0], [0], [1], [0, 0, 1, 1], [], []>} : vector<64x128xbf16>, vector<128x128xbf16>, vector<64x128xf32> -> vector<64x128xf32>
    %3 = arith.truncf %2 : vector<64x128xf32> to vector<64x128xbf16>
    %c0_3 = arith.constant 0 : index
    %c0_4 = arith.constant 0 : index
    %4 = vector.load %arg3[%c0_3, %c0_4] : memref<64x128xbf16, #tpu.memory_space<vmem>>, vector<64x128xbf16>
    tpu.vector_store %arg3[%c0_3, %c0_4], %3 {strides = array<i32>} : memref<64x128xbf16, #tpu.memory_space<vmem>>, vector<64x128xbf16>,
    %cst_5 = arith.constant dense<0.000000e+00> : vector<128xf32>
    %5 = vector.multi_reduction <add>, %2, %cst_5 [0] : vector<64x128xf32> to vector<128xf32>
    %6 = vector.shape_cast %5 : vector<128xf32> to vector<1x128xf32>
    %7 = arith.mulf %2, %2 : vector<64x128xf32>
    %cst_6 = arith.constant dense<0.000000e+00> : vector<128xf32>
    %8 = vector.multi_reduction <add>, %7, %cst_6 [0] : vector<64x128xf32> to vector<128xf32>
    %9 = vector.shape_cast %8 : vector<128xf32> to vector<1x128xf32>
    %cst_7 = arith.constant 0.000000e+00 : f32
    %10 = vector.broadcast %cst_7 : f32 to vector<6x128xf32>
    %11 = tpu.concatenate %6, %9, %10 in 0 : vector<1x128xf32>, vector<1x128xf32>, vector<6x128xf32> -> vector<8x128xf32>
    %c0_8 = arith.constant 0 : index
    %c0_9 = arith.constant 0 : index
    %c0_10 = arith.constant 0 : index
    %12 = vector.load %arg4[%c0_8, %c0_9, %c0_10] : memref<1x8x128xf32, #tpu.memory_space<vmem>>, vector<1x8x128xf32>
    %13 = vector.shape_cast %12 : vector<1x8x128xf32> to vector<8x128xf32>
    %14 = vector.shape_cast %11 : vector<8x128xf32> to vector<1x8x128xf32>
    tpu.vector_store %arg4[%c0_8, %c0_9, %c0_10], %14 {strides = array<i32>} : memref<1x8x128xf32, #tpu.memory_space<vmem>>, vector<1x8x128xf32>,
    return
  }
  func.func @transform_0(%arg0: i32) -> (i32, i32) {
    %c0_i32 = arith.constant 0 : i32
    %c0_i32_0 = arith.constant 0 : i32
    return %arg0, %c0_i32 : i32, i32
  }
  func.func @transform_1(%arg0: i32) -> (i32, i32) {
    %c0_i32 = arith.constant 0 : i32
    %c0_i32_0 = arith.constant 0 : i32
    %c0_i32_1 = arith.constant 0 : i32
    return %c0_i32, %c0_i32_0 : i32, i32
  }
  func.func @transform_2(%arg0: i32) -> (i32, i32) {
    %c0_i32 = arith.constant 0 : i32
    %c0_i32_0 = arith.constant 0 : i32
    return %arg0, %c0_i32 : i32, i32
  }
  func.func @transform_3(%arg0: i32) -> (i32, i32, i32) {
    %c0_i32 = arith.constant 0 : i32
    %c0_i32_0 = arith.constant 0 : i32
    %c0_i32_1 = arith.constant 0 : i32
    return %arg0, %c0_i32, %c0_i32_0 : i32, i32, i32
  }
}

module attributes {stable_mosaic.version = 11 : i64} {
  func.func @_bn_relu_matmul_stats_kernel(%arg0: i32, %arg1: memref<64x128xbf16, #tpu.memory_space<vmem>>, %arg2: memref<8x128xf32, #tpu.memory_space<vmem>>, %arg3: memref<1x128xf32, #tpu.memory_space<vmem>>, %arg4: memref<1x128xf32, #tpu.memory_space<vmem>>, %arg5: memref<128x128xbf16, #tpu.memory_space<vmem>>, %arg6: memref<64x128xbf16, #tpu.memory_space<vmem>>, %arg7: memref<1x8x128xf32, #tpu.memory_space<vmem>>) attributes {dimension_semantics = [#tpu.dimension_semantics<parallel>], iteration_bounds = array<i64: 2>, scalar_prefetch = 0 : i64, scratch_operands = 0 : i64, tpu.core_type = #tpu.core_type<tc>, window_params = [{transform_indices = @transform_0, window_bounds = array<i64: 64, 128>}, {pipeline_mode = #tpu.pipeline_mode<synchronous>, transform_indices = @transform_1, window_bounds = array<i64: 8, 128>}, {pipeline_mode = #tpu.pipeline_mode<synchronous>, transform_indices = @transform_2, window_bounds = array<i64: 1, 128>}, {pipeline_mode = #tpu.pipeline_mode<synchronous>, transform_indices = @transform_3, window_bounds = array<i64: 1, 128>}, {pipeline_mode = #tpu.pipeline_mode<synchronous>, transform_indices = @transform_4, window_bounds = array<i64: 128, 128>}, {transform_indices = @transform_5, window_bounds = array<i64: 64, 128>}, {transform_indices = @transform_6, window_bounds = array<i64: 1, 8, 128>}]} {
    %c0 = arith.constant 0 : index
    %c0_0 = arith.constant 0 : index
    %0 = vector.load %arg2[%c0, %c0_0] : memref<8x128xf32, #tpu.memory_space<vmem>>, vector<1x128xf32>
    %cst = arith.constant 7.812500e-03 : f32
    %1 = vector.broadcast %cst : f32 to vector<1x128xf32>
    %2 = arith.mulf %0, %1 : vector<1x128xf32>
    %c1 = arith.constant 1 : index
    %c0_1 = arith.constant 0 : index
    %3 = vector.load %arg2[%c1, %c0_1] : memref<8x128xf32, #tpu.memory_space<vmem>>, vector<1x128xf32>
    %cst_2 = arith.constant 7.812500e-03 : f32
    %4 = vector.broadcast %cst_2 : f32 to vector<1x128xf32>
    %5 = arith.mulf %3, %4 : vector<1x128xf32>
    %6 = arith.mulf %2, %2 : vector<1x128xf32>
    %7 = arith.subf %5, %6 : vector<1x128xf32>
    %cst_3 = arith.constant 0.000000e+00 : f32
    %8 = vector.broadcast %cst_3 : f32 to vector<1x128xf32>
    %9 = arith.maximumf %7, %8 : vector<1x128xf32>
    %cst_4 = arith.constant 9.99999974E-6 : f32
    %10 = vector.broadcast %cst_4 : f32 to vector<1x128xf32>
    %11 = arith.addf %9, %10 : vector<1x128xf32>
    %12 = math.rsqrt %11 : vector<1x128xf32>
    %c0_5 = arith.constant 0 : index
    %c0_6 = arith.constant 0 : index
    %13 = vector.load %arg3[%c0_5, %c0_6] : memref<1x128xf32, #tpu.memory_space<vmem>>, vector<1x128xf32>
    %14 = arith.mulf %13, %12 : vector<1x128xf32>
    %c0_7 = arith.constant 0 : index
    %c0_8 = arith.constant 0 : index
    %15 = vector.load %arg4[%c0_7, %c0_8] : memref<1x128xf32, #tpu.memory_space<vmem>>, vector<1x128xf32>
    %16 = arith.mulf %2, %14 : vector<1x128xf32>
    %17 = arith.subf %15, %16 : vector<1x128xf32>
    %c0_9 = arith.constant 0 : index
    %c0_10 = arith.constant 0 : index
    %18 = vector.load %arg1[%c0_9, %c0_10] : memref<64x128xbf16, #tpu.memory_space<vmem>>, vector<64x128xbf16>
    %19 = arith.extf %18 : vector<64x128xbf16> to vector<64x128xf32>
    %20 = vector.broadcast %14 : vector<1x128xf32> to vector<64x128xf32>
    %21 = arith.mulf %19, %20 : vector<64x128xf32>
    %22 = vector.broadcast %17 : vector<1x128xf32> to vector<64x128xf32>
    %23 = arith.addf %21, %22 : vector<64x128xf32>
    %cst_11 = arith.constant 0.000000e+00 : f32
    %24 = vector.broadcast %cst_11 : f32 to vector<64x128xf32>
    %25 = arith.maximumf %23, %24 : vector<64x128xf32>
    %26 = arith.truncf %25 : vector<64x128xf32> to vector<64x128xbf16>
    %c0_12 = arith.constant 0 : index
    %c0_13 = arith.constant 0 : index
    %27 = vector.load %arg5[%c0_12, %c0_13] : memref<128x128xbf16, #tpu.memory_space<vmem>>, vector<128x128xbf16>
    %cst_14 = arith.constant dense<0.000000e+00> : vector<64x128xf32>
    %28 = tpu.matmul %26, %27, %cst_14 {dimension_numbers = #tpu.dot_dimension_numbers<[1], [0], [0], [1], [0, 0, 1, 1], [], []>} : vector<64x128xbf16>, vector<128x128xbf16>, vector<64x128xf32> -> vector<64x128xf32>
    %29 = arith.truncf %28 : vector<64x128xf32> to vector<64x128xbf16>
    %c0_15 = arith.constant 0 : index
    %c0_16 = arith.constant 0 : index
    %30 = vector.load %arg6[%c0_15, %c0_16] : memref<64x128xbf16, #tpu.memory_space<vmem>>, vector<64x128xbf16>
    tpu.vector_store %arg6[%c0_15, %c0_16], %29 {strides = array<i32>} : memref<64x128xbf16, #tpu.memory_space<vmem>>, vector<64x128xbf16>,
    %cst_17 = arith.constant dense<0.000000e+00> : vector<128xf32>
    %31 = vector.multi_reduction <add>, %28, %cst_17 [0] : vector<64x128xf32> to vector<128xf32>
    %32 = vector.shape_cast %31 : vector<128xf32> to vector<1x128xf32>
    %33 = arith.mulf %28, %28 : vector<64x128xf32>
    %cst_18 = arith.constant dense<0.000000e+00> : vector<128xf32>
    %34 = vector.multi_reduction <add>, %33, %cst_18 [0] : vector<64x128xf32> to vector<128xf32>
    %35 = vector.shape_cast %34 : vector<128xf32> to vector<1x128xf32>
    %cst_19 = arith.constant 0.000000e+00 : f32
    %36 = vector.broadcast %cst_19 : f32 to vector<6x128xf32>
    %37 = tpu.concatenate %32, %35, %36 in 0 : vector<1x128xf32>, vector<1x128xf32>, vector<6x128xf32> -> vector<8x128xf32>
    %c0_20 = arith.constant 0 : index
    %c0_21 = arith.constant 0 : index
    %c0_22 = arith.constant 0 : index
    %38 = vector.load %arg7[%c0_20, %c0_21, %c0_22] : memref<1x8x128xf32, #tpu.memory_space<vmem>>, vector<1x8x128xf32>
    %39 = vector.shape_cast %38 : vector<1x8x128xf32> to vector<8x128xf32>
    %40 = vector.shape_cast %37 : vector<8x128xf32> to vector<1x8x128xf32>
    tpu.vector_store %arg7[%c0_20, %c0_21, %c0_22], %40 {strides = array<i32>} : memref<1x8x128xf32, #tpu.memory_space<vmem>>, vector<1x8x128xf32>,
    return
  }
  func.func @transform_0(%arg0: i32) -> (i32, i32) {
    %c0_i32 = arith.constant 0 : i32
    %c0_i32_0 = arith.constant 0 : i32
    return %arg0, %c0_i32 : i32, i32
  }
  func.func @transform_1(%arg0: i32) -> (i32, i32) {
    %c0_i32 = arith.constant 0 : i32
    %c0_i32_0 = arith.constant 0 : i32
    %c0_i32_1 = arith.constant 0 : i32
    return %c0_i32, %c0_i32_0 : i32, i32
  }
  func.func @transform_2(%arg0: i32) -> (i32, i32) {
    %c0_i32 = arith.constant 0 : i32
    %c0_i32_0 = arith.constant 0 : i32
    %c0_i32_1 = arith.constant 0 : i32
    return %c0_i32, %c0_i32_0 : i32, i32
  }
  func.func @transform_3(%arg0: i32) -> (i32, i32) {
    %c0_i32 = arith.constant 0 : i32
    %c0_i32_0 = arith.constant 0 : i32
    %c0_i32_1 = arith.constant 0 : i32
    return %c0_i32, %c0_i32_0 : i32, i32
  }
  func.func @transform_4(%arg0: i32) -> (i32, i32) {
    %c0_i32 = arith.constant 0 : i32
    %c0_i32_0 = arith.constant 0 : i32
    %c0_i32_1 = arith.constant 0 : i32
    return %c0_i32, %c0_i32_0 : i32, i32
  }
  func.func @transform_5(%arg0: i32) -> (i32, i32) {
    %c0_i32 = arith.constant 0 : i32
    %c0_i32_0 = arith.constant 0 : i32
    return %arg0, %c0_i32 : i32, i32
  }
  func.func @transform_6(%arg0: i32) -> (i32, i32, i32) {
    %c0_i32 = arith.constant 0 : i32
    %c0_i32_0 = arith.constant 0 : i32
    %c0_i32_1 = arith.constant 0 : i32
    return %arg0, %c0_i32, %c0_i32_0 : i32, i32, i32
  }
}

module attributes {stable_mosaic.version = 11 : i64} {
  func.func @_bn_res_relu_kernel(%arg0: i32, %arg1: memref<64x128xbf16, #tpu.memory_space<vmem>>, %arg2: memref<8x128xf32, #tpu.memory_space<vmem>>, %arg3: memref<1x128xf32, #tpu.memory_space<vmem>>, %arg4: memref<1x128xf32, #tpu.memory_space<vmem>>, %arg5: memref<64x128xbf16, #tpu.memory_space<vmem>>, %arg6: memref<64x128xf32, #tpu.memory_space<vmem>>) attributes {dimension_semantics = [#tpu.dimension_semantics<parallel>], iteration_bounds = array<i64: 2>, scalar_prefetch = 0 : i64, scratch_operands = 0 : i64, tpu.core_type = #tpu.core_type<tc>, window_params = [{transform_indices = @transform_0, window_bounds = array<i64: 64, 128>}, {pipeline_mode = #tpu.pipeline_mode<synchronous>, transform_indices = @transform_1, window_bounds = array<i64: 8, 128>}, {pipeline_mode = #tpu.pipeline_mode<synchronous>, transform_indices = @transform_2, window_bounds = array<i64: 1, 128>}, {pipeline_mode = #tpu.pipeline_mode<synchronous>, transform_indices = @transform_3, window_bounds = array<i64: 1, 128>}, {transform_indices = @transform_4, window_bounds = array<i64: 64, 128>}, {transform_indices = @transform_5, window_bounds = array<i64: 64, 128>}]} {
    %c0 = arith.constant 0 : index
    %c0_0 = arith.constant 0 : index
    %0 = vector.load %arg2[%c0, %c0_0] : memref<8x128xf32, #tpu.memory_space<vmem>>, vector<1x128xf32>
    %cst = arith.constant 7.812500e-03 : f32
    %1 = vector.broadcast %cst : f32 to vector<1x128xf32>
    %2 = arith.mulf %0, %1 : vector<1x128xf32>
    %c1 = arith.constant 1 : index
    %c0_1 = arith.constant 0 : index
    %3 = vector.load %arg2[%c1, %c0_1] : memref<8x128xf32, #tpu.memory_space<vmem>>, vector<1x128xf32>
    %cst_2 = arith.constant 7.812500e-03 : f32
    %4 = vector.broadcast %cst_2 : f32 to vector<1x128xf32>
    %5 = arith.mulf %3, %4 : vector<1x128xf32>
    %6 = arith.mulf %2, %2 : vector<1x128xf32>
    %7 = arith.subf %5, %6 : vector<1x128xf32>
    %cst_3 = arith.constant 0.000000e+00 : f32
    %8 = vector.broadcast %cst_3 : f32 to vector<1x128xf32>
    %9 = arith.maximumf %7, %8 : vector<1x128xf32>
    %cst_4 = arith.constant 9.99999974E-6 : f32
    %10 = vector.broadcast %cst_4 : f32 to vector<1x128xf32>
    %11 = arith.addf %9, %10 : vector<1x128xf32>
    %12 = math.rsqrt %11 : vector<1x128xf32>
    %c0_5 = arith.constant 0 : index
    %c0_6 = arith.constant 0 : index
    %13 = vector.load %arg3[%c0_5, %c0_6] : memref<1x128xf32, #tpu.memory_space<vmem>>, vector<1x128xf32>
    %14 = arith.mulf %13, %12 : vector<1x128xf32>
    %c0_7 = arith.constant 0 : index
    %c0_8 = arith.constant 0 : index
    %15 = vector.load %arg4[%c0_7, %c0_8] : memref<1x128xf32, #tpu.memory_space<vmem>>, vector<1x128xf32>
    %16 = arith.mulf %2, %14 : vector<1x128xf32>
    %17 = arith.subf %15, %16 : vector<1x128xf32>
    %c0_9 = arith.constant 0 : index
    %c0_10 = arith.constant 0 : index
    %18 = vector.load %arg1[%c0_9, %c0_10] : memref<64x128xbf16, #tpu.memory_space<vmem>>, vector<64x128xbf16>
    %19 = arith.extf %18 : vector<64x128xbf16> to vector<64x128xf32>
    %20 = vector.broadcast %14 : vector<1x128xf32> to vector<64x128xf32>
    %21 = arith.mulf %19, %20 : vector<64x128xf32>
    %22 = vector.broadcast %17 : vector<1x128xf32> to vector<64x128xf32>
    %23 = arith.addf %21, %22 : vector<64x128xf32>
    %c0_11 = arith.constant 0 : index
    %c0_12 = arith.constant 0 : index
    %24 = vector.load %arg5[%c0_11, %c0_12] : memref<64x128xbf16, #tpu.memory_space<vmem>>, vector<64x128xbf16>
    %25 = arith.extf %24 : vector<64x128xbf16> to vector<64x128xf32>
    %26 = arith.addf %23, %25 : vector<64x128xf32>
    %cst_13 = arith.constant 0.000000e+00 : f32
    %27 = vector.broadcast %cst_13 : f32 to vector<64x128xf32>
    %28 = arith.maximumf %26, %27 : vector<64x128xf32>
    %c0_14 = arith.constant 0 : index
    %c0_15 = arith.constant 0 : index
    %29 = vector.load %arg6[%c0_14, %c0_15] : memref<64x128xf32, #tpu.memory_space<vmem>>, vector<64x128xf32>
    tpu.vector_store %arg6[%c0_14, %c0_15], %28 {strides = array<i32>} : memref<64x128xf32, #tpu.memory_space<vmem>>, vector<64x128xf32>,
    return
  }
  func.func @transform_0(%arg0: i32) -> (i32, i32) {
    %c0_i32 = arith.constant 0 : i32
    %c0_i32_0 = arith.constant 0 : i32
    return %arg0, %c0_i32 : i32, i32
  }
  func.func @transform_1(%arg0: i32) -> (i32, i32) {
    %c0_i32 = arith.constant 0 : i32
    %c0_i32_0 = arith.constant 0 : i32
    %c0_i32_1 = arith.constant 0 : i32
    return %c0_i32, %c0_i32_0 : i32, i32
  }
  func.func @transform_2(%arg0: i32) -> (i32, i32) {
    %c0_i32 = arith.constant 0 : i32
    %c0_i32_0 = arith.constant 0 : i32
    %c0_i32_1 = arith.constant 0 : i32
    return %c0_i32, %c0_i32_0 : i32, i32
  }
  func.func @transform_3(%arg0: i32) -> (i32, i32) {
    %c0_i32 = arith.constant 0 : i32
    %c0_i32_0 = arith.constant 0 : i32
    %c0_i32_1 = arith.constant 0 : i32
    return %c0_i32, %c0_i32_0 : i32, i32
  }
  func.func @transform_4(%arg0: i32) -> (i32, i32) {
    %c0_i32 = arith.constant 0 : i32
    %c0_i32_0 = arith.constant 0 : i32
    return %arg0, %c0_i32 : i32, i32
  }
  func.func @transform_5(%arg0: i32) -> (i32, i32) {
    %c0_i32 = arith.constant 0 : i32
    %c0_i32_0 = arith.constant 0 : i32
    return %arg0, %c0_i32 : i32, i32
  }
}

</mosaic_0001>

<llo_original>
// kernel: _lambda_.4
$region0: #{_lambda_.4}
  #allocation0 [shape = 'u32[]', space=smem, size = 0x4, offset = 0x4, fixed_abs, tag = 'smem constant byte address 0x4 - core index']
  #allocation1 [shape = 'u32[144,128]{1,0:T(1,128)}', space=vmem, size = 0x12000, scoped, tag = 'internal scratch']
  %s0 = inlined_call_operand.vmem [shape: bf16[128,128], index: 0, kind: input, shape index: {}]
  %s1 = inlined_call_operand.vmem [shape: bf16[128,128], index: 1, kind: input, shape index: {}]
  %s2 = inlined_call_operand.vmem [shape: bf16[128,128], index: 2, kind: output, shape index: {0}]
  %s3 = inlined_call_operand.vmem [shape: f32[2,8,128], index: 3, kind: output, shape index: {1}]
  %4 = xla_tuple %s2, %s3
  %s5 = sld [smem:[#allocation0]]
  $region49: #{_lambda_.4} parent=0
    _
  %s7 = ssub.s32 1, %s5
  %s8 = scalar_select 0, %s7, %s5
  loop: start=0, step=1, limit=4
  $region2: #{_lambda_.4} parent=0 // loop_pre_header
    _
  $region3: #{_lambda_.4} parent=0 // loop_header
    %s10 = sphi 0, %s14
    %p11 = scmp.ge.s32.totalorder %s10, 4
    %s20 = sphi 0, %s22
    %s23 = sphi 0, %s20
    %s24 = sphi 0, %s23
    %s40 = sphi 0, %s24
    %s44 = sphi 0, %s44
    %s46 = sphi 0, %s44
    %s47 = sphi 0, %s46
    %s61 = sphi 0, %s47
    %s67 = sphi 0, %s69
    %s70 = sphi 0, %s67
    %s71 = sphi 0, %s70
    %s87 = sphi 0, %s71
    %s93 = sphi 0, %s95
    %s96 = sphi 0, %s93
    %s97 = sphi 0, %s96
    %s113 = sphi 0, %s97
  $region4: #{_lambda_.4} parent=0 // loop_header_branch
    %13 = sbr.rel (%p11) target = $region8
  $region5: #{_lambda_.4} parent=0 // loop_body
    %s15 = ssub.s32 %s10, 1
    %s16 = ssub.s32 %s10, 2
    %s17 = sadd.s32 %s10, 1
    %s18 = ssub.s32 %s10, %s17
    %p19 = scmp.eq.s32.totalorder %s18, 0
    %s21 = sadd.s32 %s20, 1
    %s22 = scalar_select %p19, %s20, %s21
    %p25 = pneg %p19
    %p26 = scmp.eq.s32.totalorder %s10, 1
    %p27 = por %p25, %p26
    %p28 = scmp.ne.s32.totalorder %s20, %s23
    %p29 = scmp.eq.s32.totalorder %s10, 0
    %p30 = por %p28, %p29
    %p31 = scmp.ne.s32.totalorder %s20, %s23
    %p32 = scmp.eq.s32.totalorder %s15, 1
    %p33 = por %p31, %p32
    %p34 = scmp.ne.s32.totalorder %s23, %s24
    %p35 = scmp.eq.s32.totalorder %s15, 0
    %p36 = por %p34, %p35
    %p37 = scmp.ne.s32.totalorder %s23, %s24
    %p38 = scmp.eq.s32.totalorder %s16, 1
    %p39 = por %p37, %p38
    %p41 = scmp.ne.s32.totalorder %s24, %s40
    %p42 = scmp.eq.s32.totalorder %s16, 0
    %p43 = por %p41, %p42
    %s45 = sadd.s32 %s44, 1
    %p48 = scmp.eq.s32.totalorder %s10, 1
    %p49 = scmp.ne.s32.totalorder %s44, %s46
    %p50 = scmp.eq.s32.totalorder %s10, 0
    %p51 = por %p49, %p50
    %p52 = scmp.ne.s32.totalorder %s44, %s46
    %p53 = scmp.eq.s32.totalorder %s15, 1
    %p54 = por %p52, %p53
    %p55 = scmp.ne.s32.totalorder %s46, %s47
    %p56 = scmp.eq.s32.totalorder %s15, 0
    %p57 = por %p55, %p56
    %p58 = scmp.ne.s32.totalorder %s46, %s47
    %p59 = scmp.eq.s32.totalorder %s16, 1
    %p60 = por %p58, %p59
    %p62 = scmp.ne.s32.totalorder %s47, %s61
    %p63 = scmp.eq.s32.totalorder %s16, 0
    %p64 = por %p62, %p63
    %s65 = ssub.s32 %s10, %s17
    %p66 = scmp.eq.s32.totalorder %s65, 0
    %s68 = sadd.s32 %s67, 1
    %s69 = scalar_select %p66, %s67, %s68
    %p72 = pneg %p66
    %p73 = scmp.eq.s32.totalorder %s10, 1
    %p74 = por %p72, %p73
    %p75 = scmp.ne.s32.totalorder %s67, %s70
    %p76 = scmp.eq.s32.totalorder %s10, 0
    %p77 = por %p75, %p76
    %p78 = scmp.ne.s32.totalorder %s67, %s70
    %p79 = scmp.eq.s32.totalorder %s15, 1
    %p80 = por %p78, %p79
    %p81 = scmp.ne.s32.totalorder %s70, %s71
    %p82 = scmp.eq.s32.totalorder %s15, 0
    %p83 = por %p81, %p82
    %p84 = scmp.ne.s32.totalorder %s70, %s71
    %p85 = scmp.eq.s32.totalorder %s16, 1
    %p86 = por %p84, %p85
    %p88 = scmp.ne.s32.totalorder %s71, %s87
    %p89 = scmp.eq.s32.totalorder %s16, 0
    %p90 = por %p88, %p89
    %s91 = ssub.s32 %s10, %s17
    %p92 = scmp.eq.s32.totalorder %s91, 0
    %s94 = sadd.s32 %s93, 1
    %s95 = scalar_select %p92, %s93, %s94
    %p98 = pneg %p92
    %p99 = scmp.eq.s32.totalorder %s10, 1
    %p100 = por %p98, %p99
    %p101 = scmp.ne.s32.totalorder %s93, %s96
    %p102 = scmp.eq.s32.totalorder %s10, 0
    %p103 = por %p101, %p102
    %p104 = scmp.ne.s32.totalorder %s93, %s96
    %p105 = scmp.eq.s32.totalorder %s15, 1
    %p106 = por %p104, %p105
    %p107 = scmp.ne.s32.totalorder %s96, %s97
    %p108 = scmp.eq.s32.totalorder %s15, 0
    %p109 = por %p107, %p108
    %p110 = scmp.ne.s32.totalorder %s96, %s97
    %p111 = scmp.eq.s32.totalorder %s16, 1
    %p112 = por %p110, %p111
    %p114 = scmp.ne.s32.totalorder %s97, %s113
    %p115 = scmp.eq.s32.totalorder %s16, 0
    %p116 = por %p114, %p115
    %p117 = scmp.le.s32.totalorder 1, %s10
    %p118 = scmp.lt.s32.totalorder %s10, 3
    %p119 = pnand %p117, %p118
    %p120 = pneg %p119
    // Predicated region
    $region9: #{_lambda_.4} parent=5 // pred_check
      _
    $region10: #{_lambda_.4} parent=5 // pred_check_branch
      %122 = sbr.rel (%p119) target = $region12
    $region11: #{_lambda_.4} parent=5 // pred_region
      %s123 = ssub.s32 %s10, 1
      // Predicated region
      $region13: #{_lambda_.4} parent=11 // pred_check
        %p124 = pneg %p57
      $region14: #{_lambda_.4} parent=11 // pred_check_branch
        %126 = sbr.rel (%p124) target = $region16
      $region15: #{_lambda_.4} parent=11 // pred_region
        _
      $region16: #{_lambda_.4} parent=11 // pred_fallthru
        _
    $region12: #{_lambda_.4} parent=5 // pred_fallthru
      _
    %p127 = scmp.lt.s32.totalorder %s10, 2
    // Predicated region
    $region17: #{_lambda_.4} parent=5 // pred_check
      %p128 = pneg %p127
    $region18: #{_lambda_.4} parent=5 // pred_check_branch
      %130 = sbr.rel (%p128) target = $region20
    $region19: #{_lambda_.4} parent=5 // pred_region
      // Predicated region
      $region21: #{_lambda_.4} parent=19 // pred_check
        %p131 = pneg %p30
      $region22: #{_lambda_.4} parent=19 // pred_check_branch
        %133 = sbr.rel (%p131) target = $region24
      $region23: #{_lambda_.4} parent=19 // pred_region
        %s134 = smul.u32 8, %s10
        %p135 = scmp.lt.s32.totalorder %s134, 15
        %s136 = scalar_select %p135, %s134, 15
        %s137 = smul.addr %s136, 4
        %s138 = scalar_lea.vmem %s0, %s137
        %s139 = smul.u32 8, %s10
      $region24: #{_lambda_.4} parent=19 // pred_fallthru
        _
    $region20: #{_lambda_.4} parent=5 // pred_fallthru
      _
    %p140 = scmp.le.s32.totalorder 1, %s10
    %p141 = scmp.lt.s32.totalorder %s10, 3
    %p142 = pnand %p140, %p141
    %p143 = pneg %p142
    // Predicated region
    $region25: #{_lambda_.4} parent=5 // pred_check
      _
    $region26: #{_lambda_.4} parent=5 // pred_check_branch
      %145 = sbr.rel (%p142) target = $region28
    $region27: #{_lambda_.4} parent=5 // pred_region
      %s146 = ssub.s32 %s10, 1
      %s147 = smul.u32 8, %s15
      %p148 = scmp.lt.s32.totalorder %s147, 15
      %s149 = scalar_select %p148, %s147, 15
      %s150 = smul.addr %s149, 4
      %s151 = scalar_lea.vmem %s0, %s150
      %p152 = pneg %p36
      %p153 = pneg %p33
      %p154 = pneg %p57
      %p155 = pneg %p54
      %p156 = pneg %p83
      %p157 = pneg %p80
      %s158 = smul.u32 8, %s15
      %p159 = scmp.lt.s32.totalorder %s158, 15
      %s160 = scalar_select %p159, %s158, 15
      %s161 = smul.addr %s160, 4
      %s162 = scalar_lea.vmem %s2, %s161
      %p163 = pneg %p109
      %p164 = pneg %p106
      %p165 = scmp.lt.s32.totalorder %s15, 1
      %s166 = scalar_select %p165, %s15, 1
      %s167 = smul.addr %s166, 8
      %s168 = scalar_lea.vmem %s3, %s167
      %s169 = smul.u32 8, %s15
      %p170 = scmp.lt.s32.totalorder %s169, 15
      %s171 = scalar_select %p170, %s169, 15
      %s172 = smul.addr %s171, 4
      %s173 = scalar_lea.vmem %s0, %s172
      %s174 = smul.u32 8, %s15
      %s175 = smul.u32 8, %s15
      %p176 = scmp.lt.s32.totalorder %s175, 15
      %s177 = scalar_select %p176, %s175, 15
      %s178 = smul.addr %s177, 4
      %s179 = scalar_lea.vmem %s2, %s178
      %s180 = smul.u32 8, %s15
      %p181 = scmp.lt.s32.totalorder %s15, 1
      %s182 = scalar_select %p181, %s15, 1
      %s183 = smul.addr %s182, 8
      %s184 = scalar_lea.vmem %s3, %s183
      %v186 = vld [vmem:[%s173] sm:$0xf]
      %v187 = vld [vmem:[%s173 + $0x4] sm:$0xf]
      %v188 = vld [vmem:[%s173 + $0x8] sm:$0xf]
      %v189 = vld [vmem:[%s173 + $0xc] sm:$0xf]
      %v190 = vld [vmem:[%s173 + $0x10] sm:$0xf]
      %v191 = vld [vmem:[%s173 + $0x14] sm:$0xf]
      %v192 = vld [vmem:[%s173 + $0x18] sm:$0xf]
      %v193 = vld [vmem:[%s173 + $0x1c] sm:$0xf]
      %v194 = vld [vmem:[%s1] sm:$0xf]
      %v195 = vld [vmem:[%s1 + $0x4] sm:$0xf]
      %v196 = vld [vmem:[%s1 + $0x8] sm:$0xf]
      %v197 = vld [vmem:[%s1 + $0xc] sm:$0xf]
      %v198 = vld [vmem:[%s1 + $0x10] sm:$0xf]
      %v199 = vld [vmem:[%s1 + $0x14] sm:$0xf]
      %v200 = vld [vmem:[%s1 + $0x18] sm:$0xf]
      %v201 = vld [vmem:[%s1 + $0x1c] sm:$0xf]
      %v202 = vld [vmem:[%s1 + $0x20] sm:$0xf]
      %v203 = vld [vmem:[%s1 + $0x24] sm:$0xf]
      %v204 = vld [vmem:[%s1 + $0x28] sm:$0xf]
      %v205 = vld [vmem:[%s1 + $0x2c] sm:$0xf]
      %v206 = vld [vmem:[%s1 + $0x30] sm:$0xf]
      %v207 = vld [vmem:[%s1 + $0x34] sm:$0xf]
      %v208 = vld [vmem:[%s1 + $0x38] sm:$0xf]
      %v209 = vld [vmem:[%s1 + $0x3c] sm:$0xf]
      %v218 = vunpack.c.l.b16 %v186
      %v219 = vunpack.c.l.b16 %v187
      %v220 = vunpack.c.l.b16 %v188
      %v221 = vunpack.c.l.b16 %v189
      %v222 = vunpack.c.l.b16 %v190
      %v223 = vunpack.c.l.b16 %v191
      %v224 = vunpack.c.l.b16 %v192
      %v225 = vunpack.c.l.b16 %v193
      %v226 = vpack.c.b16 %v219, %v218
      %v227 = vpack.c.b16 %v221, %v220
      %v228 = vpack.c.b16 %v223, %v222
      %v229 = vpack.c.b16 %v225, %v224
      %v250 = vunpack.c.l.b16 %v194
      %v251 = vunpack.c.l.b16 %v195
      %v252 = vunpack.c.l.b16 %v196
      %v253 = vunpack.c.l.b16 %v197
      %v254 = vunpack.c.l.b16 %v198
      %v255 = vunpack.c.l.b16 %v199
      %v256 = vunpack.c.l.b16 %v200
      %v257 = vunpack.c.l.b16 %v201
      %v258 = vunpack.c.l.b16 %v202
      %v259 = vunpack.c.l.b16 %v203
      %v260 = vunpack.c.l.b16 %v204
      %v261 = vunpack.c.l.b16 %v205
      %v262 = vunpack.c.l.b16 %v206
      %v263 = vunpack.c.l.b16 %v207
      %v264 = vunpack.c.l.b16 %v208
      %v265 = vunpack.c.l.b16 %v209
      %v266 = vpack.c.b16 %v251, %v250
      %v267 = vpack.c.b16 %v253, %v252
      %v268 = vpack.c.b16 %v255, %v254
      %v269 = vpack.c.b16 %v257, %v256
      %v270 = vpack.c.b16 %v259, %v258
      %v271 = vpack.c.b16 %v261, %v260
      %v272 = vpack.c.b16 %v263, %v262
      %v273 = vpack.c.b16 %v265, %v264
      %282 = vmatprep.subr.bf16.mxu0 0
      %283 = vmatpush1.bf16.msra.mxu0 %v273
      %284 = vmatprep.subr.bf16.mxu0 0
      %285 = vmatpush1.bf16.msra.mxu0 %v272
      %286 = vmatprep.subr.bf16.mxu0 0
      %287 = vmatpush1.bf16.msra.mxu0 %v271
      %288 = vmatprep.subr.bf16.mxu0 0
      %289 = vmatpush1.bf16.msra.mxu0 %v270
      %290 = vmatprep.subr.bf16.mxu0 0
      %291 = vmatpush1.bf16.msra.mxu0 %v269
      %292 = vmatprep.subr.bf16.mxu0 0
      %293 = vmatpush1.bf16.msra.mxu0 %v268
      %294 = vmatprep.subr.bf16.mxu0 0
      %295 = vmatpush1.bf16.msra.mxu0 %v267
      %296 = vmatprep.subr.bf16.mxu0 0
      %297 = vmatpush1.bf16.msra.mxu0 %v266
      %298 = vmatprep.subr.bf16.mxu0 0
      %299 = vmatpush2.bf16.msra.mxu0 0
      %300 = vmatprep.subr.bf16.mxu0 0
      %301 = vmatpush2.bf16.msra.mxu0 0
      %302 = vmatprep.subr.bf16.mxu0 0
      %303 = vmatpush2.bf16.msra.mxu0 0
      %304 = vmatprep.subr.bf16.mxu0 0
      %305 = vmatpush2.bf16.msra.mxu0 0
      %306 = vmatprep.subr.bf16.mxu0 0
      %307 = vmatpush2.bf16.msra.mxu0 0
      %308 = vmatprep.subr.bf16.mxu0 0
      %309 = vmatpush2.bf16.msra.mxu0 0
      %310 = vmatprep.subr.bf16.mxu0 0
      %311 = vmatpush2.bf16.msra.mxu0 0
      %312 = vmatprep.subr.bf16.mxu0 0
      %313 = vmatpush2.bf16.msra.mxu0 0
      %314 = vmatprep.mubr.bf16.mxu0 0
      %315 = vmatmul.mubr.bf16.gmra.mxu0 %v226
      %v316 = vpop.f32.mrf.mxu0
      %v317 = vadd.f32 0.0, %v316
      %v318 = vpop.f32.mrf.mxu0
      %v319 = vpop.f32.mrf.mxu0
      %v320 = vadd.f32 0.0, %v319
      %v321 = vpop.f32.mrf.mxu0
      %322 = vmatprep.mubr.bf16.mxu0 0
      %323 = vmatmul.mubr.bf16.gmra.mxu0 %v227
      %v324 = vpop.f32.mrf.mxu0
      %v325 = vadd.f32 0.0, %v324
      %v326 = vpop.f32.mrf.mxu0
      %v327 = vpop.f32.mrf.mxu0
      %v328 = vadd.f32 0.0, %v327
      %v329 = vpop.f32.mrf.mxu0
      %330 = vmatprep.mubr.bf16.mxu0 0
      %331 = vmatmul.mubr.bf16.gmra.mxu0 %v228
      %v332 = vpop.f32.mrf.mxu0
      %v333 = vadd.f32 0.0, %v332
      %v334 = vpop.f32.mrf.mxu0
      %v335 = vpop.f32.mrf.mxu0
      %v336 = vadd.f32 0.0, %v335
      %v337 = vpop.f32.mrf.mxu0
      %338 = vmatprep.mubr.bf16.mxu0 0
      %339 = vmatmul.mubr.bf16.gmra.mxu0 %v229
      %v340 = vpop.f32.mrf.mxu0
      %v341 = vadd.f32 0.0, %v340
      %v342 = vpop.f32.mrf.mxu0
      %v343 = vpop.f32.mrf.mxu0
      %v344 = vadd.f32 0.0, %v343
      %v345 = vpop.f32.mrf.mxu0
      %346 = vdwg.mxu0
      %v347 = vpack.c.bf16 %v320, %v317
      %v348 = vpack.c.bf16 %v328, %v325
      %v349 = vpack.c.bf16 %v336, %v333
      %v350 = vpack.c.bf16 %v344, %v341
      %v355 = vunpack.c.l.b16 %v347
      %v356 = vunpack.c.h.b16 %v347
      %v357 = vunpack.c.l.b16 %v348
      %v358 = vunpack.c.h.b16 %v348
      %v359 = vunpack.c.l.b16 %v349
      %v360 = vunpack.c.h.b16 %v349
      %v361 = vunpack.c.l.b16 %v350
      %v362 = vunpack.c.h.b16 %v350
      %v363 = vpack.c.b16 %v355, %v355
      %v364 = vpack.c.b16 %v356, %v356
      %v365 = vpack.c.b16 %v357, %v357
      %v366 = vpack.c.b16 %v358, %v358
      %v367 = vpack.c.b16 %v359, %v359
      %v368 = vpack.c.b16 %v360, %v360
      %v369 = vpack.c.b16 %v361, %v361
      %v370 = vpack.c.b16 %v362, %v362
      %379 = vst [vmem:[%s179] sm:$0xf] %v363
      %380 = vst [vmem:[%s179 + $0x4] sm:$0xf] %v364
      %381 = vst [vmem:[%s179 + $0x8] sm:$0xf] %v365
      %382 = vst [vmem:[%s179 + $0xc] sm:$0xf] %v366
      %383 = vst [vmem:[%s179 + $0x10] sm:$0xf] %v367
      %384 = vst [vmem:[%s179 + $0x14] sm:$0xf] %v368
      %385 = vst [vmem:[%s179 + $0x18] sm:$0xf] %v369
      %386 = vst [vmem:[%s179 + $0x1c] sm:$0xf] %v370
      %v387 = vadd.f32 %v317, %v320
      %v388 = vadd.f32 %v387, %v325
      %v389 = vadd.f32 %v388, %v328
      %v390 = vadd.f32 %v389, %v333
      %v391 = vadd.f32 %v390, %v336
      %v392 = vadd.f32 %v391, %v341
      %v393 = vadd.f32 %v392, %v344
      %v394 = vrot.slane %v393, 4
      %v395 = vadd.f32 %v393, %v394
      %v396 = vrot.slane %v395, 2
      %v397 = vadd.f32 %v395, %v396
      %v398 = vrot.slane %v397, 1
      %v399 = vadd.f32 %v397, %v398
      %v400 = vmul.f32 %v317, %v317
      %v401 = vmul.f32 %v320, %v320
      %v402 = vmul.f32 %v325, %v325
      %v403 = vmul.f32 %v328, %v328
      %v404 = vmul.f32 %v333, %v333
      %v405 = vmul.f32 %v336, %v336
      %v406 = vmul.f32 %v341, %v341
      %v407 = vmul.f32 %v344, %v344
      %v408 = vadd.f32 %v400, %v401
      %v409 = vadd.f32 %v408, %v402
      %v410 = vadd.f32 %v409, %v403
      %v411 = vadd.f32 %v410, %v404
      %v412 = vadd.f32 %v411, %v405
      %v413 = vadd.f32 %v412, %v406
      %v414 = vadd.f32 %v413, %v407
      %v415 = vrot.slane %v414, 4
      %v416 = vadd.f32 %v414, %v415
      %v417 = vrot.slane %v416, 2
      %v418 = vadd.f32 %v416, %v417
      %v419 = vrot.slane %v418, 1
      %v420 = vadd.f32 %v418, %v419
      %vm421 = vcmask 1040384
      %v422 = vsel %vm421, %v399, %v420
      %vm423 = vcmask 1041408
      %v424 = vsel %vm423, %v422, 0.0
      %425 = vst [vmem:[%s184] sm:$0xff] %v424
      %s426 = smul.u32 8, %s15
      %p427 = scmp.lt.s32.totalorder %s426, 15
      %s428 = scalar_select %p427, %s426, 15
      %s429 = smul.addr %s428, 4
      %s430 = scalar_lea.vmem %s2, %s429
      %p431 = scmp.lt.s32.totalorder %s15, 1
      %s432 = scalar_select %p431, %s15, 1
      %s433 = smul.addr %s432, 8
      %s434 = scalar_lea.vmem %s3, %s433
      // Predicated region
      $region29: #{_lambda_.4} parent=27 // pred_check
        %p435 = pneg %p80
      $region30: #{_lambda_.4} parent=27 // pred_check_branch
        %437 = sbr.rel (%p435) target = $region32
      $region31: #{_lambda_.4} parent=27 // pred_region
        %s438 = smul.u32 8, %s15
      $region32: #{_lambda_.4} parent=27 // pred_fallthru
        _
      // Predicated region
      $region33: #{_lambda_.4} parent=27 // pred_check
        %p439 = pneg %p106
      $region34: #{_lambda_.4} parent=27 // pred_check_branch
        %441 = sbr.rel (%p439) target = $region36
      $region35: #{_lambda_.4} parent=27 // pred_region
        _
      $region36: #{_lambda_.4} parent=27 // pred_fallthru
        _
    $region28: #{_lambda_.4} parent=5 // pred_fallthru
      _
    %p442 = scmp.le.s32.totalorder 2, %s10
    // Predicated region
    $region37: #{_lambda_.4} parent=5 // pred_check
      %p443 = pneg %p442
    $region38: #{_lambda_.4} parent=5 // pred_check_branch
      %445 = sbr.rel (%p443) target = $region40
    $region39: #{_lambda_.4} parent=5 // pred_region
      %s446 = ssub.s32 %s10, 2
      // Predicated region
      $region41: #{_lambda_.4} parent=39 // pred_check
        %p447 = pneg %p86
      $region42: #{_lambda_.4} parent=39 // pred_check_branch
        %449 = sbr.rel (%p447) target = $region44
      $region43: #{_lambda_.4} parent=39 // pred_region
        %s450 = smul.u32 8, %s16
        %p451 = scmp.lt.s32.totalorder %s450, 15
        %s452 = scalar_select %p451, %s450, 15
        %s453 = smul.addr %s452, 4
        %s454 = scalar_lea.vmem %s2, %s453
      $region44: #{_lambda_.4} parent=39 // pred_fallthru
        _
      // Predicated region
      $region45: #{_lambda_.4} parent=39 // pred_check
        %p455 = pneg %p112
      $region46: #{_lambda_.4} parent=39 // pred_check_branch
        %457 = sbr.rel (%p455) target = $region48
      $region47: #{_lambda_.4} parent=39 // pred_region
        %p458 = scmp.lt.s32.totalorder %s16, 1
        %s459 = scalar_select %p458, %s16, 1
        %s460 = smul.addr %s459, 8
        %s461 = scalar_lea.vmem %s3, %s460
      $region48: #{_lambda_.4} parent=39 // pred_fallthru
        _
    $region40: #{_lambda_.4} parent=5 // pred_fallthru
      _
  $region6: #{_lambda_.4} parent=0 // loop_footer
    %s14 = sadd.s32 1, %s10
  $region7: #{_lambda_.4} parent=0 // loop_footer_branch
    %9 = sbr.rel target = $region3
  $region8: #{_lambda_.4} parent=0 // loop_exit
    _

// kernel: _lambda_.7
$region0: #{_lambda_.7}
  #allocation0 [shape = 'u32[]', space=smem, size = 0x4, offset = 0x4, fixed_abs, tag = 'smem constant byte address 0x4 - core index']
  #allocation1 [shape = 'u32[144,128]{1,0:T(1,128)}', space=vmem, size = 0x12000, scoped, tag = 'internal scratch']
  %s0 = inlined_call_operand.vmem [shape: bf16[128,128], index: 0, kind: input, shape index: {}]
  %s1 = inlined_call_operand.vmem [shape: f32[8,128], index: 1, kind: input, shape index: {}]
  %s2 = inlined_call_operand.vmem [shape: f32[1,128], index: 2, kind: input, shape index: {}]
  %s3 = inlined_call_operand.vmem [shape: f32[1,128], index: 3, kind: input, shape index: {}]
  %s4 = inlined_call_operand.vmem [shape: bf16[128,128], index: 4, kind: input, shape index: {}]
  %s5 = inlined_call_operand.hbm [shape: f32[128,128], index: 5, kind: output, shape index: {}]
  %s6 = sld [smem:[#allocation0]]
  $region53: #{_lambda_.7} parent=0
    _
  %s8 = ssub.s32 1, %s6
  %s9 = scalar_select 0, %s8, %s6
  $region1: #{_lambda_.7} parent=0
    #allocation2 [shape = 'u8[65536]{0}', space=vmem, size = 0x10000, scoped, tag = 'output window, operand 0']
    #allocation3 [shape = 's32[2]{0}', space=sflag, size = 0x8, scoped, tag = 'scoped memory for _lambda_.7']
    %10 = vsyncpa [#allocation3], 0
    %s11 = scalar_lea.sflag [#allocation3], 1
    %12 = vsyncpa %s11, 0
    loop: start=0, step=1, limit=4
    $region2: #{_lambda_.7} parent=1 // loop_pre_header
      _
    $region3: #{_lambda_.7} parent=1 // loop_header
      %s14 = sphi 0, %s18
      %p15 = scmp.ge.s32.totalorder %s14, 4
      %s24 = sphi 0, %s26
      %s27 = sphi 0, %s24
      %s28 = sphi 0, %s27
      %s44 = sphi 0, %s28
      %s48 = sphi 0, %s48
      %s50 = sphi 0, %s48
      %s51 = sphi 0, %s50
      %s65 = sphi 0, %s51
      %s69 = sphi 0, %s69
      %s71 = sphi 0, %s69
      %s72 = sphi 0, %s71
      %s86 = sphi 0, %s72
      %s90 = sphi 0, %s90
      %s92 = sphi 0, %s90
      %s93 = sphi 0, %s92
      %s107 = sphi 0, %s93
      %s113 = sphi 0, %s115
      %s116 = sphi 0, %s113
      %s117 = sphi 0, %s116
      %s133 = sphi 0, %s117
      %s139 = sphi 0, %s141
      %s142 = sphi 0, %s139
      %s143 = sphi 0, %s142
      %s159 = sphi 0, %s143
    $region4: #{_lambda_.7} parent=1 // loop_header_branch
      %17 = sbr.rel (%p15) target = $region8
    $region5: #{_lambda_.7} parent=1 // loop_body
      %s19 = ssub.s32 %s14, 1
      %s20 = ssub.s32 %s14, 2
      %s21 = sadd.s32 %s14, 1
      %s22 = ssub.s32 %s14, %s21
      %p23 = scmp.eq.s32.totalorder %s22, 0
      %s25 = sadd.s32 %s24, 1
      %s26 = scalar_select %p23, %s24, %s25
      %p29 = pneg %p23
      %p30 = scmp.eq.s32.totalorder %s14, 1
      %p31 = por %p29, %p30
      %p32 = scmp.ne.s32.totalorder %s24, %s27
      %p33 = scmp.eq.s32.totalorder %s14, 0
      %p34 = por %p32, %p33
      %p35 = scmp.ne.s32.totalorder %s24, %s27
      %p36 = scmp.eq.s32.totalorder %s19, 1
      %p37 = por %p35, %p36
      %p38 = scmp.ne.s32.totalorder %s27, %s28
      %p39 = scmp.eq.s32.totalorder %s19, 0
      %p40 = por %p38, %p39
      %p41 = scmp.ne.s32.totalorder %s27, %s28
      %p42 = scmp.eq.s32.totalorder %s20, 1
      %p43 = por %p41, %p42
      %p45 = scmp.ne.s32.totalorder %s28, %s44
      %p46 = scmp.eq.s32.totalorder %s20, 0
      %p47 = por %p45, %p46
      %s49 = sadd.s32 %s48, 1
      %p52 = scmp.eq.s32.totalorder %s14, 1
      %p53 = scmp.ne.s32.totalorder %s48, %s50
      %p54 = scmp.eq.s32.totalorder %s14, 0
      %p55 = por %p53, %p54
      %p56 = scmp.ne.s32.totalorder %s48, %s50
      %p57 = scmp.eq.s32.totalorder %s19, 1
      %p58 = por %p56, %p57
      %p59 = scmp.ne.s32.totalorder %s50, %s51
      %p60 = scmp.eq.s32.totalorder %s19, 0
      %p61 = por %p59, %p60
      %p62 = scmp.ne.s32.totalorder %s50, %s51
      %p63 = scmp.eq.s32.totalorder %s20, 1
      %p64 = por %p62, %p63
      %p66 = scmp.ne.s32.totalorder %s51, %s65
      %p67 = scmp.eq.s32.totalorder %s20, 0
      %p68 = por %p66, %p67
      %s70 = sadd.s32 %s69, 1
      %p73 = scmp.eq.s32.totalorder %s14, 1
      %p74 = scmp.ne.s32.totalorder %s69, %s71
      %p75 = scmp.eq.s32.totalorder %s14, 0
      %p76 = por %p74, %p75
      %p77 = scmp.ne.s32.totalorder %s69, %s71
      %p78 = scmp.eq.s32.totalorder %s19, 1
      %p79 = por %p77, %p78
      %p80 = scmp.ne.s32.totalorder %s71, %s72
      %p81 = scmp.eq.s32.totalorder %s19, 0
      %p82 = por %p80, %p81
      %p83 = scmp.ne.s32.totalorder %s71, %s72
      %p84 = scmp.eq.s32.totalorder %s20, 1
      %p85 = por %p83, %p84
      %p87 = scmp.ne.s32.totalorder %s72, %s86
      %p88 = scmp.eq.s32.totalorder %s20, 0
      %p89 = por %p87, %p88
      %s91 = sadd.s32 %s90, 1
      %p94 = scmp.eq.s32.totalorder %s14, 1
      %p95 = scmp.ne.s32.totalorder %s90, %s92
      %p96 = scmp.eq.s32.totalorder %s14, 0
      %p97 = por %p95, %p96
      %p98 = scmp.ne.s32.totalorder %s90, %s92
      %p99 = scmp.eq.s32.totalorder %s19, 1
      %p100 = por %p98, %p99
      %p101 = scmp.ne.s32.totalorder %s92, %s93
      %p102 = scmp.eq.s32.totalorder %s19, 0
      %p103 = por %p101, %p102
      %p104 = scmp.ne.s32.totalorder %s92, %s93
      %p105 = scmp.eq.s32.totalorder %s20, 1
      %p106 = por %p104, %p105
      %p108 = scmp.ne.s32.totalorder %s93, %s107
      %p109 = scmp.eq.s32.totalorder %s20, 0
      %p110 = por %p108, %p109
      %s111 = ssub.s32 %s14, %s21
      %p112 = scmp.eq.s32.totalorder %s111, 0
      %s114 = sadd.s32 %s113, 1
      %s115 = scalar_select %p112, %s113, %s114
      %p118 = pneg %p112
      %p119 = scmp.eq.s32.totalorder %s14, 1
      %p120 = por %p118, %p119
      %p121 = scmp.ne.s32.totalorder %s113, %s116
      %p122 = scmp.eq.s32.totalorder %s14, 0
      %p123 = por %p121, %p122
      %p124 = scmp.ne.s32.totalorder %s113, %s116
      %p125 = scmp.eq.s32.totalorder %s19, 1
      %p126 = por %p124, %p125
      %p127 = scmp.ne.s32.totalorder %s116, %s117
      %p128 = scmp.eq.s32.totalorder %s19, 0
      %p129 = por %p127, %p128
      %p130 = scmp.ne.s32.totalorder %s116, %s117
      %p131 = scmp.eq.s32.totalorder %s20, 1
      %p132 = por %p130, %p131
      %p134 = scmp.ne.s32.totalorder %s117, %s133
      %p135 = scmp.eq.s32.totalorder %s20, 0
      %p136 = por %p134, %p135
      %s137 = ssub.s32 %s14, %s21
      %p138 = scmp.eq.s32.totalorder %s137, 0
      %s140 = sadd.s32 %s139, 1
      %s141 = scalar_select %p138, %s139, %s140
      %p144 = pneg %p138
      %p145 = scmp.eq.s32.totalorder %s14, 1
      %p146 = por %p144, %p145
      %p147 = scmp.ne.s32.totalorder %s139, %s142
      %p148 = scmp.eq.s32.totalorder %s14, 0
      %p149 = por %p147, %p148
      %p150 = scmp.ne.s32.totalorder %s139, %s142
      %p151 = scmp.eq.s32.totalorder %s19, 1
      %p152 = por %p150, %p151
      %p153 = scmp.ne.s32.totalorder %s142, %s143
      %p154 = scmp.eq.s32.totalorder %s19, 0
      %p155 = por %p153, %p154
      %p156 = scmp.ne.s32.totalorder %s142, %s143
      %p157 = scmp.eq.s32.totalorder %s20, 1
      %p158 = por %p156, %p157
      %p160 = scmp.ne.s32.totalorder %s143, %s159
      %p161 = scmp.eq.s32.totalorder %s20, 0
      %p162 = por %p160, %p161
      %p163 = scmp.le.s32.totalorder 1, %s14
      %p164 = scmp.lt.s32.totalorder %s14, 3
      %p165 = pnand %p163, %p164
      %p166 = pneg %p165
      // Predicated region
      $region9: #{_lambda_.7} parent=5 // pred_check
        _
      $region10: #{_lambda_.7} parent=5 // pred_check_branch
        %168 = sbr.rel (%p165) target = $region12
      $region11: #{_lambda_.7} parent=5 // pred_region
        %s169 = ssub.s32 %s14, 1
        // Predicated region
        $region13: #{_lambda_.7} parent=11 // pred_check
          %p170 = pneg %p61
        $region14: #{_lambda_.7} parent=11 // pred_check_branch
          %172 = sbr.rel (%p170) target = $region16
        $region15: #{_lambda_.7} parent=11 // pred_region
          _
        $region16: #{_lambda_.7} parent=11 // pred_fallthru
          _
        // Predicated region
        $region17: #{_lambda_.7} parent=11 // pred_check
          %p173 = pneg %p82
        $region18: #{_lambda_.7} parent=11 // pred_check_branch
          %175 = sbr.rel (%p173) target = $region20
        $region19: #{_lambda_.7} parent=11 // pred_region
          _
        $region20: #{_lambda_.7} parent=11 // pred_fallthru
          _
        // Predicated region
        $region21: #{_lambda_.7} parent=11 // pred_check
          %p176 = pneg %p103
        $region22: #{_lambda_.7} parent=11 // pred_check_branch
          %178 = sbr.rel (%p176) target = $region24
        $region23: #{_lambda_.7} parent=11 // pred_region
          _
        $region24: #{_lambda_.7} parent=11 // pred_fallthru
          _
      $region12: #{_lambda_.7} parent=5 // pred_fallthru
        _
      %p179 = scmp.lt.s32.totalorder %s14, 2
      // Predicated region
      $region25: #{_lambda_.7} parent=5 // pred_check
        %p180 = pneg %p179
      $region26: #{_lambda_.7} parent=5 // pred_check_branch
        %182 = sbr.rel (%p180) target = $region28
      $region27: #{_lambda_.7} parent=5 // pred_region
        // Predicated region
        $region29: #{_lambda_.7} parent=27 // pred_check
          %p183 = pneg %p34
        $region30: #{_lambda_.7} parent=27 // pred_check_branch
          %185 = sbr.rel (%p183) target = $region32
        $region31: #{_lambda_.7} parent=27 // pred_region
          %s186 = smul.u32 8, %s14
          %p187 = scmp.lt.s32.totalorder %s186, 15
          %s188 = scalar_select %p187, %s186, 15
          %s189 = smul.addr %s188, 4
          %s190 = scalar_lea.vmem %s0, %s189
          %s191 = smul.u32 8, %s14
        $region32: #{_lambda_.7} parent=27 // pred_fallthru
          _
        // Predicated region
        $region33: #{_lambda_.7} parent=27 // pred_check
          %p192 = pneg %p123
        $region34: #{_lambda_.7} parent=27 // pred_check_branch
          %194 = sbr.rel (%p192) target = $region36
        $region35: #{_lambda_.7} parent=27 // pred_region
          %s195 = smul.u32 8, %s14
          %p196 = scmp.lt.s32.totalorder %s195, 15
          %s197 = scalar_select %p196, %s195, 15
          %s198 = smul.addr %s197, 4
          %s199 = scalar_lea.vmem %s4, %s198
          %s200 = smul.u32 8, %s14
        $region36: #{_lambda_.7} parent=27 // pred_fallthru
          _
      $region28: #{_lambda_.7} parent=5 // pred_fallthru
        _
      %p201 = scmp.le.s32.totalorder 1, %s14
      %p202 = scmp.lt.s32.totalorder %s14, 3
      %p203 = pnand %p201, %p202
      %p204 = pneg %p203
      // Predicated region
      $region37: #{_lambda_.7} parent=5 // pred_check
        _
      $region38: #{_lambda_.7} parent=5 // pred_check_branch
        %206 = sbr.rel (%p203) target = $region40
      $region39: #{_lambda_.7} parent=5 // pred_region
        %s207 = ssub.s32 %s14, 1
        %s208 = smul.u32 8, %s19
        %p209 = scmp.lt.s32.totalorder %s208, 15
        %s210 = scalar_select %p209, %s208, 15
        %s211 = smul.addr %s210, 4
        %s212 = scalar_lea.vmem %s0, %s211
        %p213 = pneg %p40
        %p214 = pneg %p37
        %p215 = pneg %p61
        %p216 = pneg %p58
        %p217 = pneg %p82
        %p218 = pneg %p79
        %p219 = pneg %p103
        %p220 = pneg %p100
        %s221 = smul.u32 8, %s19
        %p222 = scmp.lt.s32.totalorder %s221, 15
        %s223 = scalar_select %p222, %s221, 15
        %s224 = smul.addr %s223, 4
        %s225 = scalar_lea.vmem %s4, %s224
        %p226 = pneg %p129
        %p227 = pneg %p126
        %p228 = pneg %p155
        %p229 = pneg %p152
        %s230 = sand.u32 %s142, 1
        %s231 = scalar_lea.sflag [#allocation3], %s230
        %s232 = sand.u32 %s142, 1
        %s233 = smul.addr %s232, 64
        %s234 = scalar_lea.vmem [#allocation2], %s233
        %s235 = smul.u32 8, %s19
        %p236 = scmp.lt.s32.totalorder %s235, 15
        %s237 = scalar_select %p236, %s235, 15
        %s238 = smul.addr %s237, 4
        %s239 = scalar_lea.vmem %s0, %s238
        %s240 = smul.u32 8, %s19
        %s241 = smul.u32 8, %s19
        %p242 = scmp.lt.s32.totalorder %s241, 15
        %s243 = scalar_select %p242, %s241, 15
        %s244 = smul.addr %s243, 4
        %s245 = scalar_lea.vmem %s4, %s244
        %s246 = smul.u32 8, %s19
        %s247 = smul.u32 8, %s19
        %v248 = vld [vmem:[%s1] sm:$0x1]
        %v249 = vmul.f32 %v248, 0.0078125
        %v250 = vld [vmem:[%s1 + $0x1] sm:$0x1]
        %v251 = vmul.f32 %v250, 0.0078125
        %v252 = vmul.f32 %v249, %v249
        %v253 = vsub.f32 %v251, %v252
        %v254 = vmax.f32 %v253, 0.0
        %v255 = vadd.f32 %v254, 1e-05
        %v256 = vrsqrt.pop %v255
        %v257 = vld [vmem:[%s2] sm:$0x1]
        %v258 = vmul.f32 %v257, %v256
        %v259 = vld [vmem:[%s3] sm:$0x1]
        %v260 = vmul.f32 %v249, %v258
        %v261 = vsub.f32 %v259, %v260
        %v262 = vld [vmem:[%s239] sm:$0xf]
        %v263 = vld [vmem:[%s239 + $0x4] sm:$0xf]
        %v264 = vld [vmem:[%s239 + $0x8] sm:$0xf]
        %v265 = vld [vmem:[%s239 + $0xc] sm:$0xf]
        %v266 = vld [vmem:[%s239 + $0x10] sm:$0xf]
        %v267 = vld [vmem:[%s239 + $0x14] sm:$0xf]
        %v268 = vld [vmem:[%s239 + $0x18] sm:$0xf]
        %v269 = vld [vmem:[%s239 + $0x1c] sm:$0xf]
        %v270 = vunpack.c.l.bf16 %v262
        %v271 = vunpack.c.l.bf16 %v263
        %v272 = vunpack.c.l.bf16 %v264
        %v273 = vunpack.c.l.bf16 %v265
        %v274 = vunpack.c.l.bf16 %v266
        %v275 = vunpack.c.l.bf16 %v267
        %v276 = vunpack.c.l.bf16 %v268
        %v277 = vunpack.c.l.bf16 %v269
        %v279 = vlaneseq
        %v280 = vshrl.u32 %v279, 7
        %v281 = vsub.s32 0, %v280
        %v282 = vrot.slane %v258, %v281
        %v284 = vmul.f32 %v270, %v282
        %v285 = vmul.f32 %v271, %v282
        %v286 = vmul.f32 %v272, %v282
        %v287 = vmul.f32 %v273, %v282
        %v288 = vmul.f32 %v274, %v282
        %v289 = vmul.f32 %v275, %v282
        %v290 = vmul.f32 %v276, %v282
        %v291 = vmul.f32 %v277, %v282
        %v293 = vlaneseq
        %v294 = vshrl.u32 %v293, 7
        %v295 = vsub.s32 0, %v294
        %v296 = vrot.slane %v261, %v295
        %v298 = vadd.f32 %v284, %v296
        %v299 = vadd.f32 %v285, %v296
        %v300 = vadd.f32 %v286, %v296
        %v301 = vadd.f32 %v287, %v296
        %v302 = vadd.f32 %v288, %v296
        %v303 = vadd.f32 %v289, %v296
        %v304 = vadd.f32 %v290, %v296
        %v305 = vadd.f32 %v291, %v296
        %v306 = vld [vmem:[%s245] sm:$0xf]
        %v307 = vld [vmem:[%s245 + $0x4] sm:$0xf]
        %v308 = vld [vmem:[%s245 + $0x8] sm:$0xf]
        %v309 = vld [vmem:[%s245 + $0xc] sm:$0xf]
        %v310 = vld [vmem:[%s245 + $0x10] sm:$0xf]
        %v311 = vld [vmem:[%s245 + $0x14] sm:$0xf]
        %v312 = vld [vmem:[%s245 + $0x18] sm:$0xf]
        %v313 = vld [vmem:[%s245 + $0x1c] sm:$0xf]
        %v314 = vunpack.c.l.bf16 %v306
        %v315 = vunpack.c.l.bf16 %v307
        %v316 = vunpack.c.l.bf16 %v308
        %v317 = vunpack.c.l.bf16 %v309
        %v318 = vunpack.c.l.bf16 %v310
        %v319 = vunpack.c.l.bf16 %v311
        %v320 = vunpack.c.l.bf16 %v312
        %v321 = vunpack.c.l.bf16 %v313
        %v322 = vadd.f32 %v298, %v314
        %v323 = vadd.f32 %v299, %v315
        %v324 = vadd.f32 %v300, %v316
        %v325 = vadd.f32 %v301, %v317
        %v326 = vadd.f32 %v302, %v318
        %v327 = vadd.f32 %v303, %v319
        %v328 = vadd.f32 %v304, %v320
        %v329 = vadd.f32 %v305, %v321
        %v330 = vmax.f32 %v322, 0.0
        %v331 = vmax.f32 %v323, 0.0
        %v332 = vmax.f32 %v324, 0.0
        %v333 = vmax.f32 %v325, 0.0
        %v334 = vmax.f32 %v326, 0.0
        %v335 = vmax.f32 %v327, 0.0
        %v336 = vmax.f32 %v328, 0.0
        %v337 = vmax.f32 %v329, 0.0
        %338 = vst [vmem:[%s234] sm:$0xff] %v330
        %339 = vst [vmem:[%s234 + $0x8] sm:$0xff] %v331
        %340 = vst [vmem:[%s234 + $0x10] sm:$0xff] %v332
        %341 = vst [vmem:[%s234 + $0x18] sm:$0xff] %v333
        %342 = vst [vmem:[%s234 + $0x20] sm:$0xff] %v334
        %343 = vst [vmem:[%s234 + $0x28] sm:$0xff] %v335
        %344 = vst [vmem:[%s234 + $0x30] sm:$0xff] %v336
        %345 = vst [vmem:[%s234 + $0x38] sm:$0xff] %v337
        %s346 = sand.u32 %s142, 1
        %s347 = scalar_lea.sflag [#allocation3], %s346
        %s348 = sand.u32 %s142, 1
        %s349 = smul.addr %s348, 64
        %s350 = scalar_lea.vmem [#allocation2], %s349
        // Predicated region
        $region41: #{_lambda_.7} parent=39 // pred_check
          %p351 = pneg %p152
        $region42: #{_lambda_.7} parent=39 // pred_check_branch
          %353 = sbr.rel (%p351) target = $region44
        $region43: #{_lambda_.7} parent=39 // pred_region
          %s354 = smul.u32 8, %s19
          %s356 = ssub.s32 1024, 1024
          %357 = vsyncadd %s347, %s356
          %s358 = smul.addr %s354, 128
          %s359 = scalar_lea.hbm %s5, %s358
          %s360 = sshll.u32 %s350, 4
          %s361 = int_to_ptr.vmem [resolvable:$true] %s360
          %366 = dma.vmem_to_hbm [thread:$0]  %s361, 1024, %s359, %s347, 128, 128, 8
        $region44: #{_lambda_.7} parent=39 // pred_fallthru
          _
      $region40: #{_lambda_.7} parent=5 // pred_fallthru
        _
      %p367 = scmp.le.s32.totalorder 2, %s14
      // Predicated region
      $region45: #{_lambda_.7} parent=5 // pred_check
        %p368 = pneg %p367
      $region46: #{_lambda_.7} parent=5 // pred_check_branch
        %370 = sbr.rel (%p368) target = $region48
      $region47: #{_lambda_.7} parent=5 // pred_region
        %s371 = ssub.s32 %s14, 2
        // Predicated region
        $region49: #{_lambda_.7} parent=47 // pred_check
          %p372 = pneg %p158
        $region50: #{_lambda_.7} parent=47 // pred_check_branch
          %374 = sbr.rel (%p372) target = $region52
        $region51: #{_lambda_.7} parent=47 // pred_region
          %s375 = sand.u32 %s143, 1
          %s376 = scalar_lea.sflag [#allocation3], %s375
          %s377 = sand.u32 %s143, 1
          %s378 = smul.addr %s377, 64
          %s379 = scalar_lea.vmem [#allocation2], %s378
          %380 = dma.done %s376, 1024
        $region52: #{_lambda_.7} parent=47 // pred_fallthru
          _
      $region48: #{_lambda_.7} parent=5 // pred_fallthru
        _
    $region6: #{_lambda_.7} parent=1 // loop_footer
      %s18 = sadd.s32 1, %s14
    $region7: #{_lambda_.7} parent=1 // loop_footer_branch
      %13 = sbr.rel target = $region3
    $region8: #{_lambda_.7} parent=1 // loop_exit
      _
    %381 = vsyncpa [#allocation3], 1
    %s382 = scalar_lea.sflag [#allocation3], 1
    %383 = vsyncpa %s382, 1

// kernel: _lambda_.6
$region0: #{_lambda_.6}
  #allocation0 [shape = 'u32[]', space=smem, size = 0x4, offset = 0x4, fixed_abs, tag = 'smem constant byte address 0x4 - core index']
  #allocation1 [shape = 'u32[144,128]{1,0:T(1,128)}', space=vmem, size = 0x12000, scoped, tag = 'internal scratch']
  %s0 = inlined_call_operand.vmem [shape: bf16[128,128], index: 0, kind: input, shape index: {}]
  %s1 = inlined_call_operand.vmem [shape: f32[8,128], index: 1, kind: input, shape index: {}]
  %s2 = inlined_call_operand.vmem [shape: f32[1,128], index: 2, kind: input, shape index: {}]
  %s3 = inlined_call_operand.vmem [shape: f32[1,128], index: 3, kind: input, shape index: {}]
  %s4 = inlined_call_operand.vmem [shape: bf16[128,128], index: 4, kind: input, shape index: {}]
  %s5 = inlined_call_operand.vmem [shape: bf16[128,128], index: 5, kind: output, shape index: {0}]
  %s6 = inlined_call_operand.vmem [shape: f32[2,8,128], index: 6, kind: output, shape index: {1}]
  %7 = xla_tuple %s5, %s6
  %s8 = sld [smem:[#allocation0]]
  $region61: #{_lambda_.6} parent=0
    _
  %s10 = ssub.s32 1, %s8
  %s11 = scalar_select 0, %s10, %s8
  loop: start=0, step=1, limit=4
  $region2: #{_lambda_.6} parent=0 // loop_pre_header
    _
  $region3: #{_lambda_.6} parent=0 // loop_header
    %s13 = sphi 0, %s17
    %p14 = scmp.ge.s32.totalorder %s13, 4
    %s23 = sphi 0, %s25
    %s26 = sphi 0, %s23
    %s27 = sphi 0, %s26
    %s43 = sphi 0, %s27
    %s47 = sphi 0, %s47
    %s49 = sphi 0, %s47
    %s50 = sphi 0, %s49
    %s64 = sphi 0, %s50
    %s68 = sphi 0, %s68
    %s70 = sphi 0, %s68
    %s71 = sphi 0, %s70
    %s85 = sphi 0, %s71
    %s89 = sphi 0, %s89
    %s91 = sphi 0, %s89
    %s92 = sphi 0, %s91
    %s106 = sphi 0, %s92
    %s110 = sphi 0, %s110
    %s112 = sphi 0, %s110
    %s113 = sphi 0, %s112
    %s127 = sphi 0, %s113
    %s133 = sphi 0, %s135
    %s136 = sphi 0, %s133
    %s137 = sphi 0, %s136
    %s153 = sphi 0, %s137
    %s159 = sphi 0, %s161
    %s162 = sphi 0, %s159
    %s163 = sphi 0, %s162
    %s179 = sphi 0, %s163
  $region4: #{_lambda_.6} parent=0 // loop_header_branch
    %16 = sbr.rel (%p14) target = $region8
  $region5: #{_lambda_.6} parent=0 // loop_body
    %s18 = ssub.s32 %s13, 1
    %s19 = ssub.s32 %s13, 2
    %s20 = sadd.s32 %s13, 1
    %s21 = ssub.s32 %s13, %s20
    %p22 = scmp.eq.s32.totalorder %s21, 0
    %s24 = sadd.s32 %s23, 1
    %s25 = scalar_select %p22, %s23, %s24
    %p28 = pneg %p22
    %p29 = scmp.eq.s32.totalorder %s13, 1
    %p30 = por %p28, %p29
    %p31 = scmp.ne.s32.totalorder %s23, %s26
    %p32 = scmp.eq.s32.totalorder %s13, 0
    %p33 = por %p31, %p32
    %p34 = scmp.ne.s32.totalorder %s23, %s26
    %p35 = scmp.eq.s32.totalorder %s18, 1
    %p36 = por %p34, %p35
    %p37 = scmp.ne.s32.totalorder %s26, %s27
    %p38 = scmp.eq.s32.totalorder %s18, 0
    %p39 = por %p37, %p38
    %p40 = scmp.ne.s32.totalorder %s26, %s27
    %p41 = scmp.eq.s32.totalorder %s19, 1
    %p42 = por %p40, %p41
    %p44 = scmp.ne.s32.totalorder %s27, %s43
    %p45 = scmp.eq.s32.totalorder %s19, 0
    %p46 = por %p44, %p45
    %s48 = sadd.s32 %s47, 1
    %p51 = scmp.eq.s32.totalorder %s13, 1
    %p52 = scmp.ne.s32.totalorder %s47, %s49
    %p53 = scmp.eq.s32.totalorder %s13, 0
    %p54 = por %p52, %p53
    %p55 = scmp.ne.s32.totalorder %s47, %s49
    %p56 = scmp.eq.s32.totalorder %s18, 1
    %p57 = por %p55, %p56
    %p58 = scmp.ne.s32.totalorder %s49, %s50
    %p59 = scmp.eq.s32.totalorder %s18, 0
    %p60 = por %p58, %p59
    %p61 = scmp.ne.s32.totalorder %s49, %s50
    %p62 = scmp.eq.s32.totalorder %s19, 1
    %p63 = por %p61, %p62
    %p65 = scmp.ne.s32.totalorder %s50, %s64
    %p66 = scmp.eq.s32.totalorder %s19, 0
    %p67 = por %p65, %p66
    %s69 = sadd.s32 %s68, 1
    %p72 = scmp.eq.s32.totalorder %s13, 1
    %p73 = scmp.ne.s32.totalorder %s68, %s70
    %p74 = scmp.eq.s32.totalorder %s13, 0
    %p75 = por %p73, %p74
    %p76 = scmp.ne.s32.totalorder %s68, %s70
    %p77 = scmp.eq.s32.totalorder %s18, 1
    %p78 = por %p76, %p77
    %p79 = scmp.ne.s32.totalorder %s70, %s71
    %p80 = scmp.eq.s32.totalorder %s18, 0
    %p81 = por %p79, %p80
    %p82 = scmp.ne.s32.totalorder %s70, %s71
    %p83 = scmp.eq.s32.totalorder %s19, 1
    %p84 = por %p82, %p83
    %p86 = scmp.ne.s32.totalorder %s71, %s85
    %p87 = scmp.eq.s32.totalorder %s19, 0
    %p88 = por %p86, %p87
    %s90 = sadd.s32 %s89, 1
    %p93 = scmp.eq.s32.totalorder %s13, 1
    %p94 = scmp.ne.s32.totalorder %s89, %s91
    %p95 = scmp.eq.s32.totalorder %s13, 0
    %p96 = por %p94, %p95
    %p97 = scmp.ne.s32.totalorder %s89, %s91
    %p98 = scmp.eq.s32.totalorder %s18, 1
    %p99 = por %p97, %p98
    %p100 = scmp.ne.s32.totalorder %s91, %s92
    %p101 = scmp.eq.s32.totalorder %s18, 0
    %p102 = por %p100, %p101
    %p103 = scmp.ne.s32.totalorder %s91, %s92
    %p104 = scmp.eq.s32.totalorder %s19, 1
    %p105 = por %p103, %p104
    %p107 = scmp.ne.s32.totalorder %s92, %s106
    %p108 = scmp.eq.s32.totalorder %s19, 0
    %p109 = por %p107, %p108
    %s111 = sadd.s32 %s110, 1
    %p114 = scmp.eq.s32.totalorder %s13, 1
    %p115 = scmp.ne.s32.totalorder %s110, %s112
    %p116 = scmp.eq.s32.totalorder %s13, 0
    %p117 = por %p115, %p116
    %p118 = scmp.ne.s32.totalorder %s110, %s112
    %p119 = scmp.eq.s32.totalorder %s18, 1
    %p120 = por %p118, %p119
    %p121 = scmp.ne.s32.totalorder %s112, %s113
    %p122 = scmp.eq.s32.totalorder %s18, 0
    %p123 = por %p121, %p122
    %p124 = scmp.ne.s32.totalorder %s112, %s113
    %p125 = scmp.eq.s32.totalorder %s19, 1
    %p126 = por %p124, %p125
    %p128 = scmp.ne.s32.totalorder %s113, %s127
    %p129 = scmp.eq.s32.totalorder %s19, 0
    %p130 = por %p128, %p129
    %s131 = ssub.s32 %s13, %s20
    %p132 = scmp.eq.s32.totalorder %s131, 0
    %s134 = sadd.s32 %s133, 1
    %s135 = scalar_select %p132, %s133, %s134
    %p138 = pneg %p132
    %p139 = scmp.eq.s32.totalorder %s13, 1
    %p140 = por %p138, %p139
    %p141 = scmp.ne.s32.totalorder %s133, %s136
    %p142 = scmp.eq.s32.totalorder %s13, 0
    %p143 = por %p141, %p142
    %p144 = scmp.ne.s32.totalorder %s133, %s136
    %p145 = scmp.eq.s32.totalorder %s18, 1
    %p146 = por %p144, %p145
    %p147 = scmp.ne.s32.totalorder %s136, %s137
    %p148 = scmp.eq.s32.totalorder %s18, 0
    %p149 = por %p147, %p148
    %p150 = scmp.ne.s32.totalorder %s136, %s137
    %p151 = scmp.eq.s32.totalorder %s19, 1
    %p152 = por %p150, %p151
    %p154 = scmp.ne.s32.totalorder %s137, %s153
    %p155 = scmp.eq.s32.totalorder %s19, 0
    %p156 = por %p154, %p155
    %s157 = ssub.s32 %s13, %s20
    %p158 = scmp.eq.s32.totalorder %s157, 0
    %s160 = sadd.s32 %s159, 1
    %s161 = scalar_select %p158, %s159, %s160
    %p164 = pneg %p158
    %p165 = scmp.eq.s32.totalorder %s13, 1
    %p166 = por %p164, %p165
    %p167 = scmp.ne.s32.totalorder %s159, %s162
    %p168 = scmp.eq.s32.totalorder %s13, 0
    %p169 = por %p167, %p168
    %p170 = scmp.ne.s32.totalorder %s159, %s162
    %p171 = scmp.eq.s32.totalorder %s18, 1
    %p172 = por %p170, %p171
    %p173 = scmp.ne.s32.totalorder %s162, %s163
    %p174 = scmp.eq.s32.totalorder %s18, 0
    %p175 = por %p173, %p174
    %p176 = scmp.ne.s32.totalorder %s162, %s163
    %p177 = scmp.eq.s32.totalorder %s19, 1
    %p178 = por %p176, %p177
    %p180 = scmp.ne.s32.totalorder %s163, %s179
    %p181 = scmp.eq.s32.totalorder %s19, 0
    %p182 = por %p180, %p181
    %p183 = scmp.le.s32.totalorder 1, %s13
    %p184 = scmp.lt.s32.totalorder %s13, 3
    %p185 = pnand %p183, %p184
    %p186 = pneg %p185
    // Predicated region
    $region9: #{_lambda_.6} parent=5 // pred_check
      _
    $region10: #{_lambda_.6} parent=5 // pred_check_branch
      %188 = sbr.rel (%p185) target = $region12
    $region11: #{_lambda_.6} parent=5 // pred_region
      %s189 = ssub.s32 %s13, 1
      // Predicated region
      $region13: #{_lambda_.6} parent=11 // pred_check
        %p190 = pneg %p60
      $region14: #{_lambda_.6} parent=11 // pred_check_branch
        %192 = sbr.rel (%p190) target = $region16
      $region15: #{_lambda_.6} parent=11 // pred_region
        _
      $region16: #{_lambda_.6} parent=11 // pred_fallthru
        _
      // Predicated region
      $region17: #{_lambda_.6} parent=11 // pred_check
        %p193 = pneg %p81
      $region18: #{_lambda_.6} parent=11 // pred_check_branch
        %195 = sbr.rel (%p193) target = $region20
      $region19: #{_lambda_.6} parent=11 // pred_region
        _
      $region20: #{_lambda_.6} parent=11 // pred_fallthru
        _
      // Predicated region
      $region21: #{_lambda_.6} parent=11 // pred_check
        %p196 = pneg %p102
      $region22: #{_lambda_.6} parent=11 // pred_check_branch
        %198 = sbr.rel (%p196) target = $region24
      $region23: #{_lambda_.6} parent=11 // pred_region
        _
      $region24: #{_lambda_.6} parent=11 // pred_fallthru
        _
      // Predicated region
      $region25: #{_lambda_.6} parent=11 // pred_check
        %p199 = pneg %p123
      $region26: #{_lambda_.6} parent=11 // pred_check_branch
        %201 = sbr.rel (%p199) target = $region28
      $region27: #{_lambda_.6} parent=11 // pred_region
        _
      $region28: #{_lambda_.6} parent=11 // pred_fallthru
        _
    $region12: #{_lambda_.6} parent=5 // pred_fallthru
      _
    %p202 = scmp.lt.s32.totalorder %s13, 2
    // Predicated region
    $region29: #{_lambda_.6} parent=5 // pred_check
      %p203 = pneg %p202
    $region30: #{_lambda_.6} parent=5 // pred_check_branch
      %205 = sbr.rel (%p203) target = $region32
    $region31: #{_lambda_.6} parent=5 // pred_region
      // Predicated region
      $region33: #{_lambda_.6} parent=31 // pred_check
        %p206 = pneg %p33
      $region34: #{_lambda_.6} parent=31 // pred_check_branch
        %208 = sbr.rel (%p206) target = $region36
      $region35: #{_lambda_.6} parent=31 // pred_region
        %s209 = smul.u32 8, %s13
        %p210 = scmp.lt.s32.totalorder %s209, 15
        %s211 = scalar_select %p210, %s209, 15
        %s212 = smul.addr %s211, 4
        %s213 = scalar_lea.vmem %s0, %s212
        %s214 = smul.u32 8, %s13
      $region36: #{_lambda_.6} parent=31 // pred_fallthru
        _
    $region32: #{_lambda_.6} parent=5 // pred_fallthru
      _
    %p215 = scmp.le.s32.totalorder 1, %s13
    %p216 = scmp.lt.s32.totalorder %s13, 3
    %p217 = pnand %p215, %p216
    %p218 = pneg %p217
    // Predicated region
    $region37: #{_lambda_.6} parent=5 // pred_check
      _
    $region38: #{_lambda_.6} parent=5 // pred_check_branch
      %220 = sbr.rel (%p217) target = $region40
    $region39: #{_lambda_.6} parent=5 // pred_region
      %s221 = ssub.s32 %s13, 1
      %s222 = smul.u32 8, %s18
      %p223 = scmp.lt.s32.totalorder %s222, 15
      %s224 = scalar_select %p223, %s222, 15
      %s225 = smul.addr %s224, 4
      %s226 = scalar_lea.vmem %s0, %s225
      %p227 = pneg %p39
      %p228 = pneg %p36
      %p229 = pneg %p60
      %p230 = pneg %p57
      %p231 = pneg %p81
      %p232 = pneg %p78
      %p233 = pneg %p102
      %p234 = pneg %p99
      %p235 = pneg %p123
      %p236 = pneg %p120
      %p237 = pneg %p149
      %p238 = pneg %p146
      %s239 = smul.u32 8, %s18
      %p240 = scmp.lt.s32.totalorder %s239, 15
      %s241 = scalar_select %p240, %s239, 15
      %s242 = smul.addr %s241, 4
      %s243 = scalar_lea.vmem %s5, %s242
      %p244 = pneg %p175
      %p245 = pneg %p172
      %p246 = scmp.lt.s32.totalorder %s18, 1
      %s247 = scalar_select %p246, %s18, 1
      %s248 = smul.addr %s247, 8
      %s249 = scalar_lea.vmem %s6, %s248
      %s250 = smul.u32 8, %s18
      %p251 = scmp.lt.s32.totalorder %s250, 15
      %s252 = scalar_select %p251, %s250, 15
      %s253 = smul.addr %s252, 4
      %s254 = scalar_lea.vmem %s0, %s253
      %s255 = smul.u32 8, %s18
      %s256 = smul.u32 8, %s18
      %p257 = scmp.lt.s32.totalorder %s256, 15
      %s258 = scalar_select %p257, %s256, 15
      %s259 = smul.addr %s258, 4
      %s260 = scalar_lea.vmem %s5, %s259
      %s261 = smul.u32 8, %s18
      %p262 = scmp.lt.s32.totalorder %s18, 1
      %s263 = scalar_select %p262, %s18, 1
      %s264 = smul.addr %s263, 8
      %s265 = scalar_lea.vmem %s6, %s264
      %v267 = vld [vmem:[%s1] sm:$0x1]
      %v268 = vmul.f32 %v267, 0.0078125
      %v269 = vld [vmem:[%s1 + $0x1] sm:$0x1]
      %v270 = vmul.f32 %v269, 0.0078125
      %v271 = vmul.f32 %v268, %v268
      %v272 = vsub.f32 %v270, %v271
      %v273 = vmax.f32 %v272, 0.0
      %v274 = vadd.f32 %v273, 1e-05
      %v275 = vrsqrt.pop %v274
      %v276 = vld [vmem:[%s2] sm:$0x1]
      %v277 = vmul.f32 %v276, %v275
      %v278 = vld [vmem:[%s3] sm:$0x1]
      %v279 = vmul.f32 %v268, %v277
      %v280 = vsub.f32 %v278, %v279
      %v281 = vld [vmem:[%s254] sm:$0xf]
      %v282 = vld [vmem:[%s254 + $0x4] sm:$0xf]
      %v283 = vld [vmem:[%s254 + $0x8] sm:$0xf]
      %v284 = vld [vmem:[%s254 + $0xc] sm:$0xf]
      %v285 = vld [vmem:[%s254 + $0x10] sm:$0xf]
      %v286 = vld [vmem:[%s254 + $0x14] sm:$0xf]
      %v287 = vld [vmem:[%s254 + $0x18] sm:$0xf]
      %v288 = vld [vmem:[%s254 + $0x1c] sm:$0xf]
      %v289 = vunpack.c.l.bf16 %v281
      %v290 = vunpack.c.l.bf16 %v282
      %v291 = vunpack.c.l.bf16 %v283
      %v292 = vunpack.c.l.bf16 %v284
      %v293 = vunpack.c.l.bf16 %v285
      %v294 = vunpack.c.l.bf16 %v286
      %v295 = vunpack.c.l.bf16 %v287
      %v296 = vunpack.c.l.bf16 %v288
      %v298 = vlaneseq
      %v299 = vshrl.u32 %v298, 7
      %v300 = vsub.s32 0, %v299
      %v301 = vrot.slane %v277, %v300
      %v303 = vmul.f32 %v289, %v301
      %v304 = vmul.f32 %v290, %v301
      %v305 = vmul.f32 %v291, %v301
      %v306 = vmul.f32 %v292, %v301
      %v307 = vmul.f32 %v293, %v301
      %v308 = vmul.f32 %v294, %v301
      %v309 = vmul.f32 %v295, %v301
      %v310 = vmul.f32 %v296, %v301
      %v312 = vlaneseq
      %v313 = vshrl.u32 %v312, 7
      %v314 = vsub.s32 0, %v313
      %v315 = vrot.slane %v280, %v314
      %v317 = vadd.f32 %v303, %v315
      %v318 = vadd.f32 %v304, %v315
      %v319 = vadd.f32 %v305, %v315
      %v320 = vadd.f32 %v306, %v315
      %v321 = vadd.f32 %v307, %v315
      %v322 = vadd.f32 %v308, %v315
      %v323 = vadd.f32 %v309, %v315
      %v324 = vadd.f32 %v310, %v315
      %v325 = vmax.f32 %v317, 0.0
      %v326 = vmax.f32 %v318, 0.0
      %v327 = vmax.f32 %v319, 0.0
      %v328 = vmax.f32 %v320, 0.0
      %v329 = vmax.f32 %v321, 0.0
      %v330 = vmax.f32 %v322, 0.0
      %v331 = vmax.f32 %v323, 0.0
      %v332 = vmax.f32 %v324, 0.0
      %v333 = vpack.c.bf16 %v326, %v325
      %v334 = vpack.c.bf16 %v328, %v327
      %v335 = vpack.c.bf16 %v330, %v329
      %v336 = vpack.c.bf16 %v332, %v331
      %v337 = vld [vmem:[%s4] sm:$0xf]
      %v338 = vld [vmem:[%s4 + $0x4] sm:$0xf]
      %v339 = vld [vmem:[%s4 + $0x8] sm:$0xf]
      %v340 = vld [vmem:[%s4 + $0xc] sm:$0xf]
      %v341 = vld [vmem:[%s4 + $0x10] sm:$0xf]
      %v342 = vld [vmem:[%s4 + $0x14] sm:$0xf]
      %v343 = vld [vmem:[%s4 + $0x18] sm:$0xf]
      %v344 = vld [vmem:[%s4 + $0x1c] sm:$0xf]
      %v345 = vld [vmem:[%s4 + $0x20] sm:$0xf]
      %v346 = vld [vmem:[%s4 + $0x24] sm:$0xf]
      %v347 = vld [vmem:[%s4 + $0x28] sm:$0xf]
      %v348 = vld [vmem:[%s4 + $0x2c] sm:$0xf]
      %v349 = vld [vmem:[%s4 + $0x30] sm:$0xf]
      %v350 = vld [vmem:[%s4 + $0x34] sm:$0xf]
      %v351 = vld [vmem:[%s4 + $0x38] sm:$0xf]
      %v352 = vld [vmem:[%s4 + $0x3c] sm:$0xf]
      %v369 = vunpack.c.l.b16 %v337
      %v370 = vunpack.c.l.b16 %v338
      %v371 = vunpack.c.l.b16 %v339
      %v372 = vunpack.c.l.b16 %v340
      %v373 = vunpack.c.l.b16 %v341
      %v374 = vunpack.c.l.b16 %v342
      %v375 = vunpack.c.l.b16 %v343
      %v376 = vunpack.c.l.b16 %v344
      %v377 = vunpack.c.l.b16 %v345
      %v378 = vunpack.c.l.b16 %v346
      %v379 = vunpack.c.l.b16 %v347
      %v380 = vunpack.c.l.b16 %v348
      %v381 = vunpack.c.l.b16 %v349
      %v382 = vunpack.c.l.b16 %v350
      %v383 = vunpack.c.l.b16 %v351
      %v384 = vunpack.c.l.b16 %v352
      %v385 = vpack.c.b16 %v370, %v369
      %v386 = vpack.c.b16 %v372, %v371
      %v387 = vpack.c.b16 %v374, %v373
      %v388 = vpack.c.b16 %v376, %v375
      %v389 = vpack.c.b16 %v378, %v377
      %v390 = vpack.c.b16 %v380, %v379
      %v391 = vpack.c.b16 %v382, %v381
      %v392 = vpack.c.b16 %v384, %v383
      %401 = vmatprep.subr.bf16.mxu0 0
      %402 = vmatpush1.bf16.msra.mxu0 %v392
      %403 = vmatprep.subr.bf16.mxu0 0
      %404 = vmatpush1.bf16.msra.mxu0 %v391
      %405 = vmatprep.subr.bf16.mxu0 0
      %406 = vmatpush1.bf16.msra.mxu0 %v390
      %407 = vmatprep.subr.bf16.mxu0 0
      %408 = vmatpush1.bf16.msra.mxu0 %v389
      %409 = vmatprep.subr.bf16.mxu0 0
      %410 = vmatpush1.bf16.msra.mxu0 %v388
      %411 = vmatprep.subr.bf16.mxu0 0
      %412 = vmatpush1.bf16.msra.mxu0 %v387
      %413 = vmatprep.subr.bf16.mxu0 0
      %414 = vmatpush1.bf16.msra.mxu0 %v386
      %415 = vmatprep.subr.bf16.mxu0 0
      %416 = vmatpush1.bf16.msra.mxu0 %v385
      %417 = vmatprep.subr.bf16.mxu0 0
      %418 = vmatpush2.bf16.msra.mxu0 0
      %419 = vmatprep.subr.bf16.mxu0 0
      %420 = vmatpush2.bf16.msra.mxu0 0
      %421 = vmatprep.subr.bf16.mxu0 0
      %422 = vmatpush2.bf16.msra.mxu0 0
      %423 = vmatprep.subr.bf16.mxu0 0
      %424 = vmatpush2.bf16.msra.mxu0 0
      %425 = vmatprep.subr.bf16.mxu0 0
      %426 = vmatpush2.bf16.msra.mxu0 0
      %427 = vmatprep.subr.bf16.mxu0 0
      %428 = vmatpush2.bf16.msra.mxu0 0
      %429 = vmatprep.subr.bf16.mxu0 0
      %430 = vmatpush2.bf16.msra.mxu0 0
      %431 = vmatprep.subr.bf16.mxu0 0
      %432 = vmatpush2.bf16.msra.mxu0 0
      %433 = vmatprep.mubr.bf16.mxu0 0
      %434 = vmatmul.mubr.bf16.gmra.mxu0 %v333
      %v435 = vpop.f32.mrf.mxu0
      %v436 = vadd.f32 0.0, %v435
      %v437 = vpop.f32.mrf.mxu0
      %v438 = vpop.f32.mrf.mxu0
      %v439 = vadd.f32 0.0, %v438
      %v440 = vpop.f32.mrf.mxu0
      %441 = vmatprep.mubr.bf16.mxu0 0
      %442 = vmatmul.mubr.bf16.gmra.mxu0 %v334
      %v443 = vpop.f32.mrf.mxu0
      %v444 = vadd.f32 0.0, %v443
      %v445 = vpop.f32.mrf.mxu0
      %v446 = vpop.f32.mrf.mxu0
      %v447 = vadd.f32 0.0, %v446
      %v448 = vpop.f32.mrf.mxu0
      %449 = vmatprep.mubr.bf16.mxu0 0
      %450 = vmatmul.mubr.bf16.gmra.mxu0 %v335
      %v451 = vpop.f32.mrf.mxu0
      %v452 = vadd.f32 0.0, %v451
      %v453 = vpop.f32.mrf.mxu0
      %v454 = vpop.f32.mrf.mxu0
      %v455 = vadd.f32 0.0, %v454
      %v456 = vpop.f32.mrf.mxu0
      %457 = vmatprep.mubr.bf16.mxu0 0
      %458 = vmatmul.mubr.bf16.gmra.mxu0 %v336
      %v459 = vpop.f32.mrf.mxu0
      %v460 = vadd.f32 0.0, %v459
      %v461 = vpop.f32.mrf.mxu0
      %v462 = vpop.f32.mrf.mxu0
      %v463 = vadd.f32 0.0, %v462
      %v464 = vpop.f32.mrf.mxu0
      %465 = vdwg.mxu0
      %v466 = vpack.c.bf16 %v439, %v436
      %v467 = vpack.c.bf16 %v447, %v444
      %v468 = vpack.c.bf16 %v455, %v452
      %v469 = vpack.c.bf16 %v463, %v460
      %v474 = vunpack.c.l.b16 %v466
      %v475 = vunpack.c.h.b16 %v466
      %v476 = vunpack.c.l.b16 %v467
      %v477 = vunpack.c.h.b16 %v467
      %v478 = vunpack.c.l.b16 %v468
      %v479 = vunpack.c.h.b16 %v468
      %v480 = vunpack.c.l.b16 %v469
      %v481 = vunpack.c.h.b16 %v469
      %v482 = vpack.c.b16 %v474, %v474
      %v483 = vpack.c.b16 %v475, %v475
      %v484 = vpack.c.b16 %v476, %v476
      %v485 = vpack.c.b16 %v477, %v477
      %v486 = vpack.c.b16 %v478, %v478
      %v487 = vpack.c.b16 %v479, %v479
      %v488 = vpack.c.b16 %v480, %v480
      %v489 = vpack.c.b16 %v481, %v481
      %498 = vst [vmem:[%s260] sm:$0xf] %v482
      %499 = vst [vmem:[%s260 + $0x4] sm:$0xf] %v483
      %500 = vst [vmem:[%s260 + $0x8] sm:$0xf] %v484
      %501 = vst [vmem:[%s260 + $0xc] sm:$0xf] %v485
      %502 = vst [vmem:[%s260 + $0x10] sm:$0xf] %v486
      %503 = vst [vmem:[%s260 + $0x14] sm:$0xf] %v487
      %504 = vst [vmem:[%s260 + $0x18] sm:$0xf] %v488
      %505 = vst [vmem:[%s260 + $0x1c] sm:$0xf] %v489
      %v506 = vadd.f32 %v436, %v439
      %v507 = vadd.f32 %v506, %v444
      %v508 = vadd.f32 %v507, %v447
      %v509 = vadd.f32 %v508, %v452
      %v510 = vadd.f32 %v509, %v455
      %v511 = vadd.f32 %v510, %v460
      %v512 = vadd.f32 %v511, %v463
      %v513 = vrot.slane %v512, 4
      %v514 = vadd.f32 %v512, %v513
      %v515 = vrot.slane %v514, 2
      %v516 = vadd.f32 %v514, %v515
      %v517 = vrot.slane %v516, 1
      %v518 = vadd.f32 %v516, %v517
      %v519 = vmul.f32 %v436, %v436
      %v520 = vmul.f32 %v439, %v439
      %v521 = vmul.f32 %v444, %v444
      %v522 = vmul.f32 %v447, %v447
      %v523 = vmul.f32 %v452, %v452
      %v524 = vmul.f32 %v455, %v455
      %v525 = vmul.f32 %v460, %v460
      %v526 = vmul.f32 %v463, %v463
      %v527 = vadd.f32 %v519, %v520
      %v528 = vadd.f32 %v527, %v521
      %v529 = vadd.f32 %v528, %v522
      %v530 = vadd.f32 %v529, %v523
      %v531 = vadd.f32 %v530, %v524
      %v532 = vadd.f32 %v531, %v525
      %v533 = vadd.f32 %v532, %v526
      %v534 = vrot.slane %v533, 4
      %v535 = vadd.f32 %v533, %v534
      %v536 = vrot.slane %v535, 2
      %v537 = vadd.f32 %v535, %v536
      %v538 = vrot.slane %v537, 1
      %v539 = vadd.f32 %v537, %v538
      %vm540 = vcmask 1040384
      %v541 = vsel %vm540, %v518, %v539
      %vm542 = vcmask 1041408
      %v543 = vsel %vm542, %v541, 0.0
      %544 = vst [vmem:[%s265] sm:$0xff] %v543
      %s545 = smul.u32 8, %s18
      %p546 = scmp.lt.s32.totalorder %s545, 15
      %s547 = scalar_select %p546, %s545, 15
      %s548 = smul.addr %s547, 4
      %s549 = scalar_lea.vmem %s5, %s548
      %p550 = scmp.lt.s32.totalorder %s18, 1
      %s551 = scalar_select %p550, %s18, 1
      %s552 = smul.addr %s551, 8
      %s553 = scalar_lea.vmem %s6, %s552
      // Predicated region
      $region41: #{_lambda_.6} parent=39 // pred_check
        %p554 = pneg %p146
      $region42: #{_lambda_.6} parent=39 // pred_check_branch
        %556 = sbr.rel (%p554) target = $region44
      $region43: #{_lambda_.6} parent=39 // pred_region
        %s557 = smul.u32 8, %s18
      $region44: #{_lambda_.6} parent=39 // pred_fallthru
        _
      // Predicated region
      $region45: #{_lambda_.6} parent=39 // pred_check
        %p558 = pneg %p172
      $region46: #{_lambda_.6} parent=39 // pred_check_branch
        %560 = sbr.rel (%p558) target = $region48
      $region47: #{_lambda_.6} parent=39 // pred_region
        _
      $region48: #{_lambda_.6} parent=39 // pred_fallthru
        _
    $region40: #{_lambda_.6} parent=5 // pred_fallthru
      _
    %p561 = scmp.le.s32.totalorder 2, %s13
    // Predicated region
    $region49: #{_lambda_.6} parent=5 // pred_check
      %p562 = pneg %p561
    $region50: #{_lambda_.6} parent=5 // pred_check_branch
      %564 = sbr.rel (%p562) target = $region52
    $region51: #{_lambda_.6} parent=5 // pred_region
      %s565 = ssub.s32 %s13, 2
      // Predicated region
      $region53: #{_lambda_.6} parent=51 // pred_check
        %p566 = pneg %p152
      $region54: #{_lambda_.6} parent=51 // pred_check_branch
        %568 = sbr.rel (%p566) target = $region56
      $region55: #{_lambda_.6} parent=51 // pred_region
        %s569 = smul.u32 8, %s19
        %p570 = scmp.lt.s32.totalorder %s569, 15
        %s571 = scalar_select %p570, %s569, 15
        %s572 = smul.addr %s571, 4
        %s573 = scalar_lea.vmem %s5, %s572
      $region56: #{_lambda_.6} parent=51 // pred_fallthru
        _
      // Predicated region
      $region57: #{_lambda_.6} parent=51 // pred_check
        %p574 = pneg %p178
      $region58: #{_lambda_.6} parent=51 // pred_check_branch
        %576 = sbr.rel (%p574) target = $region60
      $region59: #{_lambda_.6} parent=51 // pred_region
        %p577 = scmp.lt.s32.totalorder %s19, 1
        %s578 = scalar_select %p577, %s19, 1
        %s579 = smul.addr %s578, 8
        %s580 = scalar_lea.vmem %s6, %s579
      $region60: #{_lambda_.6} parent=51 // pred_fallthru
        _
    $region52: #{_lambda_.6} parent=5 // pred_fallthru
      _
  $region6: #{_lambda_.6} parent=0 // loop_footer
    %s17 = sadd.s32 1, %s13
  $region7: #{_lambda_.6} parent=0 // loop_footer_branch
    %12 = sbr.rel target = $region3
  $region8: #{_lambda_.6} parent=0 // loop_exit
    _

// kernel: _lambda_.5
$region0: #{_lambda_.5}
  #allocation0 [shape = 'u32[]', space=smem, size = 0x4, offset = 0x4, fixed_abs, tag = 'smem constant byte address 0x4 - core index']
  #allocation1 [shape = 'u32[144,128]{1,0:T(1,128)}', space=vmem, size = 0x12000, scoped, tag = 'internal scratch']
  #allocation2 [shape = 'f32[10,10,128]{2,1,0:T(8,128)}', space=vmem, size = 0x14000, scoped, tag = 'scratch operand']
  #allocation3 [shape = 'bf16[10,8,384]{2,1,0:T(8,128)(2,1)}', space=vmem, size = 0xf000, scoped, tag = 'scratch operand']
  %s0 = inlined_call_operand.vmem [shape: bf16[2,8,8,128], index: 0, kind: input, shape index: {}]
  %s1 = inlined_call_operand.vmem [shape: f32[8,128], index: 1, kind: input, shape index: {}]
  %s2 = inlined_call_operand.vmem [shape: f32[1,128], index: 2, kind: input, shape index: {}]
  %s3 = inlined_call_operand.vmem [shape: f32[1,128], index: 3, kind: input, shape index: {}]
  %s4 = inlined_call_operand.vmem [shape: bf16[3,384,128], index: 4, kind: input, shape index: {}]
  %s5 = inlined_call_operand.vmem [shape: bf16[128,128], index: 5, kind: output, shape index: {0}]
  %s6 = inlined_call_operand.vmem [shape: f32[2,8,128], index: 6, kind: output, shape index: {1}]
  %7 = xla_tuple %s5, %s6
  %s8 = sld [smem:[#allocation0]]
  $region61: #{_lambda_.5} parent=0
    _
  %s10 = ssub.s32 1, %s8
  %s11 = scalar_select 0, %s10, %s8
  loop: start=0, step=1, limit=4
  $region2: #{_lambda_.5} parent=0 // loop_pre_header
    _
  $region3: #{_lambda_.5} parent=0 // loop_header
    %s13 = sphi 0, %s17
    %p14 = scmp.ge.s32.totalorder %s13, 4
    %s23 = sphi 0, %s25
    %s26 = sphi 0, %s23
    %s27 = sphi 0, %s26
    %s43 = sphi 0, %s27
    %s47 = sphi 0, %s47
    %s49 = sphi 0, %s47
    %s50 = sphi 0, %s49
    %s64 = sphi 0, %s50
    %s68 = sphi 0, %s68
    %s70 = sphi 0, %s68
    %s71 = sphi 0, %s70
    %s85 = sphi 0, %s71
    %s89 = sphi 0, %s89
    %s91 = sphi 0, %s89
    %s92 = sphi 0, %s91
    %s106 = sphi 0, %s92
    %s110 = sphi 0, %s110
    %s112 = sphi 0, %s110
    %s113 = sphi 0, %s112
    %s127 = sphi 0, %s113
    %s133 = sphi 0, %s135
    %s136 = sphi 0, %s133
    %s137 = sphi 0, %s136
    %s153 = sphi 0, %s137
    %s159 = sphi 0, %s161
    %s162 = sphi 0, %s159
    %s163 = sphi 0, %s162
    %s179 = sphi 0, %s163
  $region4: #{_lambda_.5} parent=0 // loop_header_branch
    %16 = sbr.rel (%p14) target = $region8
  $region5: #{_lambda_.5} parent=0 // loop_body
    %s18 = ssub.s32 %s13, 1
    %s19 = ssub.s32 %s13, 2
    %s20 = sadd.s32 %s13, 1
    %s21 = ssub.s32 %s13, %s20
    %p22 = scmp.eq.s32.totalorder %s21, 0
    %s24 = sadd.s32 %s23, 1
    %s25 = scalar_select %p22, %s23, %s24
    %p28 = pneg %p22
    %p29 = scmp.eq.s32.totalorder %s13, 1
    %p30 = por %p28, %p29
    %p31 = scmp.ne.s32.totalorder %s23, %s26
    %p32 = scmp.eq.s32.totalorder %s13, 0
    %p33 = por %p31, %p32
    %p34 = scmp.ne.s32.totalorder %s23, %s26
    %p35 = scmp.eq.s32.totalorder %s18, 1
    %p36 = por %p34, %p35
    %p37 = scmp.ne.s32.totalorder %s26, %s27
    %p38 = scmp.eq.s32.totalorder %s18, 0
    %p39 = por %p37, %p38
    %p40 = scmp.ne.s32.totalorder %s26, %s27
    %p41 = scmp.eq.s32.totalorder %s19, 1
    %p42 = por %p40, %p41
    %p44 = scmp.ne.s32.totalorder %s27, %s43
    %p45 = scmp.eq.s32.totalorder %s19, 0
    %p46 = por %p44, %p45
    %s48 = sadd.s32 %s47, 1
    %p51 = scmp.eq.s32.totalorder %s13, 1
    %p52 = scmp.ne.s32.totalorder %s47, %s49
    %p53 = scmp.eq.s32.totalorder %s13, 0
    %p54 = por %p52, %p53
    %p55 = scmp.ne.s32.totalorder %s47, %s49
    %p56 = scmp.eq.s32.totalorder %s18, 1
    %p57 = por %p55, %p56
    %p58 = scmp.ne.s32.totalorder %s49, %s50
    %p59 = scmp.eq.s32.totalorder %s18, 0
    %p60 = por %p58, %p59
    %p61 = scmp.ne.s32.totalorder %s49, %s50
    %p62 = scmp.eq.s32.totalorder %s19, 1
    %p63 = por %p61, %p62
    %p65 = scmp.ne.s32.totalorder %s50, %s64
    %p66 = scmp.eq.s32.totalorder %s19, 0
    %p67 = por %p65, %p66
    %s69 = sadd.s32 %s68, 1
    %p72 = scmp.eq.s32.totalorder %s13, 1
    %p73 = scmp.ne.s32.totalorder %s68, %s70
    %p74 = scmp.eq.s32.totalorder %s13, 0
    %p75 = por %p73, %p74
    %p76 = scmp.ne.s32.totalorder %s68, %s70
    %p77 = scmp.eq.s32.totalorder %s18, 1
    %p78 = por %p76, %p77
    %p79 = scmp.ne.s32.totalorder %s70, %s71
    %p80 = scmp.eq.s32.totalorder %s18, 0
    %p81 = por %p79, %p80
    %p82 = scmp.ne.s32.totalorder %s70, %s71
    %p83 = scmp.eq.s32.totalorder %s19, 1
    %p84 = por %p82, %p83
    %p86 = scmp.ne.s32.totalorder %s71, %s85
    %p87 = scmp.eq.s32.totalorder %s19, 0
    %p88 = por %p86, %p87
    %s90 = sadd.s32 %s89, 1
    %p93 = scmp.eq.s32.totalorder %s13, 1
    %p94 = scmp.ne.s32.totalorder %s89, %s91
    %p95 = scmp.eq.s32.totalorder %s13, 0
    %p96 = por %p94, %p95
    %p97 = scmp.ne.s32.totalorder %s89, %s91
    %p98 = scmp.eq.s32.totalorder %s18, 1
    %p99 = por %p97, %p98
    %p100 = scmp.ne.s32.totalorder %s91, %s92
    %p101 = scmp.eq.s32.totalorder %s18, 0
    %p102 = por %p100, %p101
    %p103 = scmp.ne.s32.totalorder %s91, %s92
    %p104 = scmp.eq.s32.totalorder %s19, 1
    %p105 = por %p103, %p104
    %p107 = scmp.ne.s32.totalorder %s92, %s106
    %p108 = scmp.eq.s32.totalorder %s19, 0
    %p109 = por %p107, %p108
    %s111 = sadd.s32 %s110, 1
    %p114 = scmp.eq.s32.totalorder %s13, 1
    %p115 = scmp.ne.s32.totalorder %s110, %s112
    %p116 = scmp.eq.s32.totalorder %s13, 0
    %p117 = por %p115, %p116
    %p118 = scmp.ne.s32.totalorder %s110, %s112
    %p119 = scmp.eq.s32.totalorder %s18, 1
    %p120 = por %p118, %p119
    %p121 = scmp.ne.s32.totalorder %s112, %s113
    %p122 = scmp.eq.s32.totalorder %s18, 0
    %p123 = por %p121, %p122
    %p124 = scmp.ne.s32.totalorder %s112, %s113
    %p125 = scmp.eq.s32.totalorder %s19, 1
    %p126 = por %p124, %p125
    %p128 = scmp.ne.s32.totalorder %s113, %s127
    %p129 = scmp.eq.s32.totalorder %s19, 0
    %p130 = por %p128, %p129
    %s131 = ssub.s32 %s13, %s20
    %p132 = scmp.eq.s32.totalorder %s131, 0
    %s134 = sadd.s32 %s133, 1
    %s135 = scalar_select %p132, %s133, %s134
    %p138 = pneg %p132
    %p139 = scmp.eq.s32.totalorder %s13, 1
    %p140 = por %p138, %p139
    %p141 = scmp.ne.s32.totalorder %s133, %s136
    %p142 = scmp.eq.s32.totalorder %s13, 0
    %p143 = por %p141, %p142
    %p144 = scmp.ne.s32.totalorder %s133, %s136
    %p145 = scmp.eq.s32.totalorder %s18, 1
    %p146 = por %p144, %p145
    %p147 = scmp.ne.s32.totalorder %s136, %s137
    %p148 = scmp.eq.s32.totalorder %s18, 0
    %p149 = por %p147, %p148
    %p150 = scmp.ne.s32.totalorder %s136, %s137
    %p151 = scmp.eq.s32.totalorder %s19, 1
    %p152 = por %p150, %p151
    %p154 = scmp.ne.s32.totalorder %s137, %s153
    %p155 = scmp.eq.s32.totalorder %s19, 0
    %p156 = por %p154, %p155
    %s157 = ssub.s32 %s13, %s20
    %p158 = scmp.eq.s32.totalorder %s157, 0
    %s160 = sadd.s32 %s159, 1
    %s161 = scalar_select %p158, %s159, %s160
    %p164 = pneg %p158
    %p165 = scmp.eq.s32.totalorder %s13, 1
    %p166 = por %p164, %p165
    %p167 = scmp.ne.s32.totalorder %s159, %s162
    %p168 = scmp.eq.s32.totalorder %s13, 0
    %p169 = por %p167, %p168
    %p170 = scmp.ne.s32.totalorder %s159, %s162
    %p171 = scmp.eq.s32.totalorder %s18, 1
    %p172 = por %p170, %p171
    %p173 = scmp.ne.s32.totalorder %s162, %s163
    %p174 = scmp.eq.s32.totalorder %s18, 0
    %p175 = por %p173, %p174
    %p176 = scmp.ne.s32.totalorder %s162, %s163
    %p177 = scmp.eq.s32.totalorder %s19, 1
    %p178 = por %p176, %p177
    %p180 = scmp.ne.s32.totalorder %s163, %s179
    %p181 = scmp.eq.s32.totalorder %s19, 0
    %p182 = por %p180, %p181
    %p183 = scmp.le.s32.totalorder 1, %s13
    %p184 = scmp.lt.s32.totalorder %s13, 3
    %p185 = pnand %p183, %p184
    %p186 = pneg %p185
    // Predicated region
    $region9: #{_lambda_.5} parent=5 // pred_check
      _
    $region10: #{_lambda_.5} parent=5 // pred_check_branch
      %188 = sbr.rel (%p185) target = $region12
    $region11: #{_lambda_.5} parent=5 // pred_region
      %s189 = ssub.s32 %s13, 1
      // Predicated region
      $region13: #{_lambda_.5} parent=11 // pred_check
        %p190 = pneg %p60
      $region14: #{_lambda_.5} parent=11 // pred_check_branch
        %192 = sbr.rel (%p190) target = $region16
      $region15: #{_lambda_.5} parent=11 // pred_region
        _
      $region16: #{_lambda_.5} parent=11 // pred_fallthru
        _
      // Predicated region
      $region17: #{_lambda_.5} parent=11 // pred_check
        %p193 = pneg %p81
      $region18: #{_lambda_.5} parent=11 // pred_check_branch
        %195 = sbr.rel (%p193) target = $region20
      $region19: #{_lambda_.5} parent=11 // pred_region
        _
      $region20: #{_lambda_.5} parent=11 // pred_fallthru
        _
      // Predicated region
      $region21: #{_lambda_.5} parent=11 // pred_check
        %p196 = pneg %p102
      $region22: #{_lambda_.5} parent=11 // pred_check_branch
        %198 = sbr.rel (%p196) target = $region24
      $region23: #{_lambda_.5} parent=11 // pred_region
        _
      $region24: #{_lambda_.5} parent=11 // pred_fallthru
        _
      // Predicated region
      $region25: #{_lambda_.5} parent=11 // pred_check
        %p199 = pneg %p123
      $region26: #{_lambda_.5} parent=11 // pred_check_branch
        %201 = sbr.rel (%p199) target = $region28
      $region27: #{_lambda_.5} parent=11 // pred_region
        _
      $region28: #{_lambda_.5} parent=11 // pred_fallthru
        _
    $region12: #{_lambda_.5} parent=5 // pred_fallthru
      _
    %p202 = scmp.lt.s32.totalorder %s13, 2
    // Predicated region
    $region29: #{_lambda_.5} parent=5 // pred_check
      %p203 = pneg %p202
    $region30: #{_lambda_.5} parent=5 // pred_check_branch
      %205 = sbr.rel (%p203) target = $region32
    $region31: #{_lambda_.5} parent=5 // pred_region
      // Predicated region
      $region33: #{_lambda_.5} parent=31 // pred_check
        %p206 = pneg %p33
      $region34: #{_lambda_.5} parent=31 // pred_check_branch
        %208 = sbr.rel (%p206) target = $region36
      $region35: #{_lambda_.5} parent=31 // pred_region
        %p209 = scmp.lt.s32.totalorder %s13, 1
        %s210 = scalar_select %p209, %s13, 1
        %s211 = smul.addr %s210, 8
        %s212 = smul.addr %s211, 4
        %s213 = scalar_lea.vmem %s0, %s212
      $region36: #{_lambda_.5} parent=31 // pred_fallthru
        _
    $region32: #{_lambda_.5} parent=5 // pred_fallthru
      _
    %p214 = scmp.le.s32.totalorder 1, %s13
    %p215 = scmp.lt.s32.totalorder %s13, 3
    %p216 = pnand %p214, %p215
    %p217 = pneg %p216
    // Predicated region
    $region37: #{_lambda_.5} parent=5 // pred_check
      _
    $region38: #{_lambda_.5} parent=5 // pred_check_branch
      %219 = sbr.rel (%p216) target = $region40
    $region39: #{_lambda_.5} parent=5 // pred_region
      %s220 = ssub.s32 %s13, 1
      %p221 = scmp.lt.s32.totalorder %s18, 1
      %s222 = scalar_select %p221, %s18, 1
      %s223 = smul.addr %s222, 8
      %s224 = smul.addr %s223, 4
      %s225 = scalar_lea.vmem %s0, %s224
      %p226 = pneg %p39
      %p227 = pneg %p36
      %p228 = pneg %p60
      %p229 = pneg %p57
      %p230 = pneg %p81
      %p231 = pneg %p78
      %p232 = pneg %p102
      %p233 = pneg %p99
      %p234 = pneg %p123
      %p235 = pneg %p120
      %p236 = pneg %p149
      %p237 = pneg %p146
      %s238 = smul.u32 8, %s18
      %p239 = scmp.lt.s32.totalorder %s238, 15
      %s240 = scalar_select %p239, %s238, 15
      %s241 = smul.addr %s240, 4
      %s242 = scalar_lea.vmem %s5, %s241
      %p243 = pneg %p175
      %p244 = pneg %p172
      %p245 = scmp.lt.s32.totalorder %s18, 1
      %s246 = scalar_select %p245, %s18, 1
      %s247 = smul.addr %s246, 8
      %s248 = scalar_lea.vmem %s6, %s247
      %p249 = scmp.lt.s32.totalorder %s18, 1
      %s250 = scalar_select %p249, %s18, 1
      %s251 = smul.addr %s250, 8
      %s252 = smul.addr %s251, 4
      %s253 = scalar_lea.vmem %s0, %s252
      %s254 = smul.u32 8, %s18
      %p255 = scmp.lt.s32.totalorder %s254, 15
      %s256 = scalar_select %p255, %s254, 15
      %s257 = smul.addr %s256, 4
      %s258 = scalar_lea.vmem %s5, %s257
      %s259 = smul.u32 8, %s18
      %p260 = scmp.lt.s32.totalorder %s18, 1
      %s261 = scalar_select %p260, %s18, 1
      %s262 = smul.addr %s261, 8
      %s263 = scalar_lea.vmem %s6, %s262
      %v265 = vld [vmem:[%s1] sm:$0x1]
      %v266 = vmul.f32 %v265, 0.0078125
      %v267 = vld [vmem:[%s1 + $0x1] sm:$0x1]
      %v268 = vmul.f32 %v267, 0.0078125
      %v269 = vmul.f32 %v266, %v266
      %v270 = vsub.f32 %v268, %v269
      %v271 = vmax.f32 %v270, 0.0
      %v272 = vadd.f32 %v271, 1e-05
      %v273 = vrsqrt.pop %v272
      %v274 = vld [vmem:[%s2] sm:$0x1]
      %v275 = vmul.f32 %v274, %v273
      %v276 = vld [vmem:[%s3] sm:$0x1]
      %v277 = vmul.f32 %v266, %v275
      %v278 = vsub.f32 %v276, %v277
      %279 = vst [vmem:[#allocation2] sm:$0xff] 0.0
      %280 = vst [vmem:[#allocation2 + $0x8] sm:$0x3] 0.0
      %281 = vst [vmem:[#allocation2 + $0x10] sm:$0xff] 0.0
      %282 = vst [vmem:[#allocation2 + $0x18] sm:$0x3] 0.0
      %283 = vst [vmem:[#allocation2 + $0x20] sm:$0xff] 0.0
      %284 = vst [vmem:[#allocation2 + $0x28] sm:$0x3] 0.0
      %285 = vst [vmem:[#allocation2 + $0x30] sm:$0xff] 0.0
      %286 = vst [vmem:[#allocation2 + $0x38] sm:$0x3] 0.0
      %287 = vst [vmem:[#allocation2 + $0x40] sm:$0xff] 0.0
      %288 = vst [vmem:[#allocation2 + $0x48] sm:$0x3] 0.0
      %289 = vst [vmem:[#allocation2 + $0x50] sm:$0xff] 0.0
      %290 = vst [vmem:[#allocation2 + $0x58] sm:$0x3] 0.0
      %291 = vst [vmem:[#allocation2 + $0x60] sm:$0xff] 0.0
      %292 = vst [vmem:[#allocation2 + $0x68] sm:$0x3] 0.0
      %293 = vst [vmem:[#allocation2 + $0x70] sm:$0xff] 0.0
      %294 = vst [vmem:[#allocation2 + $0x78] sm:$0x3] 0.0
      %295 = vst [vmem:[#allocation2 + $0x80] sm:$0xff] 0.0
      %296 = vst [vmem:[#allocation2 + $0x88] sm:$0x3] 0.0
      %297 = vst [vmem:[#allocation2 + $0x90] sm:$0xff] 0.0
      %298 = vst [vmem:[#allocation2 + $0x98] sm:$0x3] 0.0
      %v299 = vld [vmem:[%s253] sm:$0xf]
      %v300 = vld [vmem:[%s253 + $0x4] sm:$0xf]
      %v301 = vld [vmem:[%s253 + $0x8] sm:$0xf]
      %v302 = vld [vmem:[%s253 + $0xc] sm:$0xf]
      %v303 = vld [vmem:[%s253 + $0x10] sm:$0xf]
      %v304 = vld [vmem:[%s253 + $0x14] sm:$0xf]
      %v305 = vld [vmem:[%s253 + $0x18] sm:$0xf]
      %v306 = vld [vmem:[%s253 + $0x1c] sm:$0xf]
      %v307 = vunpack.c.l.bf16 %v299
      %v308 = vunpack.c.l.bf16 %v300
      %v309 = vunpack.c.l.bf16 %v301
      %v310 = vunpack.c.l.bf16 %v302
      %v311 = vunpack.c.l.bf16 %v303
      %v312 = vunpack.c.l.bf16 %v304
      %v313 = vunpack.c.l.bf16 %v305
      %v314 = vunpack.c.l.bf16 %v306
      %v316 = vlaneseq
      %v317 = vshrl.u32 %v316, 7
      %v318 = vsub.s32 0, %v317
      %v319 = vrot.slane %v275, %v318
      %v321 = vmul.f32 %v307, %v319
      %v322 = vmul.f32 %v308, %v319
      %v323 = vmul.f32 %v309, %v319
      %v324 = vmul.f32 %v310, %v319
      %v325 = vmul.f32 %v311, %v319
      %v326 = vmul.f32 %v312, %v319
      %v327 = vmul.f32 %v313, %v319
      %v328 = vmul.f32 %v314, %v319
      %v330 = vlaneseq
      %v331 = vshrl.u32 %v330, 7
      %v332 = vsub.s32 0, %v331
      %v333 = vrot.slane %v278, %v332
      %v335 = vadd.f32 %v321, %v333
      %v336 = vadd.f32 %v322, %v333
      %v337 = vadd.f32 %v323, %v333
      %v338 = vadd.f32 %v324, %v333
      %v339 = vadd.f32 %v325, %v333
      %v340 = vadd.f32 %v326, %v333
      %v341 = vadd.f32 %v327, %v333
      %v342 = vadd.f32 %v328, %v333
      %v343 = vmax.f32 %v335, 0.0
      %v344 = vmax.f32 %v336, 0.0
      %v345 = vmax.f32 %v337, 0.0
      %v346 = vmax.f32 %v338, 0.0
      %v347 = vmax.f32 %v339, 0.0
      %v348 = vmax.f32 %v340, 0.0
      %v349 = vmax.f32 %v341, 0.0
      %v350 = vmax.f32 %v342, 0.0
      %s351 = scalar_lea.vmem [#allocation2], 16
      %352 = vst [vmem:[%s351 + $0x1] sm:$0xff] %v343
      %353 = vst [vmem:[%s351 + $0x11] sm:$0xff] %v344
      %354 = vst [vmem:[%s351 + $0x21] sm:$0xff] %v345
      %355 = vst [vmem:[%s351 + $0x31] sm:$0xff] %v346
      %356 = vst [vmem:[%s351 + $0x41] sm:$0xff] %v347
      %357 = vst [vmem:[%s351 + $0x51] sm:$0xff] %v348
      %358 = vst [vmem:[%s351 + $0x61] sm:$0xff] %v349
      %359 = vst [vmem:[%s351 + $0x71] sm:$0xff] %v350
      %v360 = vld [vmem:[#allocation2] sm:$0xff]
      %v361 = vld [vmem:[#allocation2 + $0x10] sm:$0xff]
      %v362 = vld [vmem:[#allocation2 + $0x20] sm:$0xff]
      %v363 = vld [vmem:[#allocation2 + $0x30] sm:$0xff]
      %v364 = vld [vmem:[#allocation2 + $0x40] sm:$0xff]
      %v365 = vld [vmem:[#allocation2 + $0x50] sm:$0xff]
      %v366 = vld [vmem:[#allocation2 + $0x60] sm:$0xff]
      %v367 = vld [vmem:[#allocation2 + $0x70] sm:$0xff]
      %v368 = vld [vmem:[#allocation2 + $0x80] sm:$0xff]
      %v369 = vld [vmem:[#allocation2 + $0x90] sm:$0xff]
      %v370 = vpack.c.bf16 %v360, %v360
      %v371 = vpack.c.bf16 %v361, %v361
      %v372 = vpack.c.bf16 %v362, %v362
      %v373 = vpack.c.bf16 %v363, %v363
      %v374 = vpack.c.bf16 %v364, %v364
      %v375 = vpack.c.bf16 %v365, %v365
      %v376 = vpack.c.bf16 %v366, %v366
      %v377 = vpack.c.bf16 %v367, %v367
      %v378 = vpack.c.bf16 %v368, %v368
      %v379 = vpack.c.bf16 %v369, %v369
      %380 = vst [vmem:[#allocation3] sm:$0xf] %v370
      %381 = vst [vmem:[#allocation3 + $0xc] sm:$0xf] %v371
      %382 = vst [vmem:[#allocation3 + $0x18] sm:$0xf] %v372
      %383 = vst [vmem:[#allocation3 + $0x24] sm:$0xf] %v373
      %384 = vst [vmem:[#allocation3 + $0x30] sm:$0xf] %v374
      %385 = vst [vmem:[#allocation3 + $0x3c] sm:$0xf] %v375
      %386 = vst [vmem:[#allocation3 + $0x48] sm:$0xf] %v376
      %387 = vst [vmem:[#allocation3 + $0x54] sm:$0xf] %v377
      %388 = vst [vmem:[#allocation3 + $0x60] sm:$0xf] %v378
      %389 = vst [vmem:[#allocation3 + $0x6c] sm:$0xf] %v379
      %v390 = vld [vmem:[#allocation2 + $0x1] sm:$0xff]
      %v391 = vld [vmem:[#allocation2 + $0x11] sm:$0xff]
      %v392 = vld [vmem:[#allocation2 + $0x21] sm:$0xff]
      %v393 = vld [vmem:[#allocation2 + $0x31] sm:$0xff]
      %v394 = vld [vmem:[#allocation2 + $0x41] sm:$0xff]
      %v395 = vld [vmem:[#allocation2 + $0x51] sm:$0xff]
      %v396 = vld [vmem:[#allocation2 + $0x61] sm:$0xff]
      %v397 = vld [vmem:[#allocation2 + $0x71] sm:$0xff]
      %v398 = vld [vmem:[#allocation2 + $0x81] sm:$0xff]
      %v399 = vld [vmem:[#allocation2 + $0x91] sm:$0xff]
      %v400 = vpack.c.bf16 %v390, %v390
      %v401 = vpack.c.bf16 %v391, %v391
      %v402 = vpack.c.bf16 %v392, %v392
      %v403 = vpack.c.bf16 %v393, %v393
      %v404 = vpack.c.bf16 %v394, %v394
      %v405 = vpack.c.bf16 %v395, %v395
      %v406 = vpack.c.bf16 %v396, %v396
      %v407 = vpack.c.bf16 %v397, %v397
      %v408 = vpack.c.bf16 %v398, %v398
      %v409 = vpack.c.bf16 %v399, %v399
      %410 = vst [vmem:[#allocation3 + $0x4] sm:$0xf] %v400
      %411 = vst [vmem:[#allocation3 + $0x10] sm:$0xf] %v401
      %412 = vst [vmem:[#allocation3 + $0x1c] sm:$0xf] %v402
      %413 = vst [vmem:[#allocation3 + $0x28] sm:$0xf] %v403
      %414 = vst [vmem:[#allocation3 + $0x34] sm:$0xf] %v404
      %415 = vst [vmem:[#allocation3 + $0x40] sm:$0xf] %v405
      %416 = vst [vmem:[#allocation3 + $0x4c] sm:$0xf] %v406
      %417 = vst [vmem:[#allocation3 + $0x58] sm:$0xf] %v407
      %418 = vst [vmem:[#allocation3 + $0x64] sm:$0xf] %v408
      %419 = vst [vmem:[#allocation3 + $0x70] sm:$0xf] %v409
      %v420 = vld [vmem:[#allocation2 + $0x2] sm:$0xff]
      %v421 = vld [vmem:[#allocation2 + $0x12] sm:$0xff]
      %v422 = vld [vmem:[#allocation2 + $0x22] sm:$0xff]
      %v423 = vld [vmem:[#allocation2 + $0x32] sm:$0xff]
      %v424 = vld [vmem:[#allocation2 + $0x42] sm:$0xff]
      %v425 = vld [vmem:[#allocation2 + $0x52] sm:$0xff]
      %v426 = vld [vmem:[#allocation2 + $0x62] sm:$0xff]
      %v427 = vld [vmem:[#allocation2 + $0x72] sm:$0xff]
      %v428 = vld [vmem:[#allocation2 + $0x82] sm:$0xff]
      %v429 = vld [vmem:[#allocation2 + $0x92] sm:$0xff]
      %v430 = vpack.c.bf16 %v420, %v420
      %v431 = vpack.c.bf16 %v421, %v421
      %v432 = vpack.c.bf16 %v422, %v422
      %v433 = vpack.c.bf16 %v423, %v423
      %v434 = vpack.c.bf16 %v424, %v424
      %v435 = vpack.c.bf16 %v425, %v425
      %v436 = vpack.c.bf16 %v426, %v426
      %v437 = vpack.c.bf16 %v427, %v427
      %v438 = vpack.c.bf16 %v428, %v428
      %v439 = vpack.c.bf16 %v429, %v429
      %440 = vst [vmem:[#allocation3 + $0x8] sm:$0xf] %v430
      %441 = vst [vmem:[#allocation3 + $0x14] sm:$0xf] %v431
      %442 = vst [vmem:[#allocation3 + $0x20] sm:$0xf] %v432
      %443 = vst [vmem:[#allocation3 + $0x2c] sm:$0xf] %v433
      %444 = vst [vmem:[#allocation3 + $0x38] sm:$0xf] %v434
      %445 = vst [vmem:[#allocation3 + $0x44] sm:$0xf] %v435
      %446 = vst [vmem:[#allocation3 + $0x50] sm:$0xf] %v436
      %447 = vst [vmem:[#allocation3 + $0x5c] sm:$0xf] %v437
      %448 = vst [vmem:[#allocation3 + $0x68] sm:$0xf] %v438
      %449 = vst [vmem:[#allocation3 + $0x74] sm:$0xf] %v439
      %v450 = vld [vmem:[#allocation3] sm:$0xff]
      %v451 = vld [vmem:[#allocation3 + $0x8] sm:$0xf]
      %v452 = vld [vmem:[#allocation3 + $0xc] sm:$0xff]
      %v453 = vld [vmem:[#allocation3 + $0x14] sm:$0xf]
      %v454 = vld [vmem:[#allocation3 + $0x18] sm:$0xff]
      %v455 = vld [vmem:[#allocation3 + $0x20] sm:$0xf]
      %v456 = vld [vmem:[#allocation3 + $0x24] sm:$0xff]
      %v457 = vld [vmem:[#allocation3 + $0x2c] sm:$0xf]
      %v458 = vld [vmem:[#allocation3 + $0x30] sm:$0xff]
      %v459 = vld [vmem:[#allocation3 + $0x38] sm:$0xf]
      %v460 = vld [vmem:[#allocation3 + $0x3c] sm:$0xff]
      %v461 = vld [vmem:[#allocation3 + $0x44] sm:$0xf]
      %v462 = vld [vmem:[#allocation3 + $0x48] sm:$0xff]
      %v463 = vld [vmem:[#allocation3 + $0x50] sm:$0xf]
      %v464 = vld [vmem:[#allocation3 + $0x54] sm:$0xff]
      %v465 = vld [vmem:[#allocation3 + $0x5c] sm:$0xf]
      %v466 = vld [vmem:[%s4] sm:$0xf]
      %v467 = vld [vmem:[%s4 + $0x4] sm:$0xf]
      %v468 = vld [vmem:[%s4 + $0x8] sm:$0xf]
      %v469 = vld [vmem:[%s4 + $0xc] sm:$0xf]
      %v470 = vld [vmem:[%s4 + $0x10] sm:$0xf]
      %v471 = vld [vmem:[%s4 + $0x14] sm:$0xf]
      %v472 = vld [vmem:[%s4 + $0x18] sm:$0xf]
      %v473 = vld [vmem:[%s4 + $0x1c] sm:$0xf]
      %v474 = vld [vmem:[%s4 + $0x20] sm:$0xf]
      %v475 = vld [vmem:[%s4 + $0x24] sm:$0xf]
      %v476 = vld [vmem:[%s4 + $0x28] sm:$0xf]
      %v477 = vld [vmem:[%s4 + $0x2c] sm:$0xf]
      %v478 = vld [vmem:[%s4 + $0x30] sm:$0xf]
      %v479 = vld [vmem:[%s4 + $0x34] sm:$0xf]
      %v480 = vld [vmem:[%s4 + $0x38] sm:$0xf]
      %v481 = vld [vmem:[%s4 + $0x3c] sm:$0xf]
      %v482 = vld [vmem:[%s4 + $0x40] sm:$0xf]
      %v483 = vld [vmem:[%s4 + $0x44] sm:$0xf]
      %v484 = vld [vmem:[%s4 + $0x48] sm:$0xf]
      %v485 = vld [vmem:[%s4 + $0x4c] sm:$0xf]
      %v486 = vld [vmem:[%s4 + $0x50] sm:$0xf]
      %v487 = vld [vmem:[%s4 + $0x54] sm:$0xf]
      %v488 = vld [vmem:[%s4 + $0x58] sm:$0xf]
      %v489 = vld [vmem:[%s4 + $0x5c] sm:$0xf]
      %v490 = vld [vmem:[%s4 + $0x60] sm:$0xf]
      %v491 = vld [vmem:[%s4 + $0x64] sm:$0xf]
      %v492 = vld [vmem:[%s4 + $0x68] sm:$0xf]
      %v493 = vld [vmem:[%s4 + $0x6c] sm:$0xf]
      %v494 = vld [vmem:[%s4 + $0x70] sm:$0xf]
      %v495 = vld [vmem:[%s4 + $0x74] sm:$0xf]
      %v496 = vld [vmem:[%s4 + $0x78] sm:$0xf]
      %v497 = vld [vmem:[%s4 + $0x7c] sm:$0xf]
      %v498 = vld [vmem:[%s4 + $0x80] sm:$0xf]
      %v499 = vld [vmem:[%s4 + $0x84] sm:$0xf]
      %v500 = vld [vmem:[%s4 + $0x88] sm:$0xf]
      %v501 = vld [vmem:[%s4 + $0x8c] sm:$0xf]
      %v502 = vld [vmem:[%s4 + $0x90] sm:$0xf]
      %v503 = vld [vmem:[%s4 + $0x94] sm:$0xf]
      %v504 = vld [vmem:[%s4 + $0x98] sm:$0xf]
      %v505 = vld [vmem:[%s4 + $0x9c] sm:$0xf]
      %v506 = vld [vmem:[%s4 + $0xa0] sm:$0xf]
      %v507 = vld [vmem:[%s4 + $0xa4] sm:$0xf]
      %v508 = vld [vmem:[%s4 + $0xa8] sm:$0xf]
      %v509 = vld [vmem:[%s4 + $0xac] sm:$0xf]
      %v510 = vld [vmem:[%s4 + $0xb0] sm:$0xf]
      %v511 = vld [vmem:[%s4 + $0xb4] sm:$0xf]
      %v512 = vld [vmem:[%s4 + $0xb8] sm:$0xf]
      %v513 = vld [vmem:[%s4 + $0xbc] sm:$0xf]
      %s514 = scalar_lea.vmem [#allocation3], 12
      %v515 = vld [vmem:[%s514] sm:$0xff]
      %v516 = vld [vmem:[%s514 + $0x8] sm:$0xf]
      %v517 = vld [vmem:[%s514 + $0xc] sm:$0xff]
      %v518 = vld [vmem:[%s514 + $0x14] sm:$0xf]
      %v519 = vld [vmem:[%s514 + $0x18] sm:$0xff]
      %v520 = vld [vmem:[%s514 + $0x20] sm:$0xf]
      %v521 = vld [vmem:[%s514 + $0x24] sm:$0xff]
      %v522 = vld [vmem:[%s514 + $0x2c] sm:$0xf]
      %v523 = vld [vmem:[%s514 + $0x30] sm:$0xff]
      %v524 = vld [vmem:[%s514 + $0x38] sm:$0xf]
      %v525 = vld [vmem:[%s514 + $0x3c] sm:$0xff]
      %v526 = vld [vmem:[%s514 + $0x44] sm:$0xf]
      %v527 = vld [vmem:[%s514 + $0x48] sm:$0xff]
      %v528 = vld [vmem:[%s514 + $0x50] sm:$0xf]
      %v529 = vld [vmem:[%s514 + $0x54] sm:$0xff]
      %v530 = vld [vmem:[%s514 + $0x5c] sm:$0xf]
      %s531 = scalar_lea.vmem %s4, 192
      %v532 = vld [vmem:[%s531] sm:$0xf]
      %v533 = vld [vmem:[%s531 + $0x4] sm:$0xf]
      %v534 = vld [vmem:[%s531 + $0x8] sm:$0xf]
      %v535 = vld [vmem:[%s531 + $0xc] sm:$0xf]
      %v536 = vld [vmem:[%s531 + $0x10] sm:$0xf]
      %v537 = vld [vmem:[%s531 + $0x14] sm:$0xf]
      %v538 = vld [vmem:[%s531 + $0x18] sm:$0xf]
      %v539 = vld [vmem:[%s531 + $0x1c] sm:$0xf]
      %v540 = vld [vmem:[%s531 + $0x20] sm:$0xf]
      %v541 = vld [vmem:[%s531 + $0x24] sm:$0xf]
      %v542 = vld [vmem:[%s531 + $0x28] sm:$0xf]
      %v543 = vld [vmem:[%s531 + $0x2c] sm:$0xf]
      %v544 = vld [vmem:[%s531 + $0x30] sm:$0xf]
      %v545 = vld [vmem:[%s531 + $0x34] sm:$0xf]
      %v546 = vld [vmem:[%s531 + $0x38] sm:$0xf]
      %v547 = vld [vmem:[%s531 + $0x3c] sm:$0xf]
      %v548 = vld [vmem:[%s531 + $0x40] sm:$0xf]
      %v549 = vld [vmem:[%s531 + $0x44] sm:$0xf]
      %v550 = vld [vmem:[%s531 + $0x48] sm:$0xf]
      %v551 = vld [vmem:[%s531 + $0x4c] sm:$0xf]
      %v552 = vld [vmem:[%s531 + $0x50] sm:$0xf]
      %v553 = vld [vmem:[%s531 + $0x54] sm:$0xf]
      %v554 = vld [vmem:[%s531 + $0x58] sm:$0xf]
      %v555 = vld [vmem:[%s531 + $0x5c] sm:$0xf]
      %v556 = vld [vmem:[%s531 + $0x60] sm:$0xf]
      %v557 = vld [vmem:[%s531 + $0x64] sm:$0xf]
      %v558 = vld [vmem:[%s531 + $0x68] sm:$0xf]
      %v559 = vld [vmem:[%s531 + $0x6c] sm:$0xf]
      %v560 = vld [vmem:[%s531 + $0x70] sm:$0xf]
      %v561 = vld [vmem:[%s531 + $0x74] sm:$0xf]
      %v562 = vld [vmem:[%s531 + $0x78] sm:$0xf]
      %v563 = vld [vmem:[%s531 + $0x7c] sm:$0xf]
      %v564 = vld [vmem:[%s531 + $0x80] sm:$0xf]
      %v565 = vld [vmem:[%s531 + $0x84] sm:$0xf]
      %v566 = vld [vmem:[%s531 + $0x88] sm:$0xf]
      %v567 = vld [vmem:[%s531 + $0x8c] sm:$0xf]
      %v568 = vld [vmem:[%s531 + $0x90] sm:$0xf]
      %v569 = vld [vmem:[%s531 + $0x94] sm:$0xf]
      %v570 = vld [vmem:[%s531 + $0x98] sm:$0xf]
      %v571 = vld [vmem:[%s531 + $0x9c] sm:$0xf]
      %v572 = vld [vmem:[%s531 + $0xa0] sm:$0xf]
      %v573 = vld [vmem:[%s531 + $0xa4] sm:$0xf]
      %v574 = vld [vmem:[%s531 + $0xa8] sm:$0xf]
      %v575 = vld [vmem:[%s531 + $0xac] sm:$0xf]
      %v576 = vld [vmem:[%s531 + $0xb0] sm:$0xf]
      %v577 = vld [vmem:[%s531 + $0xb4] sm:$0xf]
      %v578 = vld [vmem:[%s531 + $0xb8] sm:$0xf]
      %v579 = vld [vmem:[%s531 + $0xbc] sm:$0xf]
      %v596 = vunpack.c.l.b16 %v515
      %v597 = vunpack.c.h.b16 %v515
      %v598 = vunpack.c.l.b16 %v516
      %v599 = vunpack.c.l.b16 %v517
      %v600 = vunpack.c.h.b16 %v517
      %v601 = vunpack.c.l.b16 %v518
      %v602 = vunpack.c.l.b16 %v519
      %v603 = vunpack.c.h.b16 %v519
      %v604 = vunpack.c.l.b16 %v520
      %v605 = vunpack.c.l.b16 %v521
      %v606 = vunpack.c.h.b16 %v521
      %v607 = vunpack.c.l.b16 %v522
      %v608 = vunpack.c.l.b16 %v523
      %v609 = vunpack.c.h.b16 %v523
      %v610 = vunpack.c.l.b16 %v524
      %v611 = vunpack.c.l.b16 %v525
      %v612 = vunpack.c.h.b16 %v525
      %v613 = vunpack.c.l.b16 %v526
      %v614 = vunpack.c.l.b16 %v527
      %v615 = vunpack.c.h.b16 %v527
      %v616 = vunpack.c.l.b16 %v528
      %v617 = vunpack.c.l.b16 %v529
      %v618 = vunpack.c.h.b16 %v529
      %v619 = vunpack.c.l.b16 %v530
      %v620 = vpack.c.b16 %v599, %v596
      %v621 = vpack.c.b16 %v600, %v597
      %v622 = vpack.c.b16 %v601, %v598
      %v623 = vpack.c.b16 %v605, %v602
      %v624 = vpack.c.b16 %v606, %v603
      %v625 = vpack.c.b16 %v607, %v604
      %v626 = vpack.c.b16 %v611, %v608
      %v627 = vpack.c.b16 %v612, %v609
      %v628 = vpack.c.b16 %v613, %v610
      %v629 = vpack.c.b16 %v617, %v614
      %v630 = vpack.c.b16 %v618, %v615
      %v631 = vpack.c.b16 %v619, %v616
      %v692 = vunpack.c.l.b16 %v532
      %v693 = vunpack.c.l.b16 %v533
      %v694 = vunpack.c.l.b16 %v534
      %v695 = vunpack.c.l.b16 %v535
      %v696 = vunpack.c.l.b16 %v536
      %v697 = vunpack.c.l.b16 %v537
      %v698 = vunpack.c.l.b16 %v538
      %v699 = vunpack.c.l.b16 %v539
      %v700 = vunpack.c.l.b16 %v540
      %v701 = vunpack.c.l.b16 %v541
      %v702 = vunpack.c.l.b16 %v542
      %v703 = vunpack.c.l.b16 %v543
      %v704 = vunpack.c.l.b16 %v544
      %v705 = vunpack.c.l.b16 %v545
      %v706 = vunpack.c.l.b16 %v546
      %v707 = vunpack.c.l.b16 %v547
      %v708 = vunpack.c.l.b16 %v548
      %v709 = vunpack.c.l.b16 %v549
      %v710 = vunpack.c.l.b16 %v550
      %v711 = vunpack.c.l.b16 %v551
      %v712 = vunpack.c.l.b16 %v552
      %v713 = vunpack.c.l.b16 %v553
      %v714 = vunpack.c.l.b16 %v554
      %v715 = vunpack.c.l.b16 %v555
      %v716 = vunpack.c.l.b16 %v556
      %v717 = vunpack.c.l.b16 %v557
      %v718 = vunpack.c.l.b16 %v558
      %v719 = vunpack.c.l.b16 %v559
      %v720 = vunpack.c.l.b16 %v560
      %v721 = vunpack.c.l.b16 %v561
      %v722 = vunpack.c.l.b16 %v562
      %v723 = vunpack.c.l.b16 %v563
      %v724 = vunpack.c.l.b16 %v564
      %v725 = vunpack.c.l.b16 %v565
      %v726 = vunpack.c.l.b16 %v566
      %v727 = vunpack.c.l.b16 %v567
      %v728 = vunpack.c.l.b16 %v568
      %v729 = vunpack.c.l.b16 %v569
      %v730 = vunpack.c.l.b16 %v570
      %v731 = vunpack.c.l.b16 %v571
      %v732 = vunpack.c.l.b16 %v572
      %v733 = vunpack.c.l.b16 %v573
      %v734 = vunpack.c.l.b16 %v574
      %v735 = vunpack.c.l.b16 %v575
      %v736 = vunpack.c.l.b16 %v576
      %v737 = vunpack.c.l.b16 %v577
      %v738 = vunpack.c.l.b16 %v578
      %v739 = vunpack.c.l.b16 %v579
      %v740 = vpack.c.b16 %v693, %v692
      %v741 = vpack.c.b16 %v695, %v694
      %v742 = vpack.c.b16 %v697, %v696
      %v743 = vpack.c.b16 %v699, %v698
      %v744 = vpack.c.b16 %v701, %v700
      %v745 = vpack.c.b16 %v703, %v702
      %v746 = vpack.c.b16 %v705, %v704
      %v747 = vpack.c.b16 %v707, %v706
      %v748 = vpack.c.b16 %v709, %v708
      %v749 = vpack.c.b16 %v711, %v710
      %v750 = vpack.c.b16 %v713, %v712
      %v751 = vpack.c.b16 %v715, %v714
      %v752 = vpack.c.b16 %v717, %v716
      %v753 = vpack.c.b16 %v719, %v718
      %v754 = vpack.c.b16 %v721, %v720
      %v755 = vpack.c.b16 %v723, %v722
      %v756 = vpack.c.b16 %v725, %v724
      %v757 = vpack.c.b16 %v727, %v726
      %v758 = vpack.c.b16 %v729, %v728
      %v759 = vpack.c.b16 %v731, %v730
      %v760 = vpack.c.b16 %v733, %v732
      %v761 = vpack.c.b16 %v735, %v734
      %v762 = vpack.c.b16 %v737, %v736
      %v763 = vpack.c.b16 %v739, %v738
      %788 = vmatprep.subr.bf16.mxu0 0
      %789 = vmatpush1.bf16.msra.mxu0 %v747
      %790 = vmatprep.subr.bf16.mxu0 0
      %791 = vmatpush1.bf16.msra.mxu0 %v746
      %792 = vmatprep.subr.bf16.mxu0 0
      %793 = vmatpush1.bf16.msra.mxu0 %v745
      %794 = vmatprep.subr.bf16.mxu0 0
      %795 = vmatpush1.bf16.msra.mxu0 %v744
      %796 = vmatprep.subr.bf16.mxu0 0
      %797 = vmatpush1.bf16.msra.mxu0 %v743
      %798 = vmatprep.subr.bf16.mxu0 0
      %799 = vmatpush1.bf16.msra.mxu0 %v742
      %800 = vmatprep.subr.bf16.mxu0 0
      %801 = vmatpush1.bf16.msra.mxu0 %v741
      %802 = vmatprep.subr.bf16.mxu0 0
      %803 = vmatpush1.bf16.msra.mxu0 %v740
      %804 = vmatprep.subr.bf16.mxu0 0
      %805 = vmatpush2.bf16.msra.mxu0 %v755
      %806 = vmatprep.subr.bf16.mxu0 0
      %807 = vmatpush2.bf16.msra.mxu0 %v754
      %808 = vmatprep.subr.bf16.mxu0 0
      %809 = vmatpush2.bf16.msra.mxu0 %v753
      %810 = vmatprep.subr.bf16.mxu0 0
      %811 = vmatpush2.bf16.msra.mxu0 %v752
      %812 = vmatprep.subr.bf16.mxu0 0
      %813 = vmatpush2.bf16.msra.mxu0 %v751
      %814 = vmatprep.subr.bf16.mxu0 0
      %815 = vmatpush2.bf16.msra.mxu0 %v750
      %816 = vmatprep.subr.bf16.mxu0 0
      %817 = vmatpush2.bf16.msra.mxu0 %v749
      %818 = vmatprep.subr.bf16.mxu0 0
      %819 = vmatpush2.bf16.msra.mxu0 %v748
      %820 = vmatprep.mubr.bf16.mxu0 %v621
      %821 = vmatmul.mubr.bf16.gmra.mxu0 %v620
      %v822 = vpop.f32.mrf.mxu0
      %v823 = vadd.f32 0.0, %v822
      %v824 = vpop.f32.mrf.mxu0
      %v825 = vpop.f32.mrf.mxu0
      %v826 = vadd.f32 0.0, %v825
      %v827 = vpop.f32.mrf.mxu0
      %828 = vmatprep.mubr.bf16.mxu0 %v624
      %829 = vmatmul.mubr.bf16.gmra.mxu0 %v623
      %v830 = vpop.f32.mrf.mxu0
      %v831 = vadd.f32 0.0, %v830
      %v832 = vpop.f32.mrf.mxu0
      %v833 = vpop.f32.mrf.mxu0
      %v834 = vadd.f32 0.0, %v833
      %v835 = vpop.f32.mrf.mxu0
      %836 = vmatprep.mubr.bf16.mxu0 %v627
      %837 = vmatmul.mubr.bf16.gmra.mxu0 %v626
      %v838 = vpop.f32.mrf.mxu0
      %v839 = vadd.f32 0.0, %v838
      %v840 = vpop.f32.mrf.mxu0
      %v841 = vpop.f32.mrf.mxu0
      %v842 = vadd.f32 0.0, %v841
      %v843 = vpop.f32.mrf.mxu0
      %844 = vmatprep.mubr.bf16.mxu0 %v630
      %845 = vmatmul.mubr.bf16.gmra.mxu0 %v629
      %v846 = vpop.f32.mrf.mxu0
      %v847 = vadd.f32 0.0, %v846
      %v848 = vpop.f32.mrf.mxu0
      %v849 = vpop.f32.mrf.mxu0
      %v850 = vadd.f32 0.0, %v849
      %v851 = vpop.f32.mrf.mxu0
      %852 = vdwg.mxu0
      %853 = vmatprep.subr.bf16.mxu0 0
      %854 = vmatpush1.bf16.msra.mxu0 %v763
      %855 = vmatprep.subr.bf16.mxu0 0
      %856 = vmatpush1.bf16.msra.mxu0 %v762
      %857 = vmatprep.subr.bf16.mxu0 0
      %858 = vmatpush1.bf16.msra.mxu0 %v761
      %859 = vmatprep.subr.bf16.mxu0 0
      %860 = vmatpush1.bf16.msra.mxu0 %v760
      %861 = vmatprep.subr.bf16.mxu0 0
      %862 = vmatpush1.bf16.msra.mxu0 %v759
      %863 = vmatprep.subr.bf16.mxu0 0
      %864 = vmatpush1.bf16.msra.mxu0 %v758
      %865 = vmatprep.subr.bf16.mxu0 0
      %866 = vmatpush1.bf16.msra.mxu0 %v757
      %867 = vmatprep.subr.bf16.mxu0 0
      %868 = vmatpush1.bf16.msra.mxu0 %v756
      %869 = vmatprep.subr.bf16.mxu0 0
      %870 = vmatpush2.bf16.msra.mxu0 0
      %871 = vmatprep.subr.bf16.mxu0 0
      %872 = vmatpush2.bf16.msra.mxu0 0
      %873 = vmatprep.subr.bf16.mxu0 0
      %874 = vmatpush2.bf16.msra.mxu0 0
      %875 = vmatprep.subr.bf16.mxu0 0
      %876 = vmatpush2.bf16.msra.mxu0 0
      %877 = vmatprep.subr.bf16.mxu0 0
      %878 = vmatpush2.bf16.msra.mxu0 0
      %879 = vmatprep.subr.bf16.mxu0 0
      %880 = vmatpush2.bf16.msra.mxu0 0
      %881 = vmatprep.subr.bf16.mxu0 0
      %882 = vmatpush2.bf16.msra.mxu0 0
      %883 = vmatprep.subr.bf16.mxu0 0
      %884 = vmatpush2.bf16.msra.mxu0 0
      %885 = vmatprep.mubr.bf16.mxu0 0
      %886 = vmatmul.mubr.bf16.gmra.mxu0 %v622
      %v887 = vpop.f32.mrf.mxu0
      %v888 = vadd.f32 %v823, %v887
      %v889 = vpop.f32.mrf.mxu0
      %v890 = vpop.f32.mrf.mxu0
      %v891 = vadd.f32 %v826, %v890
      %v892 = vpop.f32.mrf.mxu0
      %893 = vmatprep.mubr.bf16.mxu0 0
      %894 = vmatmul.mubr.bf16.gmra.mxu0 %v625
      %v895 = vpop.f32.mrf.mxu0
      %v896 = vadd.f32 %v831, %v895
      %v897 = vpop.f32.mrf.mxu0
      %v898 = vpop.f32.mrf.mxu0
      %v899 = vadd.f32 %v834, %v898
      %v900 = vpop.f32.mrf.mxu0
      %901 = vmatprep.mubr.bf16.mxu0 0
      %902 = vmatmul.mubr.bf16.gmra.mxu0 %v628
      %v903 = vpop.f32.mrf.mxu0
      %v904 = vadd.f32 %v839, %v903
      %v905 = vpop.f32.mrf.mxu0
      %v906 = vpop.f32.mrf.mxu0
      %v907 = vadd.f32 %v842, %v906
      %v908 = vpop.f32.mrf.mxu0
      %909 = vmatprep.mubr.bf16.mxu0 0
      %910 = vmatmul.mubr.bf16.gmra.mxu0 %v631
      %v911 = vpop.f32.mrf.mxu0
      %v912 = vadd.f32 %v847, %v911
      %v913 = vpop.f32.mrf.mxu0
      %v914 = vpop.f32.mrf.mxu0
      %v915 = vadd.f32 %v850, %v914
      %v916 = vpop.f32.mrf.mxu0
      %917 = vdwg.mxu0
      %v934 = vunpack.c.l.b16 %v450
      %v935 = vunpack.c.h.b16 %v450
      %v936 = vunpack.c.l.b16 %v451
      %v937 = vunpack.c.l.b16 %v452
      %v938 = vunpack.c.h.b16 %v452
      %v939 = vunpack.c.l.b16 %v453
      %v940 = vunpack.c.l.b16 %v454
      %v941 = vunpack.c.h.b16 %v454
      %v942 = vunpack.c.l.b16 %v455
      %v943 = vunpack.c.l.b16 %v456
      %v944 = vunpack.c.h.b16 %v456
      %v945 = vunpack.c.l.b16 %v457
      %v946 = vunpack.c.l.b16 %v458
      %v947 = vunpack.c.h.b16 %v458
      %v948 = vunpack.c.l.b16 %v459
      %v949 = vunpack.c.l.b16 %v460
      %v950 = vunpack.c.h.b16 %v460
      %v951 = vunpack.c.l.b16 %v461
      %v952 = vunpack.c.l.b16 %v462
      %v953 = vunpack.c.h.b16 %v462
      %v954 = vunpack.c.l.b16 %v463
      %v955 = vunpack.c.l.b16 %v464
      %v956 = vunpack.c.h.b16 %v464
      %v957 = vunpack.c.l.b16 %v465
      %v958 = vpack.c.b16 %v937, %v934
      %v959 = vpack.c.b16 %v938, %v935
      %v960 = vpack.c.b16 %v939, %v936
      %v961 = vpack.c.b16 %v943, %v940
      %v962 = vpack.c.b16 %v944, %v941
      %v963 = vpack.c.b16 %v945, %v942
      %v964 = vpack.c.b16 %v949, %v946
      %v965 = vpack.c.b16 %v950, %v947
      %v966 = vpack.c.b16 %v951, %v948
      %v967 = vpack.c.b16 %v955, %v952
      %v968 = vpack.c.b16 %v956, %v953
      %v969 = vpack.c.b16 %v957, %v954
      %v1030 = vunpack.c.l.b16 %v466
      %v1031 = vunpack.c.l.b16 %v467
      %v1032 = vunpack.c.l.b16 %v468
      %v1033 = vunpack.c.l.b16 %v469
      %v1034 = vunpack.c.l.b16 %v470
      %v1035 = vunpack.c.l.b16 %v471
      %v1036 = vunpack.c.l.b16 %v472
      %v1037 = vunpack.c.l.b16 %v473
      %v1038 = vunpack.c.l.b16 %v474
      %v1039 = vunpack.c.l.b16 %v475
      %v1040 = vunpack.c.l.b16 %v476
      %v1041 = vunpack.c.l.b16 %v477
      %v1042 = vunpack.c.l.b16 %v478
      %v1043 = vunpack.c.l.b16 %v479
      %v1044 = vunpack.c.l.b16 %v480
      %v1045 = vunpack.c.l.b16 %v481
      %v1046 = vunpack.c.l.b16 %v482
      %v1047 = vunpack.c.l.b16 %v483
      %v1048 = vunpack.c.l.b16 %v484
      %v1049 = vunpack.c.l.b16 %v485
      %v1050 = vunpack.c.l.b16 %v486
      %v1051 = vunpack.c.l.b16 %v487
      %v1052 = vunpack.c.l.b16 %v488
      %v1053 = vunpack.c.l.b16 %v489
      %v1054 = vunpack.c.l.b16 %v490
      %v1055 = vunpack.c.l.b16 %v491
      %v1056 = vunpack.c.l.b16 %v492
      %v1057 = vunpack.c.l.b16 %v493
      %v1058 = vunpack.c.l.b16 %v494
      %v1059 = vunpack.c.l.b16 %v495
      %v1060 = vunpack.c.l.b16 %v496
      %v1061 = vunpack.c.l.b16 %v497
      %v1062 = vunpack.c.l.b16 %v498
      %v1063 = vunpack.c.l.b16 %v499
      %v1064 = vunpack.c.l.b16 %v500
      %v1065 = vunpack.c.l.b16 %v501
      %v1066 = vunpack.c.l.b16 %v502
      %v1067 = vunpack.c.l.b16 %v503
      %v1068 = vunpack.c.l.b16 %v504
      %v1069 = vunpack.c.l.b16 %v505
      %v1070 = vunpack.c.l.b16 %v506
      %v1071 = vunpack.c.l.b16 %v507
      %v1072 = vunpack.c.l.b16 %v508
      %v1073 = vunpack.c.l.b16 %v509
      %v1074 = vunpack.c.l.b16 %v510
      %v1075 = vunpack.c.l.b16 %v511
      %v1076 = vunpack.c.l.b16 %v512
      %v1077 = vunpack.c.l.b16 %v513
      %v1078 = vpack.c.b16 %v1031, %v1030
      %v1079 = vpack.c.b16 %v1033, %v1032
      %v1080 = vpack.c.b16 %v1035, %v1034
      %v1081 = vpack.c.b16 %v1037, %v1036
      %v1082 = vpack.c.b16 %v1039, %v1038
      %v1083 = vpack.c.b16 %v1041, %v1040
      %v1084 = vpack.c.b16 %v1043, %v1042
      %v1085 = vpack.c.b16 %v1045, %v1044
      %v1086 = vpack.c.b16 %v1047, %v1046
      %v1087 = vpack.c.b16 %v1049, %v1048
      %v1088 = vpack.c.b16 %v1051, %v1050
      %v1089 = vpack.c.b16 %v1053, %v1052
      %v1090 = vpack.c.b16 %v1055, %v1054
      %v1091 = vpack.c.b16 %v1057, %v1056
      %v1092 = vpack.c.b16 %v1059, %v1058
      %v1093 = vpack.c.b16 %v1061, %v1060
      %v1094 = vpack.c.b16 %v1063, %v1062
      %v1095 = vpack.c.b16 %v1065, %v1064
      %v1096 = vpack.c.b16 %v1067, %v1066
      %v1097 = vpack.c.b16 %v1069, %v1068
      %v1098 = vpack.c.b16 %v1071, %v1070
      %v1099 = vpack.c.b16 %v1073, %v1072
      %v1100 = vpack.c.b16 %v1075, %v1074
      %v1101 = vpack.c.b16 %v1077, %v1076
      %1126 = vmatprep.subr.bf16.mxu0 0
      %1127 = vmatpush1.bf16.msra.mxu0 %v1085
      %1128 = vmatprep.subr.bf16.mxu0 0
      %1129 = vmatpush1.bf16.msra.mxu0 %v1084
      %1130 = vmatprep.subr.bf16.mxu0 0
      %1131 = vmatpush1.bf16.msra.mxu0 %v1083
      %1132 = vmatprep.subr.bf16.mxu0 0
      %1133 = vmatpush1.bf16.msra.mxu0 %v1082
      %1134 = vmatprep.subr.bf16.mxu0 0
      %1135 = vmatpush1.bf16.msra.mxu0 %v1081
      %1136 = vmatprep.subr.bf16.mxu0 0
      %1137 = vmatpush1.bf16.msra.mxu0 %v1080
      %1138 = vmatprep.subr.bf16.mxu0 0
      %1139 = vmatpush1.bf16.msra.mxu0 %v1079
      %1140 = vmatprep.subr.bf16.mxu0 0
      %1141 = vmatpush1.bf16.msra.mxu0 %v1078
      %1142 = vmatprep.subr.bf16.mxu0 0
      %1143 = vmatpush2.bf16.msra.mxu0 %v1093
      %1144 = vmatprep.subr.bf16.mxu0 0
      %1145 = vmatpush2.bf16.msra.mxu0 %v1092
      %1146 = vmatprep.subr.bf16.mxu0 0
      %1147 = vmatpush2.bf16.msra.mxu0 %v1091
      %1148 = vmatprep.subr.bf16.mxu0 0
      %1149 = vmatpush2.bf16.msra.mxu0 %v1090
      %1150 = vmatprep.subr.bf16.mxu0 0
      %1151 = vmatpush2.bf16.msra.mxu0 %v1089
      %1152 = vmatprep.subr.bf16.mxu0 0
      %1153 = vmatpush2.bf16.msra.mxu0 %v1088
      %1154 = vmatprep.subr.bf16.mxu0 0
      %1155 = vmatpush2.bf16.msra.mxu0 %v1087
      %1156 = vmatprep.subr.bf16.mxu0 0
      %1157 = vmatpush2.bf16.msra.mxu0 %v1086
      %1158 = vmatprep.mubr.bf16.mxu0 %v959
      %1159 = vmatmul.mubr.bf16.gmra.mxu0 %v958
      %v1160 = vpop.f32.mrf.mxu0
      %v1161 = vadd.f32 %v888, %v1160
      %v1162 = vpop.f32.mrf.mxu0
      %v1163 = vpop.f32.mrf.mxu0
      %v1164 = vadd.f32 %v891, %v1163
      %v1165 = vpop.f32.mrf.mxu0
      %1166 = vmatprep.mubr.bf16.mxu0 %v962
      %1167 = vmatmul.mubr.bf16.gmra.mxu0 %v961
      %v1168 = vpop.f32.mrf.mxu0
      %v1169 = vadd.f32 %v896, %v1168
      %v1170 = vpop.f32.mrf.mxu0
      %v1171 = vpop.f32.mrf.mxu0
      %v1172 = vadd.f32 %v899, %v1171
      %v1173 = vpop.f32.mrf.mxu0
      %1174 = vmatprep.mubr.bf16.mxu0 %v965
      %1175 = vmatmul.mubr.bf16.gmra.mxu0 %v964
      %v1176 = vpop.f32.mrf.mxu0
      %v1177 = vadd.f32 %v904, %v1176
      %v1178 = vpop.f32.mrf.mxu0
      %v1179 = vpop.f32.mrf.mxu0
      %v1180 = vadd.f32 %v907, %v1179
      %v1181 = vpop.f32.mrf.mxu0
      %1182 = vmatprep.mubr.bf16.mxu0 %v968
      %1183 = vmatmul.mubr.bf16.gmra.mxu0 %v967
      %v1184 = vpop.f32.mrf.mxu0
      %v1185 = vadd.f32 %v912, %v1184
      %v1186 = vpop.f32.mrf.mxu0
      %v1187 = vpop.f32.mrf.mxu0
      %v1188 = vadd.f32 %v915, %v1187
      %v1189 = vpop.f32.mrf.mxu0
      %1190 = vdwg.mxu0
      %1191 = vmatprep.subr.bf16.mxu0 0
      %1192 = vmatpush1.bf16.msra.mxu0 %v1101
      %1193 = vmatprep.subr.bf16.mxu0 0
      %1194 = vmatpush1.bf16.msra.mxu0 %v1100
      %1195 = vmatprep.subr.bf16.mxu0 0
      %1196 = vmatpush1.bf16.msra.mxu0 %v1099
      %1197 = vmatprep.subr.bf16.mxu0 0
      %1198 = vmatpush1.bf16.msra.mxu0 %v1098
      %1199 = vmatprep.subr.bf16.mxu0 0
      %1200 = vmatpush1.bf16.msra.mxu0 %v1097
      %1201 = vmatprep.subr.bf16.mxu0 0
      %1202 = vmatpush1.bf16.msra.mxu0 %v1096
      %1203 = vmatprep.subr.bf16.mxu0 0
      %1204 = vmatpush1.bf16.msra.mxu0 %v1095
      %1205 = vmatprep.subr.bf16.mxu0 0
      %1206 = vmatpush1.bf16.msra.mxu0 %v1094
      %1207 = vmatprep.subr.bf16.mxu0 0
      %1208 = vmatpush2.bf16.msra.mxu0 0
      %1209 = vmatprep.subr.bf16.mxu0 0
      %1210 = vmatpush2.bf16.msra.mxu0 0
      %1211 = vmatprep.subr.bf16.mxu0 0
      %1212 = vmatpush2.bf16.msra.mxu0 0
      %1213 = vmatprep.subr.bf16.mxu0 0
      %1214 = vmatpush2.bf16.msra.mxu0 0
      %1215 = vmatprep.subr.bf16.mxu0 0
      %1216 = vmatpush2.bf16.msra.mxu0 0
      %1217 = vmatprep.subr.bf16.mxu0 0
      %1218 = vmatpush2.bf16.msra.mxu0 0
      %1219 = vmatprep.subr.bf16.mxu0 0
      %1220 = vmatpush2.bf16.msra.mxu0 0
      %1221 = vmatprep.subr.bf16.mxu0 0
      %1222 = vmatpush2.bf16.msra.mxu0 0
      %1223 = vmatprep.mubr.bf16.mxu0 0
      %1224 = vmatmul.mubr.bf16.gmra.mxu0 %v960
      %v1225 = vpop.f32.mrf.mxu0
      %v1226 = vadd.f32 %v1161, %v1225
      %v1227 = vpop.f32.mrf.mxu0
      %v1228 = vpop.f32.mrf.mxu0
      %v1229 = vadd.f32 %v1164, %v1228
      %v1230 = vpop.f32.mrf.mxu0
      %1231 = vmatprep.mubr.bf16.mxu0 0
      %1232 = vmatmul.mubr.bf16.gmra.mxu0 %v963
      %v1233 = vpop.f32.mrf.mxu0
      %v1234 = vadd.f32 %v1169, %v1233
      %v1235 = vpop.f32.mrf.mxu0
      %v1236 = vpop.f32.mrf.mxu0
      %v1237 = vadd.f32 %v1172, %v1236
      %v1238 = vpop.f32.mrf.mxu0
      %1239 = vmatprep.mubr.bf16.mxu0 0
      %1240 = vmatmul.mubr.bf16.gmra.mxu0 %v966
      %v1241 = vpop.f32.mrf.mxu0
      %v1242 = vadd.f32 %v1177, %v1241
      %v1243 = vpop.f32.mrf.mxu0
      %v1244 = vpop.f32.mrf.mxu0
      %v1245 = vadd.f32 %v1180, %v1244
      %v1246 = vpop.f32.mrf.mxu0
      %1247 = vmatprep.mubr.bf16.mxu0 0
      %1248 = vmatmul.mubr.bf16.gmra.mxu0 %v969
      %v1249 = vpop.f32.mrf.mxu0
      %v1250 = vadd.f32 %v1185, %v1249
      %v1251 = vpop.f32.mrf.mxu0
      %v1252 = vpop.f32.mrf.mxu0
      %v1253 = vadd.f32 %v1188, %v1252
      %v1254 = vpop.f32.mrf.mxu0
      %1255 = vdwg.mxu0
      %s1256 = scalar_lea.vmem [#allocation3], 24
      %v1257 = vld [vmem:[%s1256] sm:$0xff]
      %v1258 = vld [vmem:[%s1256 + $0x8] sm:$0xf]
      %v1259 = vld [vmem:[%s1256 + $0xc] sm:$0xff]
      %v1260 = vld [vmem:[%s1256 + $0x14] sm:$0xf]
      %v1261 = vld [vmem:[%s1256 + $0x18] sm:$0xff]
      %v1262 = vld [vmem:[%s1256 + $0x20] sm:$0xf]
      %v1263 = vld [vmem:[%s1256 + $0x24] sm:$0xff]
      %v1264 = vld [vmem:[%s1256 + $0x2c] sm:$0xf]
      %v1265 = vld [vmem:[%s1256 + $0x30] sm:$0xff]
      %v1266 = vld [vmem:[%s1256 + $0x38] sm:$0xf]
      %v1267 = vld [vmem:[%s1256 + $0x3c] sm:$0xff]
      %v1268 = vld [vmem:[%s1256 + $0x44] sm:$0xf]
      %v1269 = vld [vmem:[%s1256 + $0x48] sm:$0xff]
      %v1270 = vld [vmem:[%s1256 + $0x50] sm:$0xf]
      %v1271 = vld [vmem:[%s1256 + $0x54] sm:$0xff]
      %v1272 = vld [vmem:[%s1256 + $0x5c] sm:$0xf]
      %s1273 = scalar_lea.vmem %s4, 384
      %v1274 = vld [vmem:[%s1273] sm:$0xf]
      %v1275 = vld [vmem:[%s1273 + $0x4] sm:$0xf]
      %v1276 = vld [vmem:[%s1273 + $0x8] sm:$0xf]
      %v1277 = vld [vmem:[%s1273 + $0xc] sm:$0xf]
      %v1278 = vld [vmem:[%s1273 + $0x10] sm:$0xf]
      %v1279 = vld [vmem:[%s1273 + $0x14] sm:$0xf]
      %v1280 = vld [vmem:[%s1273 + $0x18] sm:$0xf]
      %v1281 = vld [vmem:[%s1273 + $0x1c] sm:$0xf]
      %v1282 = vld [vmem:[%s1273 + $0x20] sm:$0xf]
      %v1283 = vld [vmem:[%s1273 + $0x24] sm:$0xf]
      %v1284 = vld [vmem:[%s1273 + $0x28] sm:$0xf]
      %v1285 = vld [vmem:[%s1273 + $0x2c] sm:$0xf]
      %v1286 = vld [vmem:[%s1273 + $0x30] sm:$0xf]
      %v1287 = vld [vmem:[%s1273 + $0x34] sm:$0xf]
      %v1288 = vld [vmem:[%s1273 + $0x38] sm:$0xf]
      %v1289 = vld [vmem:[%s1273 + $0x3c] sm:$0xf]
      %v1290 = vld [vmem:[%s1273 + $0x40] sm:$0xf]
      %v1291 = vld [vmem:[%s1273 + $0x44] sm:$0xf]
      %v1292 = vld [vmem:[%s1273 + $0x48] sm:$0xf]
      %v1293 = vld [vmem:[%s1273 + $0x4c] sm:$0xf]
      %v1294 = vld [vmem:[%s1273 + $0x50] sm:$0xf]
      %v1295 = vld [vmem:[%s1273 + $0x54] sm:$0xf]
      %v1296 = vld [vmem:[%s1273 + $0x58] sm:$0xf]
      %v1297 = vld [vmem:[%s1273 + $0x5c] sm:$0xf]
      %v1298 = vld [vmem:[%s1273 + $0x60] sm:$0xf]
      %v1299 = vld [vmem:[%s1273 + $0x64] sm:$0xf]
      %v1300 = vld [vmem:[%s1273 + $0x68] sm:$0xf]
      %v1301 = vld [vmem:[%s1273 + $0x6c] sm:$0xf]
      %v1302 = vld [vmem:[%s1273 + $0x70] sm:$0xf]
      %v1303 = vld [vmem:[%s1273 + $0x74] sm:$0xf]
      %v1304 = vld [vmem:[%s1273 + $0x78] sm:$0xf]
      %v1305 = vld [vmem:[%s1273 + $0x7c] sm:$0xf]
      %v1306 = vld [vmem:[%s1273 + $0x80] sm:$0xf]
      %v1307 = vld [vmem:[%s1273 + $0x84] sm:$0xf]
      %v1308 = vld [vmem:[%s1273 + $0x88] sm:$0xf]
      %v1309 = vld [vmem:[%s1273 + $0x8c] sm:$0xf]
      %v1310 = vld [vmem:[%s1273 + $0x90] sm:$0xf]
      %v1311 = vld [vmem:[%s1273 + $0x94] sm:$0xf]
      %v1312 = vld [vmem:[%s1273 + $0x98] sm:$0xf]
      %v1313 = vld [vmem:[%s1273 + $0x9c] sm:$0xf]
      %v1314 = vld [vmem:[%s1273 + $0xa0] sm:$0xf]
      %v1315 = vld [vmem:[%s1273 + $0xa4] sm:$0xf]
      %v1316 = vld [vmem:[%s1273 + $0xa8] sm:$0xf]
      %v1317 = vld [vmem:[%s1273 + $0xac] sm:$0xf]
      %v1318 = vld [vmem:[%s1273 + $0xb0] sm:$0xf]
      %v1319 = vld [vmem:[%s1273 + $0xb4] sm:$0xf]
      %v1320 = vld [vmem:[%s1273 + $0xb8] sm:$0xf]
      %v1321 = vld [vmem:[%s1273 + $0xbc] sm:$0xf]
      %v1338 = vunpack.c.l.b16 %v1257
      %v1339 = vunpack.c.h.b16 %v1257
      %v1340 = vunpack.c.l.b16 %v1258
      %v1341 = vunpack.c.l.b16 %v1259
      %v1342 = vunpack.c.h.b16 %v1259
      %v1343 = vunpack.c.l.b16 %v1260
      %v1344 = vunpack.c.l.b16 %v1261
      %v1345 = vunpack.c.h.b16 %v1261
      %v1346 = vunpack.c.l.b16 %v1262
      %v1347 = vunpack.c.l.b16 %v1263
      %v1348 = vunpack.c.h.b16 %v1263
      %v1349 = vunpack.c.l.b16 %v1264
      %v1350 = vunpack.c.l.b16 %v1265
      %v1351 = vunpack.c.h.b16 %v1265
      %v1352 = vunpack.c.l.b16 %v1266
      %v1353 = vunpack.c.l.b16 %v1267
      %v1354 = vunpack.c.h.b16 %v1267
      %v1355 = vunpack.c.l.b16 %v1268
      %v1356 = vunpack.c.l.b16 %v1269
      %v1357 = vunpack.c.h.b16 %v1269
      %v1358 = vunpack.c.l.b16 %v1270
      %v1359 = vunpack.c.l.b16 %v1271
      %v1360 = vunpack.c.h.b16 %v1271
      %v1361 = vunpack.c.l.b16 %v1272
      %v1362 = vpack.c.b16 %v1341, %v1338
      %v1363 = vpack.c.b16 %v1342, %v1339
      %v1364 = vpack.c.b16 %v1343, %v1340
      %v1365 = vpack.c.b16 %v1347, %v1344
      %v1366 = vpack.c.b16 %v1348, %v1345
      %v1367 = vpack.c.b16 %v1349, %v1346
      %v1368 = vpack.c.b16 %v1353, %v1350
      %v1369 = vpack.c.b16 %v1354, %v1351
      %v1370 = vpack.c.b16 %v1355, %v1352
      %v1371 = vpack.c.b16 %v1359, %v1356
      %v1372 = vpack.c.b16 %v1360, %v1357
      %v1373 = vpack.c.b16 %v1361, %v1358
      %v1434 = vunpack.c.l.b16 %v1274
      %v1435 = vunpack.c.l.b16 %v1275
      %v1436 = vunpack.c.l.b16 %v1276
      %v1437 = vunpack.c.l.b16 %v1277
      %v1438 = vunpack.c.l.b16 %v1278
      %v1439 = vunpack.c.l.b16 %v1279
      %v1440 = vunpack.c.l.b16 %v1280
      %v1441 = vunpack.c.l.b16 %v1281
      %v1442 = vunpack.c.l.b16 %v1282
      %v1443 = vunpack.c.l.b16 %v1283
      %v1444 = vunpack.c.l.b16 %v1284
      %v1445 = vunpack.c.l.b16 %v1285
      %v1446 = vunpack.c.l.b16 %v1286
      %v1447 = vunpack.c.l.b16 %v1287
      %v1448 = vunpack.c.l.b16 %v1288
      %v1449 = vunpack.c.l.b16 %v1289
      %v1450 = vunpack.c.l.b16 %v1290
      %v1451 = vunpack.c.l.b16 %v1291
      %v1452 = vunpack.c.l.b16 %v1292
      %v1453 = vunpack.c.l.b16 %v1293
      %v1454 = vunpack.c.l.b16 %v1294
      %v1455 = vunpack.c.l.b16 %v1295
      %v1456 = vunpack.c.l.b16 %v1296
      %v1457 = vunpack.c.l.b16 %v1297
      %v1458 = vunpack.c.l.b16 %v1298
      %v1459 = vunpack.c.l.b16 %v1299
      %v1460 = vunpack.c.l.b16 %v1300
      %v1461 = vunpack.c.l.b16 %v1301
      %v1462 = vunpack.c.l.b16 %v1302
      %v1463 = vunpack.c.l.b16 %v1303
      %v1464 = vunpack.c.l.b16 %v1304
      %v1465 = vunpack.c.l.b16 %v1305
      %v1466 = vunpack.c.l.b16 %v1306
      %v1467 = vunpack.c.l.b16 %v1307
      %v1468 = vunpack.c.l.b16 %v1308
      %v1469 = vunpack.c.l.b16 %v1309
      %v1470 = vunpack.c.l.b16 %v1310
      %v1471 = vunpack.c.l.b16 %v1311
      %v1472 = vunpack.c.l.b16 %v1312
      %v1473 = vunpack.c.l.b16 %v1313
      %v1474 = vunpack.c.l.b16 %v1314
      %v1475 = vunpack.c.l.b16 %v1315
      %v1476 = vunpack.c.l.b16 %v1316
      %v1477 = vunpack.c.l.b16 %v1317
      %v1478 = vunpack.c.l.b16 %v1318
      %v1479 = vunpack.c.l.b16 %v1319
      %v1480 = vunpack.c.l.b16 %v1320
      %v1481 = vunpack.c.l.b16 %v1321
      %v1482 = vpack.c.b16 %v1435, %v1434
      %v1483 = vpack.c.b16 %v1437, %v1436
      %v1484 = vpack.c.b16 %v1439, %v1438
      %v1485 = vpack.c.b16 %v1441, %v1440
      %v1486 = vpack.c.b16 %v1443, %v1442
      %v1487 = vpack.c.b16 %v1445, %v1444
      %v1488 = vpack.c.b16 %v1447, %v1446
      %v1489 = vpack.c.b16 %v1449, %v1448
      %v1490 = vpack.c.b16 %v1451, %v1450
      %v1491 = vpack.c.b16 %v1453, %v1452
      %v1492 = vpack.c.b16 %v1455, %v1454
      %v1493 = vpack.c.b16 %v1457, %v1456
      %v1494 = vpack.c.b16 %v1459, %v1458
      %v1495 = vpack.c.b16 %v1461, %v1460
      %v1496 = vpack.c.b16 %v1463, %v1462
      %v1497 = vpack.c.b16 %v1465, %v1464
      %v1498 = vpack.c.b16 %v1467, %v1466
      %v1499 = vpack.c.b16 %v1469, %v1468
      %v1500 = vpack.c.b16 %v1471, %v1470
      %v1501 = vpack.c.b16 %v1473, %v1472
      %v1502 = vpack.c.b16 %v1475, %v1474
      %v1503 = vpack.c.b16 %v1477, %v1476
      %v1504 = vpack.c.b16 %v1479, %v1478
      %v1505 = vpack.c.b16 %v1481, %v1480
      %1530 = vmatprep.subr.bf16.mxu0 0
      %1531 = vmatpush1.bf16.msra.mxu0 %v1489
      %1532 = vmatprep.subr.bf16.mxu0 0
      %1533 = vmatpush1.bf16.msra.mxu0 %v1488
      %1534 = vmatprep.subr.bf16.mxu0 0
      %1535 = vmatpush1.bf16.msra.mxu0 %v1487
      %1536 = vmatprep.subr.bf16.mxu0 0
      %1537 = vmatpush1.bf16.msra.mxu0 %v1486
      %1538 = vmatprep.subr.bf16.mxu0 0
      %1539 = vmatpush1.bf16.msra.mxu0 %v1485
      %1540 = vmatprep.subr.bf16.mxu0 0
      %1541 = vmatpush1.bf16.msra.mxu0 %v1484
      %1542 = vmatprep.subr.bf16.mxu0 0
      %1543 = vmatpush1.bf16.msra.mxu0 %v1483
      %1544 = vmatprep.subr.bf16.mxu0 0
      %1545 = vmatpush1.bf16.msra.mxu0 %v1482
      %1546 = vmatprep.subr.bf16.mxu0 0
      %1547 = vmatpush2.bf16.msra.mxu0 %v1497
      %1548 = vmatprep.subr.bf16.mxu0 0
      %1549 = vmatpush2.bf16.msra.mxu0 %v1496
      %1550 = vmatprep.subr.bf16.mxu0 0
      %1551 = vmatpush2.bf16.msra.mxu0 %v1495
      %1552 = vmatprep.subr.bf16.mxu0 0
      %1553 = vmatpush2.bf16.msra.mxu0 %v1494
      %1554 = vmatprep.subr.bf16.mxu0 0
      %1555 = vmatpush2.bf16.msra.mxu0 %v1493
      %1556 = vmatprep.subr.bf16.mxu0 0
      %1557 = vmatpush2.bf16.msra.mxu0 %v1492
      %1558 = vmatprep.subr.bf16.mxu0 0
      %1559 = vmatpush2.bf16.msra.mxu0 %v1491
      %1560 = vmatprep.subr.bf16.mxu0 0
      %1561 = vmatpush2.bf16.msra.mxu0 %v1490
      %1562 = vmatprep.mubr.bf16.mxu0 %v1363
      %1563 = vmatmul.mubr.bf16.gmra.mxu0 %v1362
      %v1564 = vpop.f32.mrf.mxu0
      %v1565 = vadd.f32 0.0, %v1564
      %v1566 = vpop.f32.mrf.mxu0
      %v1567 = vpop.f32.mrf.mxu0
      %v1568 = vadd.f32 0.0, %v1567
      %v1569 = vpop.f32.mrf.mxu0
      %1570 = vmatprep.mubr.bf16.mxu0 %v1366
      %1571 = vmatmul.mubr.bf16.gmra.mxu0 %v1365
      %v1572 = vpop.f32.mrf.mxu0
      %v1573 = vadd.f32 0.0, %v1572
      %v1574 = vpop.f32.mrf.mxu0
      %v1575 = vpop.f32.mrf.mxu0
      %v1576 = vadd.f32 0.0, %v1575
      %v1577 = vpop.f32.mrf.mxu0
      %1578 = vmatprep.mubr.bf16.mxu0 %v1369
      %1579 = vmatmul.mubr.bf16.gmra.mxu0 %v1368
      %v1580 = vpop.f32.mrf.mxu0
      %v1581 = vadd.f32 0.0, %v1580
      %v1582 = vpop.f32.mrf.mxu0
      %v1583 = vpop.f32.mrf.mxu0
      %v1584 = vadd.f32 0.0, %v1583
      %v1585 = vpop.f32.mrf.mxu0
      %1586 = vmatprep.mubr.bf16.mxu0 %v1372
      %1587 = vmatmul.mubr.bf16.gmra.mxu0 %v1371
      %v1588 = vpop.f32.mrf.mxu0
      %v1589 = vadd.f32 0.0, %v1588
      %v1590 = vpop.f32.mrf.mxu0
      %v1591 = vpop.f32.mrf.mxu0
      %v1592 = vadd.f32 0.0, %v1591
      %v1593 = vpop.f32.mrf.mxu0
      %1594 = vdwg.mxu0
      %1595 = vmatprep.subr.bf16.mxu0 0
      %1596 = vmatpush1.bf16.msra.mxu0 %v1505
      %1597 = vmatprep.subr.bf16.mxu0 0
      %1598 = vmatpush1.bf16.msra.mxu0 %v1504
      %1599 = vmatprep.subr.bf16.mxu0 0
      %1600 = vmatpush1.bf16.msra.mxu0 %v1503
      %1601 = vmatprep.subr.bf16.mxu0 0
      %1602 = vmatpush1.bf16.msra.mxu0 %v1502
      %1603 = vmatprep.subr.bf16.mxu0 0
      %1604 = vmatpush1.bf16.msra.mxu0 %v1501
      %1605 = vmatprep.subr.bf16.mxu0 0
      %1606 = vmatpush1.bf16.msra.mxu0 %v1500
      %1607 = vmatprep.subr.bf16.mxu0 0
      %1608 = vmatpush1.bf16.msra.mxu0 %v1499
      %1609 = vmatprep.subr.bf16.mxu0 0
      %1610 = vmatpush1.bf16.msra.mxu0 %v1498
      %1611 = vmatprep.subr.bf16.mxu0 0
      %1612 = vmatpush2.bf16.msra.mxu0 0
      %1613 = vmatprep.subr.bf16.mxu0 0
      %1614 = vmatpush2.bf16.msra.mxu0 0
      %1615 = vmatprep.subr.bf16.mxu0 0
      %1616 = vmatpush2.bf16.msra.mxu0 0
      %1617 = vmatprep.subr.bf16.mxu0 0
      %1618 = vmatpush2.bf16.msra.mxu0 0
      %1619 = vmatprep.subr.bf16.mxu0 0
      %1620 = vmatpush2.bf16.msra.mxu0 0
      %1621 = vmatprep.subr.bf16.mxu0 0
      %1622 = vmatpush2.bf16.msra.mxu0 0
      %1623 = vmatprep.subr.bf16.mxu0 0
      %1624 = vmatpush2.bf16.msra.mxu0 0
      %1625 = vmatprep.subr.bf16.mxu0 0
      %1626 = vmatpush2.bf16.msra.mxu0 0
      %1627 = vmatprep.mubr.bf16.mxu0 0
      %1628 = vmatmul.mubr.bf16.gmra.mxu0 %v1364
      %v1629 = vpop.f32.mrf.mxu0
      %v1630 = vadd.f32 %v1565, %v1629
      %v1631 = vpop.f32.mrf.mxu0
      %v1632 = vpop.f32.mrf.mxu0
      %v1633 = vadd.f32 %v1568, %v1632
      %v1634 = vpop.f32.mrf.mxu0
      %1635 = vmatprep.mubr.bf16.mxu0 0
      %1636 = vmatmul.mubr.bf16.gmra.mxu0 %v1367
      %v1637 = vpop.f32.mrf.mxu0
      %v1638 = vadd.f32 %v1573, %v1637
      %v1639 = vpop.f32.mrf.mxu0
      %v1640 = vpop.f32.mrf.mxu0
      %v1641 = vadd.f32 %v1576, %v1640
      %v1642 = vpop.f32.mrf.mxu0
      %1643 = vmatprep.mubr.bf16.mxu0 0
      %1644 = vmatmul.mubr.bf16.gmra.mxu0 %v1370
      %v1645 = vpop.f32.mrf.mxu0
      %v1646 = vadd.f32 %v1581, %v1645
      %v1647 = vpop.f32.mrf.mxu0
      %v1648 = vpop.f32.mrf.mxu0
      %v1649 = vadd.f32 %v1584, %v1648
      %v1650 = vpop.f32.mrf.mxu0
      %1651 = vmatprep.mubr.bf16.mxu0 0
      %1652 = vmatmul.mubr.bf16.gmra.mxu0 %v1373
      %v1653 = vpop.f32.mrf.mxu0
      %v1654 = vadd.f32 %v1589, %v1653
      %v1655 = vpop.f32.mrf.mxu0
      %v1656 = vpop.f32.mrf.mxu0
      %v1657 = vadd.f32 %v1592, %v1656
      %v1658 = vpop.f32.mrf.mxu0
      %1659 = vdwg.mxu0
      %v1660 = vadd.f32 %v1226, %v1630
      %v1661 = vadd.f32 %v1229, %v1633
      %v1662 = vadd.f32 %v1234, %v1638
      %v1663 = vadd.f32 %v1237, %v1641
      %v1664 = vadd.f32 %v1242, %v1646
      %v1665 = vadd.f32 %v1245, %v1649
      %v1666 = vadd.f32 %v1250, %v1654
      %v1667 = vadd.f32 %v1253, %v1657
      %v1668 = vpack.c.bf16 %v1661, %v1660
      %v1669 = vpack.c.bf16 %v1663, %v1662
      %v1670 = vpack.c.bf16 %v1665, %v1664
      %v1671 = vpack.c.bf16 %v1667, %v1666
      %v1676 = vunpack.c.l.b16 %v1668
      %v1677 = vunpack.c.h.b16 %v1668
      %v1678 = vunpack.c.l.b16 %v1669
      %v1679 = vunpack.c.h.b16 %v1669
      %v1680 = vunpack.c.l.b16 %v1670
      %v1681 = vunpack.c.h.b16 %v1670
      %v1682 = vunpack.c.l.b16 %v1671
      %v1683 = vunpack.c.h.b16 %v1671
      %v1684 = vpack.c.b16 %v1676, %v1676
      %v1685 = vpack.c.b16 %v1677, %v1677
      %v1686 = vpack.c.b16 %v1678, %v1678
      %v1687 = vpack.c.b16 %v1679, %v1679
      %v1688 = vpack.c.b16 %v1680, %v1680
      %v1689 = vpack.c.b16 %v1681, %v1681
      %v1690 = vpack.c.b16 %v1682, %v1682
      %v1691 = vpack.c.b16 %v1683, %v1683
      %1700 = vst [vmem:[%s258] sm:$0xf] %v1684
      %1701 = vst [vmem:[%s258 + $0x4] sm:$0xf] %v1685
      %1702 = vst [vmem:[%s258 + $0x8] sm:$0xf] %v1686
      %1703 = vst [vmem:[%s258 + $0xc] sm:$0xf] %v1687
      %1704 = vst [vmem:[%s258 + $0x10] sm:$0xf] %v1688
      %1705 = vst [vmem:[%s258 + $0x14] sm:$0xf] %v1689
      %1706 = vst [vmem:[%s258 + $0x18] sm:$0xf] %v1690
      %1707 = vst [vmem:[%s258 + $0x1c] sm:$0xf] %v1691
      %v1708 = vadd.f32 %v1660, %v1661
      %v1709 = vadd.f32 %v1708, %v1662
      %v1710 = vadd.f32 %v1709, %v1663
      %v1711 = vadd.f32 %v1710, %v1664
      %v1712 = vadd.f32 %v1711, %v1665
      %v1713 = vadd.f32 %v1712, %v1666
      %v1714 = vadd.f32 %v1713, %v1667
      %v1715 = vrot.slane %v1714, 4
      %v1716 = vadd.f32 %v1714, %v1715
      %v1717 = vrot.slane %v1716, 2
      %v1718 = vadd.f32 %v1716, %v1717
      %v1719 = vrot.slane %v1718, 1
      %v1720 = vadd.f32 %v1718, %v1719
      %v1721 = vmul.f32 %v1660, %v1660
      %v1722 = vmul.f32 %v1661, %v1661
      %v1723 = vmul.f32 %v1662, %v1662
      %v1724 = vmul.f32 %v1663, %v1663
      %v1725 = vmul.f32 %v1664, %v1664
      %v1726 = vmul.f32 %v1665, %v1665
      %v1727 = vmul.f32 %v1666, %v1666
      %v1728 = vmul.f32 %v1667, %v1667
      %v1729 = vadd.f32 %v1721, %v1722
      %v1730 = vadd.f32 %v1729, %v1723
      %v1731 = vadd.f32 %v1730, %v1724
      %v1732 = vadd.f32 %v1731, %v1725
      %v1733 = vadd.f32 %v1732, %v1726
      %v1734 = vadd.f32 %v1733, %v1727
      %v1735 = vadd.f32 %v1734, %v1728
      %v1736 = vrot.slane %v1735, 4
      %v1737 = vadd.f32 %v1735, %v1736
      %v1738 = vrot.slane %v1737, 2
      %v1739 = vadd.f32 %v1737, %v1738
      %v1740 = vrot.slane %v1739, 1
      %v1741 = vadd.f32 %v1739, %v1740
      %vm1742 = vcmask 1040384
      %v1743 = vsel %vm1742, %v1720, %v1741
      %vm1744 = vcmask 1041408
      %v1745 = vsel %vm1744, %v1743, 0.0
      %1746 = vst [vmem:[%s263] sm:$0xff] %v1745
      %s1747 = smul.u32 8, %s18
      %p1748 = scmp.lt.s32.totalorder %s1747, 15
      %s1749 = scalar_select %p1748, %s1747, 15
      %s1750 = smul.addr %s1749, 4
      %s1751 = scalar_lea.vmem %s5, %s1750
      %p1752 = scmp.lt.s32.totalorder %s18, 1
      %s1753 = scalar_select %p1752, %s18, 1
      %s1754 = smul.addr %s1753, 8
      %s1755 = scalar_lea.vmem %s6, %s1754
      // Predicated region
      $region41: #{_lambda_.5} parent=39 // pred_check
        %p1756 = pneg %p146
      $region42: #{_lambda_.5} parent=39 // pred_check_branch
        %1758 = sbr.rel (%p1756) target = $region44
      $region43: #{_lambda_.5} parent=39 // pred_region
        %s1759 = smul.u32 8, %s18
      $region44: #{_lambda_.5} parent=39 // pred_fallthru
        _
      // Predicated region
      $region45: #{_lambda_.5} parent=39 // pred_check
        %p1760 = pneg %p172
      $region46: #{_lambda_.5} parent=39 // pred_check_branch
        %1762 = sbr.rel (%p1760) target = $region48
      $region47: #{_lambda_.5} parent=39 // pred_region
        _
      $region48: #{_lambda_.5} parent=39 // pred_fallthru
        _
    $region40: #{_lambda_.5} parent=5 // pred_fallthru
      _
    %p1763 = scmp.le.s32.totalorder 2, %s13
    // Predicated region
    $region49: #{_lambda_.5} parent=5 // pred_check
      %p1764 = pneg %p1763
    $region50: #{_lambda_.5} parent=5 // pred_check_branch
      %1766 = sbr.rel (%p1764) target = $region52
    $region51: #{_lambda_.5} parent=5 // pred_region
      %s1767 = ssub.s32 %s13, 2
      // Predicated region
      $region53: #{_lambda_.5} parent=51 // pred_check
        %p1768 = pneg %p152
      $region54: #{_lambda_.5} parent=51 // pred_check_branch
        %1770 = sbr.rel (%p1768) target = $region56
      $region55: #{_lambda_.5} parent=51 // pred_region
        %s1771 = smul.u32 8, %s19
        %p1772 = scmp.lt.s32.totalorder %s1771, 15
        %s1773 = scalar_select %p1772, %s1771, 15
        %s1774 = smul.addr %s1773, 4
        %s1775 = scalar_lea.vmem %s5, %s1774
      $region56: #{_lambda_.5} parent=51 // pred_fallthru
        _
      // Predicated region
      $region57: #{_lambda_.5} parent=51 // pred_check
        %p1776 = pneg %p178
      $region58: #{_lambda_.5} parent=51 // pred_check_branch
        %1778 = sbr.rel (%p1776) target = $region60
      $region59: #{_lambda_.5} parent=51 // pred_region
        %p1779 = scmp.lt.s32.totalorder %s19, 1
        %s1780 = scalar_select %p1779, %s19, 1
        %s1781 = smul.addr %s1780, 8
        %s1782 = scalar_lea.vmem %s6, %s1781
      $region60: #{_lambda_.5} parent=51 // pred_fallthru
        _
    $region52: #{_lambda_.5} parent=5 // pred_fallthru
      _
  $region6: #{_lambda_.5} parent=0 // loop_footer
    %s17 = sadd.s32 1, %s13
  $region7: #{_lambda_.5} parent=0 // loop_footer_branch
    %12 = sbr.rel target = $region3
  $region8: #{_lambda_.5} parent=0 // loop_exit
    _

</llo_original>
